<compile_context>
chip_gen: v7x
topology: tpu7x:2x2x1
jax: 0.10.0
libtpu: 0.0.40
codegen_flags: <defaults>
</compile_context>

<pallas_src>
import math

import jax
import jax.numpy as jnp
from jax import lax
from jax.experimental import pallas as pl

# ----------------------------- tiny BERT config -----------------------------
VOCAB = 100
TYPE_VOCAB = 2
MAX_POS = 16
B = 2            # batch
S = 8            # sequence length
H = 32           # hidden size
NHEADS = 4
HEAD = H // NHEADS
INTER = 64       # intermediate (FFN) size
LAYERS = 2
NUM_LABELS = 2
LN_EPS = 1e-12
ATTN_SCALE = 1.0 / math.sqrt(HEAD)
OUT_W = 128      # lane-dense output width: [logits | probs | zero pad]


# ----------------------------- in-kernel helpers -----------------------------
def _layernorm(x, g, b):
    mu = jnp.mean(x, axis=-1, keepdims=True)
    d = x - mu
    var = jnp.mean(d * d, axis=-1, keepdims=True)
    return d * lax.rsqrt(var + LN_EPS) * g + b


def _gelu(y):
    # TODO(synk): BERT uses the exact erf-GELU; tanh approximation used here.
    c = math.sqrt(2.0 / math.pi)
    return 0.5 * y * (1.0 + jnp.tanh(c * (y + 0.044715 * y * y * y)))


# ------------------------------- fused kernel --------------------------------
def _bert_kernel(emb_ref, bias_ref, hvec_ref,
                 wqkv_ref, wo_ref, w1_ref, w2_ref, lvec_ref,
                 poolw_ref, clsw_ref, out_ref):
    # Packed non-layer vectors: rows = [emb_ln_g, emb_ln_b, pool_b, cls_b(pad), 0...]
    hv = hvec_ref[...]                               # (8, H) f32
    emb_g = hv[0:1, :]
    emb_b = hv[1:2, :]
    pool_b = hv[2:3, :]
    cls_b = hv[3:4, :NUM_LABELS]

    attn_bias = bias_ref[...]                        # (B*NHEADS, S, S) f32

    # Embedding LayerNorm seeds the activation (loop carry, stays in registers/VMEM).
    x0 = _layernorm(emb_ref[...], emb_g, emb_b)      # (B*S, H) f32

    def split_heads(t):                              # (B*S, H) -> (B*NHEADS, S, HEAD)
        t4 = t.reshape(B, S, NHEADS, HEAD)
        return jnp.transpose(t4, (0, 2, 1, 3)).reshape(B * NHEADS, S, HEAD)

    def layer(l, x):
        # Packed per-layer vectors (one DMA stream per layer stack):
        # rows = [bqkv, bo, ln1_g, ln1_b, b1, b2, ln2_g, ln2_b] padded to 3H lanes.
        vecs = lvec_ref[l]                           # (8, 3H) f32
        bqkv = vecs[0:1, :]
        bo = vecs[1:2, :H]
        ln1g = vecs[2:3, :H]
        ln1b = vecs[3:4, :H]
        b1 = vecs[4:5, :INTER]
        b2 = vecs[5:6, :H]
        ln2g = vecs[6:7, :H]
        ln2b = vecs[7:8, :H]

        # ---- fused Q/K/V projection: single (H, 3H) bf16 matmul, f32 accumulate ----
        qkv = jnp.dot(x.astype(jnp.bfloat16), wqkv_ref[l],
                      preferred_element_type=jnp.float32) + bqkv        # (B*S, 3H)

        # ---- head-batched self-attention (no per-head Python loop / concats) ----
        q = split_heads(qkv[:, 0:H])                 # (B*NHEADS, S, HEAD)
        k = split_heads(qkv[:, H:2 * H])
        v = split_heads(qkv[:, 2 * H:3 * H])

        scores = jnp.einsum('nqd,nkd->nqk', q, k,
                            preferred_element_type=jnp.float32)         # (BH, S, S)
        scores = scores * ATTN_SCALE + attn_bias
        m = jnp.max(scores, axis=-1, keepdims=True)
        e = jnp.exp(scores - m)
        inv = pl.reciprocal(jnp.sum(e, axis=-1, keepdims=True), approx=True)
        p = e * inv
        ctx = jnp.einsum('nqk,nkd->nqd', p, v,
                         preferred_element_type=jnp.float32)            # (BH, S, HEAD)
        ctx = jnp.transpose(ctx.reshape(B, NHEADS, S, HEAD),
                            (0, 2, 1, 3)).reshape(B * S, H)             # merge heads

        # ---- output projection + residual + LayerNorm (fused epilogue) ----
        attn_out = jnp.dot(ctx.astype(jnp.bfloat16), wo_ref[l],
                           preferred_element_type=jnp.float32) + bo
        x = _layernorm(x + attn_out, ln1g, ln1b)

        # ---- FFN + residual + LayerNorm (fused epilogue) ----
        ff = _gelu(jnp.dot(x.astype(jnp.bfloat16), w1_ref[l],
                           preferred_element_type=jnp.float32) + b1)
        ff = jnp.dot(ff.astype(jnp.bfloat16), w2_ref[l],
                     preferred_element_type=jnp.float32) + b2
        return _layernorm(x + ff, ln2g, ln2b)

    x = lax.fori_loop(0, LAYERS, layer, x0, unroll=True)

    # ---- head: pooler(tanh) + classifier + softmax ----
    cls = x.reshape(B, S, H)[:, 0, :]                                   # (B, H)
    pooled = jnp.tanh(jnp.dot(cls.astype(jnp.bfloat16), poolw_ref[...],
                              preferred_element_type=jnp.float32) + pool_b)
    logits = jnp.dot(pooled.astype(jnp.bfloat16), clsw_ref[...],
                     preferred_element_type=jnp.float32) + cls_b        # (B, NUM_LABELS)
    m = jnp.max(logits, axis=-1, keepdims=True)
    e = jnp.exp(logits - m)
    probs = e / jnp.sum(e, axis=-1, keepdims=True)

    # Single lane-dense (B, 128) output block: [logits | probs | zero pad].
    pad = jnp.zeros((B, OUT_W - 2 * NUM_LABELS), jnp.float32)
    out_ref[...] = jnp.concatenate([logits, probs, pad], axis=1)


# ------------------------------ parameter init ------------------------------
def init_params(key):
    keys = iter(jax.random.split(key, 16))

    def normal(shape):
        return jax.random.normal(next(keys), shape, jnp.float32) * 0.02

    return {
        "word_emb": normal((VOCAB, H)),
        "pos_emb": normal((MAX_POS, H)),
        "type_emb": normal((TYPE_VOCAB, H)),
        "emb_ln_g": jnp.ones((1, H), jnp.float32),
        "emb_ln_b": jnp.zeros((1, H), jnp.float32),
        # Per-layer weights stacked on a leading LAYERS axis; Q|K|V fused.
        "wqkv": normal((LAYERS, H, 3 * H)),
        "bqkv": jnp.zeros((LAYERS, 1, 3 * H), jnp.float32),
        "wo": normal((LAYERS, H, H)),
        "bo": jnp.zeros((LAYERS, 1, H), jnp.float32),
        "ln1_g": jnp.ones((LAYERS, 1, H), jnp.float32),
        "ln1_b": jnp.zeros((LAYERS, 1, H), jnp.float32),
        "w1": normal((LAYERS, H, INTER)),
        "b1": jnp.zeros((LAYERS, 1, INTER), jnp.float32),
        "w2": normal((LAYERS, INTER, H)),
        "b2": jnp.zeros((LAYERS, 1, H), jnp.float32),
        "ln2_g": jnp.ones((LAYERS, 1, H), jnp.float32),
        "ln2_b": jnp.zeros((LAYERS, 1, H), jnp.float32),
        "pool_w": normal((H, H)),
        "pool_b": jnp.zeros((1, H), jnp.float32),
        "cls_w": normal((H, NUM_LABELS)),
        "cls_b": jnp.zeros((1, NUM_LABELS), jnp.float32),
    }


# -------------------------------- forward pass -------------------------------
def bert_model_predict(params, seqs, seq_masks, seq_segments):
    """Mirrors BertModelPredict.forward -> (logits, probabilities)."""
    # Embedding gathers are glue; everything else runs in the fused Pallas kernel.
    pos_ids = jnp.arange(S, dtype=jnp.int32)
    emb = (params["word_emb"][seqs]
           + params["pos_emb"][pos_ids][None, :, :]
           + params["type_emb"][seq_segments]).reshape(B * S, H)          # (B*S, H)

    # Attention mask bias, pre-expanded to the head-batched score shape.
    mask_bias = (1.0 - seq_masks.astype(jnp.float32)) * -10000.0          # (B, S)
    attn_bias = jnp.broadcast_to(mask_bias[:, None, None, :],
                                 (B, NHEADS, S, S)).reshape(B * NHEADS, S, S)

    # Pack small non-layer vectors into one (8, H) block.
    def pad_last(a, w):
        return jnp.pad(a, ((0, 0), (0, w - a.shape[-1])))

    head_vecs = jnp.concatenate(
        [params["emb_ln_g"], params["emb_ln_b"], params["pool_b"],
         pad_last(params["cls_b"], H), jnp.zeros((4, H), jnp.float32)], axis=0)

    # Pack all per-layer bias / LayerNorm vectors into one (LAYERS, 8, 3H) block.
    W3 = 3 * H

    def pad_l(a):
        return jnp.pad(a, ((0, 0), (0, 0), (0, W3 - a.shape[-1])))

    layer_vecs = jnp.concatenate(
        [pad_l(params["bqkv"]), pad_l(params["bo"]),
         pad_l(params["ln1_g"]), pad_l(params["ln1_b"]),
         pad_l(params["b1"]), pad_l(params["b2"]),
         pad_l(params["ln2_g"]), pad_l(params["ln2_b"])], axis=1)         # (L, 8, 3H)

    bf = jnp.bfloat16  # MXU-native weight dtype; accumulation stays f32.

    # Everything fits comfortably in VMEM at this size -> no grid, no pipelining:
    # full arrays are copied in once and the layer loop runs inside the kernel.
    out = pl.pallas_call(
        _bert_kernel,
        out_shape=jax.ShapeDtypeStruct((B, OUT_W), jnp.float32),
    )(emb, attn_bias, head_vecs,
      params["wqkv"].astype(bf), params["wo"].astype(bf),
      params["w1"].astype(bf), params["w2"].astype(bf),
      layer_vecs,
      params["pool_w"].astype(bf), params["cls_w"].astype(bf))

    logits = out[:, :NUM_LABELS]
    probs = out[:, NUM_LABELS:2 * NUM_LABELS]
    return logits, probs


# ------------------------------------ main -----------------------------------
if __name__ == "__main__":
    key = jax.random.PRNGKey(0)
    pkey, dkey = jax.random.split(key)
    params = init_params(pkey)

    seqs = jax.random.randint(dkey, (B, S), 0, VOCAB, dtype=jnp.int32)
    seq_masks = jnp.array([[1] * S, [1] * (S - 2) + [0, 0]], dtype=jnp.int32)
    seq_segments = jnp.array([[0] * S, [0] * (S // 2) + [1] * (S // 2)], dtype=jnp.int32)

    fwd = jax.jit(bert_model_predict)
    logits, probs = fwd(params, seqs, seq_masks, seq_segments)
    jax.block_until_ready((logits, probs))

    assert logits.shape == (B, NUM_LABELS) and probs.shape == (B, NUM_LABELS)
    assert bool(jnp.all(jnp.isfinite(logits))) and bool(jnp.all(jnp.isfinite(probs)))
    assert bool(jnp.allclose(jnp.sum(probs, axis=-1), 1.0, atol=1e-5))
    print("KERNEL_OK")
</pallas_src>

<mosaic_0001>
module attributes {stable_mosaic.version = 11 : i64} {
  func.func @_bert_kernel(%arg0: memref<16x32xf32, #tpu.memory_space<vmem>>, %arg1: memref<8x8x8xf32, #tpu.memory_space<vmem>>, %arg2: memref<8x32xf32, #tpu.memory_space<vmem>>, %arg3: memref<2x32x96xbf16, #tpu.memory_space<vmem>>, %arg4: memref<2x32x32xbf16, #tpu.memory_space<vmem>>, %arg5: memref<2x32x64xbf16, #tpu.memory_space<vmem>>, %arg6: memref<2x64x32xbf16, #tpu.memory_space<vmem>>, %arg7: memref<2x8x96xf32, #tpu.memory_space<vmem>>, %arg8: memref<32x32xbf16, #tpu.memory_space<vmem>>, %arg9: memref<32x2xbf16, #tpu.memory_space<vmem>>, %arg10: memref<2x128xf32, #tpu.memory_space<vmem>>) attributes {dimension_semantics = [], scalar_prefetch = 0 : i64, scratch_operands = 0 : i64, tpu.core_type = #tpu.core_type<tc>} {
    %c0 = arith.constant 0 : index
    %c0_0 = arith.constant 0 : index
    %0 = vector.load %arg2[%c0, %c0_0] : memref<8x32xf32, #tpu.memory_space<vmem>>, vector<8x32xf32>
    %1 = vector.extract_strided_slice %0 {offsets = [0, 0], sizes = [1, 32], strides = [1, 1]} : vector<8x32xf32> to vector<1x32xf32>
    %2 = vector.extract_strided_slice %0 {offsets = [1, 0], sizes = [1, 32], strides = [1, 1]} : vector<8x32xf32> to vector<1x32xf32>
    %3 = vector.extract_strided_slice %0 {offsets = [2, 0], sizes = [1, 32], strides = [1, 1]} : vector<8x32xf32> to vector<1x32xf32>
    %4 = vector.extract_strided_slice %0 {offsets = [3, 0], sizes = [1, 2], strides = [1, 1]} : vector<8x32xf32> to vector<1x2xf32>
    %c0_1 = arith.constant 0 : index
    %c0_2 = arith.constant 0 : index
    %c0_3 = arith.constant 0 : index
    %5 = vector.load %arg1[%c0_1, %c0_2, %c0_3] : memref<8x8x8xf32, #tpu.memory_space<vmem>>, vector<8x8x8xf32>
    %c0_4 = arith.constant 0 : index
    %c0_5 = arith.constant 0 : index
    %6 = vector.load %arg0[%c0_4, %c0_5] : memref<16x32xf32, #tpu.memory_space<vmem>>, vector<16x32xf32>
    %cst = arith.constant dense<0.000000e+00> : vector<16xf32>
    %7 = vector.multi_reduction <add>, %6, %cst [1] : vector<16x32xf32> to vector<16xf32>
    %8 = vector.shape_cast %7 : vector<16xf32> to vector<16x1xf32>
    %cst_6 = arith.constant 3.200000e+01 : f32
    %9 = vector.broadcast %cst_6 : f32 to vector<16x1xf32>
    %10 = arith.divf %8, %9 : vector<16x1xf32>
    %11 = vector.broadcast %10 : vector<16x1xf32> to vector<16x32xf32>
    %12 = arith.subf %6, %11 : vector<16x32xf32>
    %13 = arith.mulf %12, %12 : vector<16x32xf32>
    %cst_7 = arith.constant dense<0.000000e+00> : vector<16xf32>
    %14 = vector.multi_reduction <add>, %13, %cst_7 [1] : vector<16x32xf32> to vector<16xf32>
    %15 = vector.shape_cast %14 : vector<16xf32> to vector<16x1xf32>
    %cst_8 = arith.constant 3.200000e+01 : f32
    %16 = vector.broadcast %cst_8 : f32 to vector<16x1xf32>
    %17 = arith.divf %15, %16 : vector<16x1xf32>
    %cst_9 = arith.constant 9.99999996E-13 : f32
    %18 = vector.broadcast %cst_9 : f32 to vector<16x1xf32>
    %19 = arith.addf %17, %18 : vector<16x1xf32>
    %20 = math.rsqrt %19 : vector<16x1xf32>
    %21 = vector.broadcast %20 : vector<16x1xf32> to vector<16x32xf32>
    %22 = arith.mulf %12, %21 : vector<16x32xf32>
    %23 = vector.broadcast %1 : vector<1x32xf32> to vector<16x32xf32>
    %24 = arith.mulf %22, %23 : vector<16x32xf32>
    %25 = vector.broadcast %2 : vector<1x32xf32> to vector<16x32xf32>
    %26 = arith.addf %24, %25 : vector<16x32xf32>
    %c0_i32 = arith.constant 0 : i32
    %27 = arith.index_cast %c0_i32 : i32 to index
    %c0_10 = arith.constant 0 : index
    %c0_11 = arith.constant 0 : index
    %28 = vector.load %arg7[%27, %c0_10, %c0_11] : memref<2x8x96xf32, #tpu.memory_space<vmem>>, vector<1x8x96xf32>
    %29 = vector.shape_cast %28 : vector<1x8x96xf32> to vector<8x96xf32>
    %30 = vector.extract_strided_slice %29 {offsets = [0, 0], sizes = [1, 96], strides = [1, 1]} : vector<8x96xf32> to vector<1x96xf32>
    %31 = vector.extract_strided_slice %29 {offsets = [1, 0], sizes = [1, 32], strides = [1, 1]} : vector<8x96xf32> to vector<1x32xf32>
    %32 = vector.extract_strided_slice %29 {offsets = [2, 0], sizes = [1, 32], strides = [1, 1]} : vector<8x96xf32> to vector<1x32xf32>
    %33 = vector.extract_strided_slice %29 {offsets = [3, 0], sizes = [1, 32], strides = [1, 1]} : vector<8x96xf32> to vector<1x32xf32>
    %34 = vector.extract_strided_slice %29 {offsets = [4, 0], sizes = [1, 64], strides = [1, 1]} : vector<8x96xf32> to vector<1x64xf32>
    %35 = vector.extract_strided_slice %29 {offsets = [5, 0], sizes = [1, 32], strides = [1, 1]} : vector<8x96xf32> to vector<1x32xf32>
    %36 = vector.extract_strided_slice %29 {offsets = [6, 0], sizes = [1, 32], strides = [1, 1]} : vector<8x96xf32> to vector<1x32xf32>
    %37 = vector.extract_strided_slice %29 {offsets = [7, 0], sizes = [1, 32], strides = [1, 1]} : vector<8x96xf32> to vector<1x32xf32>
    %38 = arith.truncf %26 : vector<16x32xf32> to vector<16x32xbf16>
    %39 = arith.index_cast %c0_i32 : i32 to index
    %c0_12 = arith.constant 0 : index
    %c0_13 = arith.constant 0 : index
    %40 = vector.load %arg3[%39, %c0_12, %c0_13] : memref<2x32x96xbf16, #tpu.memory_space<vmem>>, vector<1x32x96xbf16>
    %41 = vector.shape_cast %40 : vector<1x32x96xbf16> to vector<32x96xbf16>
    %cst_14 = arith.constant dense<0.000000e+00> : vector<16x96xf32>
    %42 = tpu.matmul %38, %41, %cst_14 {dimension_numbers = #tpu.dot_dimension_numbers<[1], [0], [0], [1], [0, 0, 1, 1], [], []>} : vector<16x32xbf16>, vector<32x96xbf16>, vector<16x96xf32> -> vector<16x96xf32>
    %43 = vector.broadcast %30 : vector<1x96xf32> to vector<16x96xf32>
    %44 = arith.addf %42, %43 : vector<16x96xf32>
    %45 = vector.extract_strided_slice %44 {offsets = [0, 0], sizes = [16, 32], strides = [1, 1]} : vector<16x96xf32> to vector<16x32xf32>
    %46 = vector.shape_cast %45 : vector<16x32xf32> to vector<2x8x4x8xf32>
    %47 = tpu.transpose %46, [0, 2, 1, 3] : vector<2x8x4x8xf32> -> vector<2x4x8x8xf32>
    %48 = vector.shape_cast %47 : vector<2x4x8x8xf32> to vector<8x8x8xf32>
    %49 = vector.extract_strided_slice %44 {offsets = [0, 32], sizes = [16, 32], strides = [1, 1]} : vector<16x96xf32> to vector<16x32xf32>
    %50 = vector.shape_cast %49 : vector<16x32xf32> to vector<2x8x4x8xf32>
    %51 = tpu.transpose %50, [0, 2, 1, 3] : vector<2x8x4x8xf32> -> vector<2x4x8x8xf32>
    %52 = vector.shape_cast %51 : vector<2x4x8x8xf32> to vector<8x8x8xf32>
    %53 = vector.extract_strided_slice %44 {offsets = [0, 64], sizes = [16, 32], strides = [1, 1]} : vector<16x96xf32> to vector<16x32xf32>
    %54 = vector.shape_cast %53 : vector<16x32xf32> to vector<2x8x4x8xf32>
    %55 = tpu.transpose %54, [0, 2, 1, 3] : vector<2x8x4x8xf32> -> vector<2x4x8x8xf32>
    %56 = vector.shape_cast %55 : vector<2x4x8x8xf32> to vector<8x8x8xf32>
    "tpu.trace_start"() <{level = 10 : i32, message = "nqd,nkd->nqk"}> : () -> ()
    %cst_15 = arith.constant dense<0.000000e+00> : vector<8x8x8xf32>
    %57 = tpu.matmul %48, %52, %cst_15 {dimension_numbers = #tpu.dot_dimension_numbers<[2], [2], [1], [1], [0, 0, 0, 1, 1, 1], [0], [0]>} : vector<8x8x8xf32>, vector<8x8x8xf32>, vector<8x8x8xf32> -> vector<8x8x8xf32>
    "tpu.trace_stop"() : () -> ()
    %cst_16 = arith.constant 0.353553385 : f32
    %58 = vector.broadcast %cst_16 : f32 to vector<8x8x8xf32>
    %59 = arith.mulf %57, %58 : vector<8x8x8xf32>
    %60 = arith.addf %59, %5 : vector<8x8x8xf32>
    %cst_17 = arith.constant dense<0xFF800000> : vector<8x8xf32>
    %61 = vector.multi_reduction <maximumf>, %60, %cst_17 [2] : vector<8x8x8xf32> to vector<8x8xf32>
    %62 = vector.shape_cast %61 : vector<8x8xf32> to vector<8x8x1xf32>
    %63 = vector.broadcast %62 : vector<8x8x1xf32> to vector<8x8x8xf32>
    %64 = arith.subf %60, %63 : vector<8x8x8xf32>
    %65 = math.exp %64 : vector<8x8x8xf32>
    %cst_18 = arith.constant dense<0.000000e+00> : vector<8x8xf32>
    %66 = vector.multi_reduction <add>, %65, %cst_18 [2] : vector<8x8x8xf32> to vector<8x8xf32>
    %67 = vector.shape_cast %66 : vector<8x8xf32> to vector<8x8x1xf32>
    %68 = tpu.reciprocal %67 {approx = true} : vector<8x8x1xf32> -> vector<8x8x1xf32>
    %69 = vector.broadcast %68 : vector<8x8x1xf32> to vector<8x8x8xf32>
    %70 = arith.mulf %65, %69 : vector<8x8x8xf32>
    "tpu.trace_start"() <{level = 10 : i32, message = "nqk,nkd->nqd"}> : () -> ()
    %cst_19 = arith.constant dense<0.000000e+00> : vector<8x8x8xf32>
    %71 = tpu.matmul %70, %56, %cst_19 {dimension_numbers = #tpu.dot_dimension_numbers<[2], [1], [1], [2], [0, 0, 0, 1, 1, 2], [0], [0]>} : vector<8x8x8xf32>, vector<8x8x8xf32>, vector<8x8x8xf32> -> vector<8x8x8xf32>
    "tpu.trace_stop"() : () -> ()
    %72 = vector.shape_cast %71 : vector<8x8x8xf32> to vector<2x4x8x8xf32>
    %73 = tpu.transpose %72, [0, 2, 1, 3] : vector<2x4x8x8xf32> -> vector<2x8x4x8xf32>
    %74 = vector.shape_cast %73 : vector<2x8x4x8xf32> to vector<16x32xf32>
    %75 = arith.truncf %74 : vector<16x32xf32> to vector<16x32xbf16>
    %76 = arith.index_cast %c0_i32 : i32 to index
    %c0_20 = arith.constant 0 : index
    %c0_21 = arith.constant 0 : index
    %77 = vector.load %arg4[%76, %c0_20, %c0_21] : memref<2x32x32xbf16, #tpu.memory_space<vmem>>, vector<1x32x32xbf16>
    %78 = vector.shape_cast %77 : vector<1x32x32xbf16> to vector<32x32xbf16>
    %cst_22 = arith.constant dense<0.000000e+00> : vector<16x32xf32>
    %79 = tpu.matmul %75, %78, %cst_22 {dimension_numbers = #tpu.dot_dimension_numbers<[1], [0], [0], [1], [0, 0, 1, 1], [], []>} : vector<16x32xbf16>, vector<32x32xbf16>, vector<16x32xf32> -> vector<16x32xf32>
    %80 = vector.broadcast %31 : vector<1x32xf32> to vector<16x32xf32>
    %81 = arith.addf %79, %80 : vector<16x32xf32>
    %82 = arith.addf %26, %81 : vector<16x32xf32>
    %cst_23 = arith.constant dense<0.000000e+00> : vector<16xf32>
    %83 = vector.multi_reduction <add>, %82, %cst_23 [1] : vector<16x32xf32> to vector<16xf32>
    %84 = vector.shape_cast %83 : vector<16xf32> to vector<16x1xf32>
    %cst_24 = arith.constant 3.200000e+01 : f32
    %85 = vector.broadcast %cst_24 : f32 to vector<16x1xf32>
    %86 = arith.divf %84, %85 : vector<16x1xf32>
    %87 = vector.broadcast %86 : vector<16x1xf32> to vector<16x32xf32>
    %88 = arith.subf %82, %87 : vector<16x32xf32>
    %89 = arith.mulf %88, %88 : vector<16x32xf32>
    %cst_25 = arith.constant dense<0.000000e+00> : vector<16xf32>
    %90 = vector.multi_reduction <add>, %89, %cst_25 [1] : vector<16x32xf32> to vector<16xf32>
    %91 = vector.shape_cast %90 : vector<16xf32> to vector<16x1xf32>
    %cst_26 = arith.constant 3.200000e+01 : f32
    %92 = vector.broadcast %cst_26 : f32 to vector<16x1xf32>
    %93 = arith.divf %91, %92 : vector<16x1xf32>
    %cst_27 = arith.constant 9.99999996E-13 : f32
    %94 = vector.broadcast %cst_27 : f32 to vector<16x1xf32>
    %95 = arith.addf %93, %94 : vector<16x1xf32>
    %96 = math.rsqrt %95 : vector<16x1xf32>
    %97 = vector.broadcast %96 : vector<16x1xf32> to vector<16x32xf32>
    %98 = arith.mulf %88, %97 : vector<16x32xf32>
    %99 = vector.broadcast %32 : vector<1x32xf32> to vector<16x32xf32>
    %100 = arith.mulf %98, %99 : vector<16x32xf32>
    %101 = vector.broadcast %33 : vector<1x32xf32> to vector<16x32xf32>
    %102 = arith.addf %100, %101 : vector<16x32xf32>
    %103 = arith.truncf %102 : vector<16x32xf32> to vector<16x32xbf16>
    %104 = arith.index_cast %c0_i32 : i32 to index
    %c0_28 = arith.constant 0 : index
    %c0_29 = arith.constant 0 : index
    %105 = vector.load %arg5[%104, %c0_28, %c0_29] : memref<2x32x64xbf16, #tpu.memory_space<vmem>>, vector<1x32x64xbf16>
    %106 = vector.shape_cast %105 : vector<1x32x64xbf16> to vector<32x64xbf16>
    %cst_30 = arith.constant dense<0.000000e+00> : vector<16x64xf32>
    %107 = tpu.matmul %103, %106, %cst_30 {dimension_numbers = #tpu.dot_dimension_numbers<[1], [0], [0], [1], [0, 0, 1, 1], [], []>} : vector<16x32xbf16>, vector<32x64xbf16>, vector<16x64xf32> -> vector<16x64xf32>
    %108 = vector.broadcast %34 : vector<1x64xf32> to vector<16x64xf32>
    %109 = arith.addf %107, %108 : vector<16x64xf32>
    %cst_31 = arith.constant 5.000000e-01 : f32
    %110 = vector.broadcast %cst_31 : f32 to vector<16x64xf32>
    %111 = arith.mulf %110, %109 : vector<16x64xf32>
    %cst_32 = arith.constant 4.471500e-02 : f32
    %112 = vector.broadcast %cst_32 : f32 to vector<16x64xf32>
    %113 = arith.mulf %112, %109 : vector<16x64xf32>
    %114 = arith.mulf %113, %109 : vector<16x64xf32>
    %115 = arith.mulf %114, %109 : vector<16x64xf32>
    %116 = arith.addf %109, %115 : vector<16x64xf32>
    %cst_33 = arith.constant 0.797884583 : f32
    %117 = vector.broadcast %cst_33 : f32 to vector<16x64xf32>
    %118 = arith.mulf %117, %116 : vector<16x64xf32>
    %119 = math.tanh %118 : vector<16x64xf32>
    %cst_34 = arith.constant 1.000000e+00 : f32
    %120 = vector.broadcast %cst_34 : f32 to vector<16x64xf32>
    %121 = arith.addf %120, %119 : vector<16x64xf32>
    %122 = arith.mulf %111, %121 : vector<16x64xf32>
    %123 = arith.truncf %122 : vector<16x64xf32> to vector<16x64xbf16>
    %124 = arith.index_cast %c0_i32 : i32 to index
    %c0_35 = arith.constant 0 : index
    %c0_36 = arith.constant 0 : index
    %125 = vector.load %arg6[%124, %c0_35, %c0_36] : memref<2x64x32xbf16, #tpu.memory_space<vmem>>, vector<1x64x32xbf16>
    %126 = vector.shape_cast %125 : vector<1x64x32xbf16> to vector<64x32xbf16>
    %cst_37 = arith.constant dense<0.000000e+00> : vector<16x32xf32>
    %127 = tpu.matmul %123, %126, %cst_37 {dimension_numbers = #tpu.dot_dimension_numbers<[1], [0], [0], [1], [0, 0, 1, 1], [], []>} : vector<16x64xbf16>, vector<64x32xbf16>, vector<16x32xf32> -> vector<16x32xf32>
    %128 = vector.broadcast %35 : vector<1x32xf32> to vector<16x32xf32>
    %129 = arith.addf %127, %128 : vector<16x32xf32>
    %130 = arith.addf %102, %129 : vector<16x32xf32>
    %cst_38 = arith.constant dense<0.000000e+00> : vector<16xf32>
    %131 = vector.multi_reduction <add>, %130, %cst_38 [1] : vector<16x32xf32> to vector<16xf32>
    %132 = vector.shape_cast %131 : vector<16xf32> to vector<16x1xf32>
    %cst_39 = arith.constant 3.200000e+01 : f32
    %133 = vector.broadcast %cst_39 : f32 to vector<16x1xf32>
    %134 = arith.divf %132, %133 : vector<16x1xf32>
    %135 = vector.broadcast %134 : vector<16x1xf32> to vector<16x32xf32>
    %136 = arith.subf %130, %135 : vector<16x32xf32>
    %137 = arith.mulf %136, %136 : vector<16x32xf32>
    %cst_40 = arith.constant dense<0.000000e+00> : vector<16xf32>
    %138 = vector.multi_reduction <add>, %137, %cst_40 [1] : vector<16x32xf32> to vector<16xf32>
    %139 = vector.shape_cast %138 : vector<16xf32> to vector<16x1xf32>
    %cst_41 = arith.constant 3.200000e+01 : f32
    %140 = vector.broadcast %cst_41 : f32 to vector<16x1xf32>
    %141 = arith.divf %139, %140 : vector<16x1xf32>
    %cst_42 = arith.constant 9.99999996E-13 : f32
    %142 = vector.broadcast %cst_42 : f32 to vector<16x1xf32>
    %143 = arith.addf %141, %142 : vector<16x1xf32>
    %144 = math.rsqrt %143 : vector<16x1xf32>
    %145 = vector.broadcast %144 : vector<16x1xf32> to vector<16x32xf32>
    %146 = arith.mulf %136, %145 : vector<16x32xf32>
    %147 = vector.broadcast %36 : vector<1x32xf32> to vector<16x32xf32>
    %148 = arith.mulf %146, %147 : vector<16x32xf32>
    %149 = vector.broadcast %37 : vector<1x32xf32> to vector<16x32xf32>
    %150 = arith.addf %148, %149 : vector<16x32xf32>
    %c1_i32 = arith.constant 1 : i32
    %151 = arith.index_cast %c1_i32 : i32 to index
    %c0_43 = arith.constant 0 : index
    %c0_44 = arith.constant 0 : index
    %152 = vector.load %arg7[%151, %c0_43, %c0_44] : memref<2x8x96xf32, #tpu.memory_space<vmem>>, vector<1x8x96xf32>
    %153 = vector.shape_cast %152 : vector<1x8x96xf32> to vector<8x96xf32>
    %154 = vector.extract_strided_slice %153 {offsets = [0, 0], sizes = [1, 96], strides = [1, 1]} : vector<8x96xf32> to vector<1x96xf32>
    %155 = vector.extract_strided_slice %153 {offsets = [1, 0], sizes = [1, 32], strides = [1, 1]} : vector<8x96xf32> to vector<1x32xf32>
    %156 = vector.extract_strided_slice %153 {offsets = [2, 0], sizes = [1, 32], strides = [1, 1]} : vector<8x96xf32> to vector<1x32xf32>
    %157 = vector.extract_strided_slice %153 {offsets = [3, 0], sizes = [1, 32], strides = [1, 1]} : vector<8x96xf32> to vector<1x32xf32>
    %158 = vector.extract_strided_slice %153 {offsets = [4, 0], sizes = [1, 64], strides = [1, 1]} : vector<8x96xf32> to vector<1x64xf32>
    %159 = vector.extract_strided_slice %153 {offsets = [5, 0], sizes = [1, 32], strides = [1, 1]} : vector<8x96xf32> to vector<1x32xf32>
    %160 = vector.extract_strided_slice %153 {offsets = [6, 0], sizes = [1, 32], strides = [1, 1]} : vector<8x96xf32> to vector<1x32xf32>
    %161 = vector.extract_strided_slice %153 {offsets = [7, 0], sizes = [1, 32], strides = [1, 1]} : vector<8x96xf32> to vector<1x32xf32>
    %162 = arith.truncf %150 : vector<16x32xf32> to vector<16x32xbf16>
    %163 = arith.index_cast %c1_i32 : i32 to index
    %c0_45 = arith.constant 0 : index
    %c0_46 = arith.constant 0 : index
    %164 = vector.load %arg3[%163, %c0_45, %c0_46] : memref<2x32x96xbf16, #tpu.memory_space<vmem>>, vector<1x32x96xbf16>
    %165 = vector.shape_cast %164 : vector<1x32x96xbf16> to vector<32x96xbf16>
    %cst_47 = arith.constant dense<0.000000e+00> : vector<16x96xf32>
    %166 = tpu.matmul %162, %165, %cst_47 {dimension_numbers = #tpu.dot_dimension_numbers<[1], [0], [0], [1], [0, 0, 1, 1], [], []>} : vector<16x32xbf16>, vector<32x96xbf16>, vector<16x96xf32> -> vector<16x96xf32>
    %167 = vector.broadcast %154 : vector<1x96xf32> to vector<16x96xf32>
    %168 = arith.addf %166, %167 : vector<16x96xf32>
    %169 = vector.extract_strided_slice %168 {offsets = [0, 0], sizes = [16, 32], strides = [1, 1]} : vector<16x96xf32> to vector<16x32xf32>
    %170 = vector.shape_cast %169 : vector<16x32xf32> to vector<2x8x4x8xf32>
    %171 = tpu.transpose %170, [0, 2, 1, 3] : vector<2x8x4x8xf32> -> vector<2x4x8x8xf32>
    %172 = vector.shape_cast %171 : vector<2x4x8x8xf32> to vector<8x8x8xf32>
    %173 = vector.extract_strided_slice %168 {offsets = [0, 32], sizes = [16, 32], strides = [1, 1]} : vector<16x96xf32> to vector<16x32xf32>
    %174 = vector.shape_cast %173 : vector<16x32xf32> to vector<2x8x4x8xf32>
    %175 = tpu.transpose %174, [0, 2, 1, 3] : vector<2x8x4x8xf32> -> vector<2x4x8x8xf32>
    %176 = vector.shape_cast %175 : vector<2x4x8x8xf32> to vector<8x8x8xf32>
    %177 = vector.extract_strided_slice %168 {offsets = [0, 64], sizes = [16, 32], strides = [1, 1]} : vector<16x96xf32> to vector<16x32xf32>
    %178 = vector.shape_cast %177 : vector<16x32xf32> to vector<2x8x4x8xf32>
    %179 = tpu.transpose %178, [0, 2, 1, 3] : vector<2x8x4x8xf32> -> vector<2x4x8x8xf32>
    %180 = vector.shape_cast %179 : vector<2x4x8x8xf32> to vector<8x8x8xf32>
    "tpu.trace_start"() <{level = 10 : i32, message = "nqd,nkd->nqk"}> : () -> ()
    %cst_48 = arith.constant dense<0.000000e+00> : vector<8x8x8xf32>
    %181 = tpu.matmul %172, %176, %cst_48 {dimension_numbers = #tpu.dot_dimension_numbers<[2], [2], [1], [1], [0, 0, 0, 1, 1, 1], [0], [0]>} : vector<8x8x8xf32>, vector<8x8x8xf32>, vector<8x8x8xf32> -> vector<8x8x8xf32>
    "tpu.trace_stop"() : () -> ()
    %cst_49 = arith.constant 0.353553385 : f32
    %182 = vector.broadcast %cst_49 : f32 to vector<8x8x8xf32>
    %183 = arith.mulf %181, %182 : vector<8x8x8xf32>
    %184 = arith.addf %183, %5 : vector<8x8x8xf32>
    %cst_50 = arith.constant dense<0xFF800000> : vector<8x8xf32>
    %185 = vector.multi_reduction <maximumf>, %184, %cst_50 [2] : vector<8x8x8xf32> to vector<8x8xf32>
    %186 = vector.shape_cast %185 : vector<8x8xf32> to vector<8x8x1xf32>
    %187 = vector.broadcast %186 : vector<8x8x1xf32> to vector<8x8x8xf32>
    %188 = arith.subf %184, %187 : vector<8x8x8xf32>
    %189 = math.exp %188 : vector<8x8x8xf32>
    %cst_51 = arith.constant dense<0.000000e+00> : vector<8x8xf32>
    %190 = vector.multi_reduction <add>, %189, %cst_51 [2] : vector<8x8x8xf32> to vector<8x8xf32>
    %191 = vector.shape_cast %190 : vector<8x8xf32> to vector<8x8x1xf32>
    %192 = tpu.reciprocal %191 {approx = true} : vector<8x8x1xf32> -> vector<8x8x1xf32>
    %193 = vector.broadcast %192 : vector<8x8x1xf32> to vector<8x8x8xf32>
    %194 = arith.mulf %189, %193 : vector<8x8x8xf32>
    "tpu.trace_start"() <{level = 10 : i32, message = "nqk,nkd->nqd"}> : () -> ()
    %cst_52 = arith.constant dense<0.000000e+00> : vector<8x8x8xf32>
    %195 = tpu.matmul %194, %180, %cst_52 {dimension_numbers = #tpu.dot_dimension_numbers<[2], [1], [1], [2], [0, 0, 0, 1, 1, 2], [0], [0]>} : vector<8x8x8xf32>, vector<8x8x8xf32>, vector<8x8x8xf32> -> vector<8x8x8xf32>
    "tpu.trace_stop"() : () -> ()
    %196 = vector.shape_cast %195 : vector<8x8x8xf32> to vector<2x4x8x8xf32>
    %197 = tpu.transpose %196, [0, 2, 1, 3] : vector<2x4x8x8xf32> -> vector<2x8x4x8xf32>
    %198 = vector.shape_cast %197 : vector<2x8x4x8xf32> to vector<16x32xf32>
    %199 = arith.truncf %198 : vector<16x32xf32> to vector<16x32xbf16>
    %200 = arith.index_cast %c1_i32 : i32 to index
    %c0_53 = arith.constant 0 : index
    %c0_54 = arith.constant 0 : index
    %201 = vector.load %arg4[%200, %c0_53, %c0_54] : memref<2x32x32xbf16, #tpu.memory_space<vmem>>, vector<1x32x32xbf16>
    %202 = vector.shape_cast %201 : vector<1x32x32xbf16> to vector<32x32xbf16>
    %cst_55 = arith.constant dense<0.000000e+00> : vector<16x32xf32>
    %203 = tpu.matmul %199, %202, %cst_55 {dimension_numbers = #tpu.dot_dimension_numbers<[1], [0], [0], [1], [0, 0, 1, 1], [], []>} : vector<16x32xbf16>, vector<32x32xbf16>, vector<16x32xf32> -> vector<16x32xf32>
    %204 = vector.broadcast %155 : vector<1x32xf32> to vector<16x32xf32>
    %205 = arith.addf %203, %204 : vector<16x32xf32>
    %206 = arith.addf %150, %205 : vector<16x32xf32>
    %cst_56 = arith.constant dense<0.000000e+00> : vector<16xf32>
    %207 = vector.multi_reduction <add>, %206, %cst_56 [1] : vector<16x32xf32> to vector<16xf32>
    %208 = vector.shape_cast %207 : vector<16xf32> to vector<16x1xf32>
    %cst_57 = arith.constant 3.200000e+01 : f32
    %209 = vector.broadcast %cst_57 : f32 to vector<16x1xf32>
    %210 = arith.divf %208, %209 : vector<16x1xf32>
    %211 = vector.broadcast %210 : vector<16x1xf32> to vector<16x32xf32>
    %212 = arith.subf %206, %211 : vector<16x32xf32>
    %213 = arith.mulf %212, %212 : vector<16x32xf32>
    %cst_58 = arith.constant dense<0.000000e+00> : vector<16xf32>
    %214 = vector.multi_reduction <add>, %213, %cst_58 [1] : vector<16x32xf32> to vector<16xf32>
    %215 = vector.shape_cast %214 : vector<16xf32> to vector<16x1xf32>
    %cst_59 = arith.constant 3.200000e+01 : f32
    %216 = vector.broadcast %cst_59 : f32 to vector<16x1xf32>
    %217 = arith.divf %215, %216 : vector<16x1xf32>
    %cst_60 = arith.constant 9.99999996E-13 : f32
    %218 = vector.broadcast %cst_60 : f32 to vector<16x1xf32>
    %219 = arith.addf %217, %218 : vector<16x1xf32>
    %220 = math.rsqrt %219 : vector<16x1xf32>
    %221 = vector.broadcast %220 : vector<16x1xf32> to vector<16x32xf32>
    %222 = arith.mulf %212, %221 : vector<16x32xf32>
    %223 = vector.broadcast %156 : vector<1x32xf32> to vector<16x32xf32>
    %224 = arith.mulf %222, %223 : vector<16x32xf32>
    %225 = vector.broadcast %157 : vector<1x32xf32> to vector<16x32xf32>
    %226 = arith.addf %224, %225 : vector<16x32xf32>
    %227 = arith.truncf %226 : vector<16x32xf32> to vector<16x32xbf16>
    %228 = arith.index_cast %c1_i32 : i32 to index
    %c0_61 = arith.constant 0 : index
    %c0_62 = arith.constant 0 : index
    %229 = vector.load %arg5[%228, %c0_61, %c0_62] : memref<2x32x64xbf16, #tpu.memory_space<vmem>>, vector<1x32x64xbf16>
    %230 = vector.shape_cast %229 : vector<1x32x64xbf16> to vector<32x64xbf16>
    %cst_63 = arith.constant dense<0.000000e+00> : vector<16x64xf32>
    %231 = tpu.matmul %227, %230, %cst_63 {dimension_numbers = #tpu.dot_dimension_numbers<[1], [0], [0], [1], [0, 0, 1, 1], [], []>} : vector<16x32xbf16>, vector<32x64xbf16>, vector<16x64xf32> -> vector<16x64xf32>
    %232 = vector.broadcast %158 : vector<1x64xf32> to vector<16x64xf32>
    %233 = arith.addf %231, %232 : vector<16x64xf32>
    %cst_64 = arith.constant 5.000000e-01 : f32
    %234 = vector.broadcast %cst_64 : f32 to vector<16x64xf32>
    %235 = arith.mulf %234, %233 : vector<16x64xf32>
    %cst_65 = arith.constant 4.471500e-02 : f32
    %236 = vector.broadcast %cst_65 : f32 to vector<16x64xf32>
    %237 = arith.mulf %236, %233 : vector<16x64xf32>
    %238 = arith.mulf %237, %233 : vector<16x64xf32>
    %239 = arith.mulf %238, %233 : vector<16x64xf32>
    %240 = arith.addf %233, %239 : vector<16x64xf32>
    %cst_66 = arith.constant 0.797884583 : f32
    %241 = vector.broadcast %cst_66 : f32 to vector<16x64xf32>
    %242 = arith.mulf %241, %240 : vector<16x64xf32>
    %243 = math.tanh %242 : vector<16x64xf32>
    %cst_67 = arith.constant 1.000000e+00 : f32
    %244 = vector.broadcast %cst_67 : f32 to vector<16x64xf32>
    %245 = arith.addf %244, %243 : vector<16x64xf32>
    %246 = arith.mulf %235, %245 : vector<16x64xf32>
    %247 = arith.truncf %246 : vector<16x64xf32> to vector<16x64xbf16>
    %248 = arith.index_cast %c1_i32 : i32 to index
    %c0_68 = arith.constant 0 : index
    %c0_69 = arith.constant 0 : index
    %249 = vector.load %arg6[%248, %c0_68, %c0_69] : memref<2x64x32xbf16, #tpu.memory_space<vmem>>, vector<1x64x32xbf16>
    %250 = vector.shape_cast %249 : vector<1x64x32xbf16> to vector<64x32xbf16>
    %cst_70 = arith.constant dense<0.000000e+00> : vector<16x32xf32>
    %251 = tpu.matmul %247, %250, %cst_70 {dimension_numbers = #tpu.dot_dimension_numbers<[1], [0], [0], [1], [0, 0, 1, 1], [], []>} : vector<16x64xbf16>, vector<64x32xbf16>, vector<16x32xf32> -> vector<16x32xf32>
    %252 = vector.broadcast %159 : vector<1x32xf32> to vector<16x32xf32>
    %253 = arith.addf %251, %252 : vector<16x32xf32>
    %254 = arith.addf %226, %253 : vector<16x32xf32>
    %cst_71 = arith.constant dense<0.000000e+00> : vector<16xf32>
    %255 = vector.multi_reduction <add>, %254, %cst_71 [1] : vector<16x32xf32> to vector<16xf32>
    %256 = vector.shape_cast %255 : vector<16xf32> to vector<16x1xf32>
    %cst_72 = arith.constant 3.200000e+01 : f32
    %257 = vector.broadcast %cst_72 : f32 to vector<16x1xf32>
    %258 = arith.divf %256, %257 : vector<16x1xf32>
    %259 = vector.broadcast %258 : vector<16x1xf32> to vector<16x32xf32>
    %260 = arith.subf %254, %259 : vector<16x32xf32>
    %261 = arith.mulf %260, %260 : vector<16x32xf32>
    %cst_73 = arith.constant dense<0.000000e+00> : vector<16xf32>
    %262 = vector.multi_reduction <add>, %261, %cst_73 [1] : vector<16x32xf32> to vector<16xf32>
    %263 = vector.shape_cast %262 : vector<16xf32> to vector<16x1xf32>
    %cst_74 = arith.constant 3.200000e+01 : f32
    %264 = vector.broadcast %cst_74 : f32 to vector<16x1xf32>
    %265 = arith.divf %263, %264 : vector<16x1xf32>
    %cst_75 = arith.constant 9.99999996E-13 : f32
    %266 = vector.broadcast %cst_75 : f32 to vector<16x1xf32>
    %267 = arith.addf %265, %266 : vector<16x1xf32>
    %268 = math.rsqrt %267 : vector<16x1xf32>
    %269 = vector.broadcast %268 : vector<16x1xf32> to vector<16x32xf32>
    %270 = arith.mulf %260, %269 : vector<16x32xf32>
    %271 = vector.broadcast %160 : vector<1x32xf32> to vector<16x32xf32>
    %272 = arith.mulf %270, %271 : vector<16x32xf32>
    %273 = vector.broadcast %161 : vector<1x32xf32> to vector<16x32xf32>
    %274 = arith.addf %272, %273 : vector<16x32xf32>
    %c2_i32 = arith.constant 2 : i32
    %275 = vector.shape_cast %274 : vector<16x32xf32> to vector<2x8x32xf32>
    %276 = vector.extract_strided_slice %275 {offsets = [0, 0, 0], sizes = [2, 1, 32], strides = [1, 1, 1]} : vector<2x8x32xf32> to vector<2x1x32xf32>
    %277 = vector.shape_cast %276 : vector<2x1x32xf32> to vector<2x32xf32>
    %278 = arith.truncf %277 : vector<2x32xf32> to vector<2x32xbf16>
    %c0_76 = arith.constant 0 : index
    %c0_77 = arith.constant 0 : index
    %279 = vector.load %arg8[%c0_76, %c0_77] : memref<32x32xbf16, #tpu.memory_space<vmem>>, vector<32x32xbf16>
    %cst_78 = arith.constant dense<0.000000e+00> : vector<2x32xf32>
    %280 = tpu.matmul %278, %279, %cst_78 {dimension_numbers = #tpu.dot_dimension_numbers<[1], [0], [0], [1], [0, 0, 1, 1], [], []>} : vector<2x32xbf16>, vector<32x32xbf16>, vector<2x32xf32> -> vector<2x32xf32>
    %281 = vector.broadcast %3 : vector<1x32xf32> to vector<2x32xf32>
    %282 = arith.addf %280, %281 : vector<2x32xf32>
    %283 = math.tanh %282 : vector<2x32xf32>
    %284 = arith.truncf %283 : vector<2x32xf32> to vector<2x32xbf16>
    %c0_79 = arith.constant 0 : index
    %c0_80 = arith.constant 0 : index
    %285 = vector.load %arg9[%c0_79, %c0_80] : memref<32x2xbf16, #tpu.memory_space<vmem>>, vector<32x2xbf16>
    %cst_81 = arith.constant dense<0.000000e+00> : vector<2x2xf32>
    %286 = tpu.matmul %284, %285, %cst_81 {dimension_numbers = #tpu.dot_dimension_numbers<[1], [0], [0], [1], [0, 0, 1, 1], [], []>} : vector<2x32xbf16>, vector<32x2xbf16>, vector<2x2xf32> -> vector<2x2xf32>
    %287 = vector.broadcast %4 : vector<1x2xf32> to vector<2x2xf32>
    %288 = arith.addf %286, %287 : vector<2x2xf32>
    %cst_82 = arith.constant dense<0xFF800000> : vector<2xf32>
    %289 = vector.multi_reduction <maximumf>, %288, %cst_82 [1] : vector<2x2xf32> to vector<2xf32>
    %290 = vector.shape_cast %289 : vector<2xf32> to vector<2x1xf32>
    %291 = vector.broadcast %290 : vector<2x1xf32> to vector<2x2xf32>
    %292 = arith.subf %288, %291 : vector<2x2xf32>
    %293 = math.exp %292 : vector<2x2xf32>
    %cst_83 = arith.constant dense<0.000000e+00> : vector<2xf32>
    %294 = vector.multi_reduction <add>, %293, %cst_83 [1] : vector<2x2xf32> to vector<2xf32>
    %295 = vector.shape_cast %294 : vector<2xf32> to vector<2x1xf32>
    %296 = vector.broadcast %295 : vector<2x1xf32> to vector<2x2xf32>
    %297 = arith.divf %293, %296 : vector<2x2xf32>
    %cst_84 = arith.constant 0.000000e+00 : f32
    %298 = vector.broadcast %cst_84 : f32 to vector<2x124xf32>
    %299 = tpu.concatenate %288, %297, %298 in 1 : vector<2x2xf32>, vector<2x2xf32>, vector<2x124xf32> -> vector<2x128xf32>
    %c0_85 = arith.constant 0 : index
    %c0_86 = arith.constant 0 : index
    %300 = vector.load %arg10[%c0_85, %c0_86] : memref<2x128xf32, #tpu.memory_space<vmem>>, vector<2x128xf32>
    tpu.vector_store %arg10[%c0_85, %c0_86], %299 {strides = array<i32>} : memref<2x128xf32, #tpu.memory_space<vmem>>, vector<2x128xf32>,
    return
  }
}

</mosaic_0001>

<llo_original>
// kernel: bert_model_predict.1
$region0: #{bert_model_predict.1}
  #allocation0 [shape = 'u32[]', space=smem, size = 0x4, offset = 0x4, fixed_abs, tag = 'smem constant byte address 0x4 - core index']
  #allocation1 [shape = 'u32[144,128]{1,0:T(1,128)}', space=vmem, size = 0x12000, scoped, tag = 'internal scratch']
  %s0 = inlined_call_operand.vmem [shape: f32[16,32], index: 0, kind: input, shape index: {}]
  %s1 = inlined_call_operand.vmem [shape: f32[8,8,8], index: 1, kind: input, shape index: {}]
  %s2 = inlined_call_operand.vmem [shape: f32[8,32], index: 2, kind: input, shape index: {}]
  %s3 = inlined_call_operand.vmem [shape: bf16[2,32,96], index: 3, kind: input, shape index: {}]
  %s4 = inlined_call_operand.vmem [shape: bf16[2,32,32], index: 4, kind: input, shape index: {}]
  %s5 = inlined_call_operand.vmem [shape: bf16[2,32,64], index: 5, kind: input, shape index: {}]
  %s6 = inlined_call_operand.vmem [shape: bf16[2,64,32], index: 6, kind: input, shape index: {}]
  %s7 = inlined_call_operand.vmem [shape: f32[2,8,96], index: 7, kind: input, shape index: {}]
  %s8 = inlined_call_operand.vmem [shape: bf16[32,32], index: 8, kind: input, shape index: {}]
  %s9 = inlined_call_operand.vmem [shape: bf16[32,2], index: 9, kind: input, shape index: {}]
  %s10 = inlined_call_operand.vmem [shape: f32[2,128], index: 10, kind: output, shape index: {}]
  %s11 = sld [smem:[#allocation0]]
  $region50: #{bert_model_predict.1} parent=0
    _
  %s13 = ssub.s32 1, %s11
  %s14 = scalar_select 0, %s13, %s11
  // Predicated region
  $region2: #{bert_model_predict.1} parent=0 // pred_check
    _
  $region3: #{bert_model_predict.1} parent=0 // pred_check_branch
    %16 = sbr.rel (0) target = $region5
  $region4: #{bert_model_predict.1} parent=0 // pred_region
    _
  $region5: #{bert_model_predict.1} parent=0 // pred_fallthru
    _
  // Predicated region
  $region6: #{bert_model_predict.1} parent=0 // pred_check
    _
  $region7: #{bert_model_predict.1} parent=0 // pred_check_branch
    %18 = sbr.rel (0) target = $region9
  $region8: #{bert_model_predict.1} parent=0 // pred_region
    _
  $region9: #{bert_model_predict.1} parent=0 // pred_fallthru
    _
  // Predicated region
  $region10: #{bert_model_predict.1} parent=0 // pred_check
    _
  $region11: #{bert_model_predict.1} parent=0 // pred_check_branch
    %20 = sbr.rel (0) target = $region13
  $region12: #{bert_model_predict.1} parent=0 // pred_region
    _
  $region13: #{bert_model_predict.1} parent=0 // pred_fallthru
    _
  // Predicated region
  $region14: #{bert_model_predict.1} parent=0 // pred_check
    _
  $region15: #{bert_model_predict.1} parent=0 // pred_check_branch
    %22 = sbr.rel (0) target = $region17
  $region16: #{bert_model_predict.1} parent=0 // pred_region
    _
  $region17: #{bert_model_predict.1} parent=0 // pred_fallthru
    _
  // Predicated region
  $region18: #{bert_model_predict.1} parent=0 // pred_check
    _
  $region19: #{bert_model_predict.1} parent=0 // pred_check_branch
    %24 = sbr.rel (0) target = $region21
  $region20: #{bert_model_predict.1} parent=0 // pred_region
    _
  $region21: #{bert_model_predict.1} parent=0 // pred_fallthru
    _
  // Predicated region
  $region22: #{bert_model_predict.1} parent=0 // pred_check
    _
  $region23: #{bert_model_predict.1} parent=0 // pred_check_branch
    %26 = sbr.rel (0) target = $region25
  $region24: #{bert_model_predict.1} parent=0 // pred_region
    _
  $region25: #{bert_model_predict.1} parent=0 // pred_fallthru
    _
  // Predicated region
  $region26: #{bert_model_predict.1} parent=0 // pred_check
    _
  $region27: #{bert_model_predict.1} parent=0 // pred_check_branch
    %28 = sbr.rel (0) target = $region29
  $region28: #{bert_model_predict.1} parent=0 // pred_region
    _
  $region29: #{bert_model_predict.1} parent=0 // pred_fallthru
    _
  // Predicated region
  $region30: #{bert_model_predict.1} parent=0 // pred_check
    _
  $region31: #{bert_model_predict.1} parent=0 // pred_check_branch
    %30 = sbr.rel (0) target = $region33
  $region32: #{bert_model_predict.1} parent=0 // pred_region
    _
  $region33: #{bert_model_predict.1} parent=0 // pred_fallthru
    _
  // Predicated region
  $region34: #{bert_model_predict.1} parent=0 // pred_check
    _
  $region35: #{bert_model_predict.1} parent=0 // pred_check_branch
    %32 = sbr.rel (0) target = $region37
  $region36: #{bert_model_predict.1} parent=0 // pred_region
    _
  $region37: #{bert_model_predict.1} parent=0 // pred_fallthru
    _
  // Predicated region
  $region38: #{bert_model_predict.1} parent=0 // pred_check
    _
  $region39: #{bert_model_predict.1} parent=0 // pred_check_branch
    %34 = sbr.rel (0) target = $region41
  $region40: #{bert_model_predict.1} parent=0 // pred_region
    _
  $region41: #{bert_model_predict.1} parent=0 // pred_fallthru
    _
  %v36 = vld [vmem:[%s2] sm:$0xff]
  %v37 = vld [vmem:[%s1] sm:$0xff]
  %v38 = vld [vmem:[%s1 + $0x8] sm:$0xff]
  %v39 = vld [vmem:[%s1 + $0x10] sm:$0xff]
  %v40 = vld [vmem:[%s1 + $0x18] sm:$0xff]
  %v41 = vld [vmem:[%s1 + $0x20] sm:$0xff]
  %v42 = vld [vmem:[%s1 + $0x28] sm:$0xff]
  %v43 = vld [vmem:[%s1 + $0x30] sm:$0xff]
  %v44 = vld [vmem:[%s1 + $0x38] sm:$0xff]
  %v45 = vld [vmem:[%s0] sm:$0xff]
  %v46 = vld [vmem:[%s0 + $0x8] sm:$0xff]
  %vm47 = vcmask 261120
  %v48 = vsel %vm47, %v45, 0.0
  %49 = vadd.xlane.f32.xlu0 %v48
  %v50 = vpop.xlane.xlu0 %49
  %v51 = vsel %vm47, %v46, 0.0
  %52 = vadd.xlane.f32.xlu0 %v51
  %v53 = vpop.xlane.xlu0 %52
  %v54 = vrcp.pop 32.0
  %v55 = vmul.f32 %v50, %v54
  %v56 = vmul.f32 %v53, %v54
  %v57 = vsub.f32 %v45, %v55
  %v58 = vsub.f32 %v46, %v56
  %v59 = vmul.f32 %v57, %v57
  %v60 = vmul.f32 %v58, %v58
  %v61 = vsel %vm47, %v59, 0.0
  %62 = vadd.xlane.f32.xlu0 %v61
  %v63 = vpop.xlane.xlu0 %62
  %v64 = vsel %vm47, %v60, 0.0
  %65 = vadd.xlane.f32.xlu0 %v64
  %v66 = vpop.xlane.xlu0 %65
  %v67 = vmul.f32 %v63, %v54
  %v68 = vmul.f32 %v66, %v54
  %v69 = vadd.f32 %v67, 1e-12
  %v70 = vadd.f32 %v68, 1e-12
  %v71 = vrsqrt.pop %v69
  %v72 = vrsqrt.pop %v70
  %v73 = vmul.f32 %v57, %v71
  %v74 = vmul.f32 %v58, %v72
  %v75 = vlaneseq
  %v76 = vshrl.u32 %v75, 7
  %v77 = vsub.s32 0, %v76
  %v78 = vrot.slane %v36, %v77
  %v79 = vmul.f32 %v73, %v78
  %v80 = vmul.f32 %v74, %v78
  %v81 = vlaneseq
  %v82 = vshrl.u32 %v81, 7
  %v83 = vsub.s32 1, %v82
  %v84 = vrot.slane %v36, %v83
  %v85 = vadd.f32 %v79, %v84
  %v86 = vadd.f32 %v80, %v84
  %v87 = vld [vmem:[%s7] sm:$0xff]
  %v88 = vpack.c.bf16 %v86, %v85
  %v89 = vld [vmem:[%s3] sm:$0xf]
  %v90 = vld [vmem:[%s3 + $0x4] sm:$0xf]
  %v91 = vld [vmem:[%s3 + $0x8] sm:$0xf]
  %v92 = vld [vmem:[%s3 + $0xc] sm:$0xf]
  %v93 = vlaneseq
  %v94 = vshrl.u32 %v93, 7
  %v95 = vsub.s32 0, %v94
  %v96 = vrot.slane %v87, %v95
  %v101 = vunpack.c.l.b16 %v89
  %v102 = vunpack.c.l.b16 %v90
  %v103 = vunpack.c.l.b16 %v91
  %v104 = vunpack.c.l.b16 %v92
  %v105 = vpack.c.b16 %v102, %v101
  %v106 = vpack.c.b16 %v104, %v103
  %v110 = vsel %vm47, %v88, 0
  %112 = vmatprep.subr.bf16.mxu0 0
  %113 = vmatpush1.bf16.msra.mxu0 %v105
  %114 = vmatprep.subr.bf16.mxu0 0
  %115 = vmatpush1.bf16.msra.mxu0 %v106
  %116 = vmatprep.subr.bf16.mxu0 0
  %117 = vmatpush1.bf16.msra.mxu0 0
  %118 = vmatprep.subr.bf16.mxu0 0
  %119 = vmatpush1.bf16.msra.mxu0 0
  %120 = vmatprep.subr.bf16.mxu0 0
  %121 = vmatpush1.bf16.msra.mxu0 0
  %122 = vmatprep.subr.bf16.mxu0 0
  %123 = vmatpush1.bf16.msra.mxu0 0
  %124 = vmatprep.subr.bf16.mxu0 0
  %125 = vmatpush1.bf16.msra.mxu0 0
  %126 = vmatprep.subr.bf16.mxu0 0
  %127 = vmatpush1.bf16.msra.mxu0 0
  %128 = vmatprep.subr.bf16.mxu0 0
  %129 = vmatpush1.bf16.msra.mxu0 0
  %130 = vmatprep.subr.bf16.mxu0 0
  %131 = vmatpush1.bf16.msra.mxu0 0
  %132 = vmatprep.subr.bf16.mxu0 0
  %133 = vmatpush1.bf16.msra.mxu0 0
  %134 = vmatprep.subr.bf16.mxu0 0
  %135 = vmatpush1.bf16.msra.mxu0 0
  %136 = vmatprep.subr.bf16.mxu0 0
  %137 = vmatpush1.bf16.msra.mxu0 0
  %138 = vmatprep.subr.bf16.mxu0 0
  %139 = vmatpush1.bf16.msra.mxu0 0
  %140 = vmatprep.subr.bf16.mxu0 0
  %141 = vmatpush1.bf16.msra.mxu0 0
  %142 = vmatprep.subr.bf16.mxu0 0
  %143 = vmatpush1.bf16.msra.mxu0 0
  %144 = vmatprep.mubr.bf16.mxu0 0
  %145 = vmatmul.mubr.bf16.gmra.mrb[0].mxu0 %v110
  %v146 = vpop.f32.mrb[0].mxu0
  %v147 = vadd.f32 %v96, %v146
  %v148 = vpop.f32.mrb[0].mxu0
  %v149 = vpop.f32.mrb[0].mxu0
  %v150 = vadd.f32 %v96, %v149
  %v151 = vpop.f32.mrb[0].mxu0
  %152 = vdwg.mxu0
  %155 = vrot.lane.b32.xlu0 %v147, 120
  %v156 = vpop.permute.xlu0 %155
  %157 = vrot.lane.b32.xlu0 %v150, 120
  %v158 = vpop.permute.xlu0 %157
  %161 = vrot.lane.b32.xlu0 %v147, 112
  %v162 = vpop.permute.xlu0 %161
  %163 = vrot.lane.b32.xlu0 %v150, 112
  %v164 = vpop.permute.xlu0 %163
  %167 = vrot.lane.b32.xlu0 %v147, 104
  %v168 = vpop.permute.xlu0 %167
  %169 = vrot.lane.b32.xlu0 %v150, 104
  %v170 = vpop.permute.xlu0 %169
  %v173 = vcombine.low %v147, %v162
  %v174 = vcombine.high %v147, %v162
  %v176 = vunpack.c.l.s4 1983009808
  %v177 = vunpack.c.0.s8 %v176
  %v178 = vlaneseq
  %v179 = vshrl.u32 %v178, 7
  %v180 = vsub.s32 %v177, %v179
  %v181 = vrot.slane %v173, %v180
  %v183 = vunpack.c.l.s4 1983009808
  %v184 = vunpack.c.0.s8 %v183
  %v185 = vlaneseq
  %v186 = vshrl.u32 %v185, 7
  %v187 = vsub.s32 %v184, %v186
  %v188 = vrot.slane %v174, %v187
  %v189 = vcombine.low %v156, %v168
  %v190 = vcombine.high %v156, %v168
  %v192 = vunpack.c.l.s4 1983009808
  %v193 = vunpack.c.0.s8 %v192
  %v194 = vlaneseq
  %v195 = vshrl.u32 %v194, 7
  %v196 = vsub.s32 %v193, %v195
  %v197 = vrot.slane %v189, %v196
  %v199 = vunpack.c.l.s4 1983009808
  %v200 = vunpack.c.0.s8 %v199
  %v201 = vlaneseq
  %v202 = vshrl.u32 %v201, 7
  %v203 = vsub.s32 %v200, %v202
  %v204 = vrot.slane %v190, %v203
  %v205 = vcombine.low %v181, %v197
  %v206 = vcombine.high %v181, %v197
  %v208 = vunpack.c.l.s4 1934713408
  %v209 = vunpack.c.0.s8 %v208
  %v210 = vlaneseq
  %v211 = vshrl.u32 %v210, 7
  %v212 = vsub.s32 %v209, %v211
  %v213 = vrot.slane %v205, %v212
  %v215 = vunpack.c.l.s4 1934713408
  %v216 = vunpack.c.0.s8 %v215
  %v217 = vlaneseq
  %v218 = vshrl.u32 %v217, 7
  %v219 = vsub.s32 %v216, %v218
  %v220 = vrot.slane %v206, %v219
  %v221 = vcombine.low %v188, %v204
  %v222 = vcombine.high %v188, %v204
  %v224 = vunpack.c.l.s4 1934713408
  %v225 = vunpack.c.0.s8 %v224
  %v226 = vlaneseq
  %v227 = vshrl.u32 %v226, 7
  %v228 = vsub.s32 %v225, %v227
  %v229 = vrot.slane %v221, %v228
  %v231 = vunpack.c.l.s4 1934713408
  %v232 = vunpack.c.0.s8 %v231
  %v233 = vlaneseq
  %v234 = vshrl.u32 %v233, 7
  %v235 = vsub.s32 %v232, %v234
  %v236 = vrot.slane %v222, %v235
  %v237 = vcombine.high %v213, 0.0
  %v238 = vcombine.high %v220, 0.0
  %v239 = vcombine.high %v229, 0.0
  %v240 = vcombine.high %v236, 0.0
  %v241 = vcombine.low %v150, %v164
  %v242 = vcombine.high %v150, %v164
  %v244 = vunpack.c.l.s4 1983009808
  %v245 = vunpack.c.0.s8 %v244
  %v246 = vlaneseq
  %v247 = vshrl.u32 %v246, 7
  %v248 = vsub.s32 %v245, %v247
  %v249 = vrot.slane %v241, %v248
  %v251 = vunpack.c.l.s4 1983009808
  %v252 = vunpack.c.0.s8 %v251
  %v253 = vlaneseq
  %v254 = vshrl.u32 %v253, 7
  %v255 = vsub.s32 %v252, %v254
  %v256 = vrot.slane %v242, %v255
  %v257 = vcombine.low %v158, %v170
  %v258 = vcombine.high %v158, %v170
  %v260 = vunpack.c.l.s4 1983009808
  %v261 = vunpack.c.0.s8 %v260
  %v262 = vlaneseq
  %v263 = vshrl.u32 %v262, 7
  %v264 = vsub.s32 %v261, %v263
  %v265 = vrot.slane %v257, %v264
  %v267 = vunpack.c.l.s4 1983009808
  %v268 = vunpack.c.0.s8 %v267
  %v269 = vlaneseq
  %v270 = vshrl.u32 %v269, 7
  %v271 = vsub.s32 %v268, %v270
  %v272 = vrot.slane %v258, %v271
  %v273 = vcombine.low %v249, %v265
  %v274 = vcombine.high %v249, %v265
  %v276 = vunpack.c.l.s4 1934713408
  %v277 = vunpack.c.0.s8 %v276
  %v278 = vlaneseq
  %v279 = vshrl.u32 %v278, 7
  %v280 = vsub.s32 %v277, %v279
  %v281 = vrot.slane %v273, %v280
  %v283 = vunpack.c.l.s4 1934713408
  %v284 = vunpack.c.0.s8 %v283
  %v285 = vlaneseq
  %v286 = vshrl.u32 %v285, 7
  %v287 = vsub.s32 %v284, %v286
  %v288 = vrot.slane %v274, %v287
  %v289 = vcombine.low %v256, %v272
  %v290 = vcombine.high %v256, %v272
  %v292 = vunpack.c.l.s4 1934713408
  %v293 = vunpack.c.0.s8 %v292
  %v294 = vlaneseq
  %v295 = vshrl.u32 %v294, 7
  %v296 = vsub.s32 %v293, %v295
  %v297 = vrot.slane %v289, %v296
  %v299 = vunpack.c.l.s4 1934713408
  %v300 = vunpack.c.0.s8 %v299
  %v301 = vlaneseq
  %v302 = vshrl.u32 %v301, 7
  %v303 = vsub.s32 %v300, %v302
  %v304 = vrot.slane %v290, %v303
  %v305 = vcombine.high %v281, 0.0
  %v306 = vcombine.high %v288, 0.0
  %v307 = vcombine.high %v297, 0.0
  %v308 = vcombine.high %v304, 0.0
  %v309 = vcombine.low %v213, %v220
  %v311 = vunpack.c.l.s4 1983009808
  %v312 = vunpack.c.0.s8 %v311
  %v313 = vlaneseq
  %v314 = vshrl.u32 %v313, 7
  %v315 = vsub.s32 %v312, %v314
  %v316 = vrot.slane %v309, %v315
  %v317 = vcombine.low %v237, %v238
  %v319 = vunpack.c.l.s4 1983009808
  %v320 = vunpack.c.0.s8 %v319
  %v321 = vlaneseq
  %v322 = vshrl.u32 %v321, 7
  %v323 = vsub.s32 %v320, %v322
  %v324 = vrot.slane %v317, %v323
  %v325 = vcombine.low %v229, %v236
  %v327 = vunpack.c.l.s4 1983009808
  %v328 = vunpack.c.0.s8 %v327
  %v329 = vlaneseq
  %v330 = vshrl.u32 %v329, 7
  %v331 = vsub.s32 %v328, %v330
  %v332 = vrot.slane %v325, %v331
  %v333 = vcombine.low %v239, %v240
  %v335 = vunpack.c.l.s4 1983009808
  %v336 = vunpack.c.0.s8 %v335
  %v337 = vlaneseq
  %v338 = vshrl.u32 %v337, 7
  %v339 = vsub.s32 %v336, %v338
  %v340 = vrot.slane %v333, %v339
  %v341 = vcombine.low %v316, %v324
  %v342 = vcombine.high %v316, %v324
  %v344 = vunpack.c.l.s4 1934713408
  %v345 = vunpack.c.0.s8 %v344
  %v346 = vlaneseq
  %v347 = vshrl.u32 %v346, 7
  %v348 = vsub.s32 %v345, %v347
  %v349 = vrot.slane %v341, %v348
  %v351 = vunpack.c.l.s4 1934713408
  %v352 = vunpack.c.0.s8 %v351
  %v353 = vlaneseq
  %v354 = vshrl.u32 %v353, 7
  %v355 = vsub.s32 %v352, %v354
  %v356 = vrot.slane %v342, %v355
  %v357 = vcombine.low %v332, %v340
  %v358 = vcombine.high %v332, %v340
  %v360 = vunpack.c.l.s4 1934713408
  %v361 = vunpack.c.0.s8 %v360
  %v362 = vlaneseq
  %v363 = vshrl.u32 %v362, 7
  %v364 = vsub.s32 %v361, %v363
  %v365 = vrot.slane %v357, %v364
  %v367 = vunpack.c.l.s4 1934713408
  %v368 = vunpack.c.0.s8 %v367
  %v369 = vlaneseq
  %v370 = vshrl.u32 %v369, 7
  %v371 = vsub.s32 %v368, %v370
  %v372 = vrot.slane %v358, %v371
  %v373 = vcombine.low %v349, %v365
  %v374 = vcombine.high %v349, %v365
  %v375 = vcombine.low %v356, %v372
  %v376 = vcombine.high %v356, %v372
  %v377 = vcombine.low %v281, %v288
  %v379 = vunpack.c.l.s4 1983009808
  %v380 = vunpack.c.0.s8 %v379
  %v381 = vlaneseq
  %v382 = vshrl.u32 %v381, 7
  %v383 = vsub.s32 %v380, %v382
  %v384 = vrot.slane %v377, %v383
  %v385 = vcombine.low %v305, %v306
  %v387 = vunpack.c.l.s4 1983009808
  %v388 = vunpack.c.0.s8 %v387
  %v389 = vlaneseq
  %v390 = vshrl.u32 %v389, 7
  %v391 = vsub.s32 %v388, %v390
  %v392 = vrot.slane %v385, %v391
  %v393 = vcombine.low %v297, %v304
  %v395 = vunpack.c.l.s4 1983009808
  %v396 = vunpack.c.0.s8 %v395
  %v397 = vlaneseq
  %v398 = vshrl.u32 %v397, 7
  %v399 = vsub.s32 %v396, %v398
  %v400 = vrot.slane %v393, %v399
  %v401 = vcombine.low %v307, %v308
  %v403 = vunpack.c.l.s4 1983009808
  %v404 = vunpack.c.0.s8 %v403
  %v405 = vlaneseq
  %v406 = vshrl.u32 %v405, 7
  %v407 = vsub.s32 %v404, %v406
  %v408 = vrot.slane %v401, %v407
  %v409 = vcombine.low %v384, %v392
  %v410 = vcombine.high %v384, %v392
  %v412 = vunpack.c.l.s4 1934713408
  %v413 = vunpack.c.0.s8 %v412
  %v414 = vlaneseq
  %v415 = vshrl.u32 %v414, 7
  %v416 = vsub.s32 %v413, %v415
  %v417 = vrot.slane %v409, %v416
  %v419 = vunpack.c.l.s4 1934713408
  %v420 = vunpack.c.0.s8 %v419
  %v421 = vlaneseq
  %v422 = vshrl.u32 %v421, 7
  %v423 = vsub.s32 %v420, %v422
  %v424 = vrot.slane %v410, %v423
  %v425 = vcombine.low %v400, %v408
  %v426 = vcombine.high %v400, %v408
  %v428 = vunpack.c.l.s4 1934713408
  %v429 = vunpack.c.0.s8 %v428
  %v430 = vlaneseq
  %v431 = vshrl.u32 %v430, 7
  %v432 = vsub.s32 %v429, %v431
  %v433 = vrot.slane %v425, %v432
  %v435 = vunpack.c.l.s4 1934713408
  %v436 = vunpack.c.0.s8 %v435
  %v437 = vlaneseq
  %v438 = vshrl.u32 %v437, 7
  %v439 = vsub.s32 %v436, %v438
  %v440 = vrot.slane %v426, %v439
  %v441 = vcombine.low %v417, %v433
  %v442 = vcombine.high %v417, %v433
  %v443 = vcombine.low %v424, %v440
  %v444 = vcombine.high %v424, %v440
  %445 = vrot.lane.b32.xlu0 %v147, 96
  %v446 = vpop.permute.xlu0 %445
  %447 = vrot.lane.b32.xlu0 %v150, 96
  %v448 = vpop.permute.xlu0 %447
  %449 = vrot.lane.b32.xlu0 %v156, 96
  %v450 = vpop.permute.xlu0 %449
  %451 = vrot.lane.b32.xlu0 %v158, 96
  %v452 = vpop.permute.xlu0 %451
  %453 = vrot.lane.b32.xlu0 %v162, 96
  %v454 = vpop.permute.xlu0 %453
  %455 = vrot.lane.b32.xlu0 %v164, 96
  %v456 = vpop.permute.xlu0 %455
  %457 = vrot.lane.b32.xlu0 %v168, 96
  %v458 = vpop.permute.xlu0 %457
  %459 = vrot.lane.b32.xlu0 %v170, 96
  %v460 = vpop.permute.xlu0 %459
  %v469 = vcombine.low %v446, %v454
  %v470 = vcombine.high %v446, %v454
  %v472 = vunpack.c.l.s4 1983009808
  %v473 = vunpack.c.0.s8 %v472
  %v474 = vlaneseq
  %v475 = vshrl.u32 %v474, 7
  %v476 = vsub.s32 %v473, %v475
  %v477 = vrot.slane %v469, %v476
  %v479 = vunpack.c.l.s4 1983009808
  %v480 = vunpack.c.0.s8 %v479
  %v481 = vlaneseq
  %v482 = vshrl.u32 %v481, 7
  %v483 = vsub.s32 %v480, %v482
  %v484 = vrot.slane %v470, %v483
  %v485 = vcombine.low %v450, %v458
  %v486 = vcombine.high %v450, %v458
  %v488 = vunpack.c.l.s4 1983009808
  %v489 = vunpack.c.0.s8 %v488
  %v490 = vlaneseq
  %v491 = vshrl.u32 %v490, 7
  %v492 = vsub.s32 %v489, %v491
  %v493 = vrot.slane %v485, %v492
  %v495 = vunpack.c.l.s4 1983009808
  %v496 = vunpack.c.0.s8 %v495
  %v497 = vlaneseq
  %v498 = vshrl.u32 %v497, 7
  %v499 = vsub.s32 %v496, %v498
  %v500 = vrot.slane %v486, %v499
  %v501 = vcombine.low %v477, %v493
  %v502 = vcombine.high %v477, %v493
  %v504 = vunpack.c.l.s4 1934713408
  %v505 = vunpack.c.0.s8 %v504
  %v506 = vlaneseq
  %v507 = vshrl.u32 %v506, 7
  %v508 = vsub.s32 %v505, %v507
  %v509 = vrot.slane %v501, %v508
  %v511 = vunpack.c.l.s4 1934713408
  %v512 = vunpack.c.0.s8 %v511
  %v513 = vlaneseq
  %v514 = vshrl.u32 %v513, 7
  %v515 = vsub.s32 %v512, %v514
  %v516 = vrot.slane %v502, %v515
  %v517 = vcombine.low %v484, %v500
  %v518 = vcombine.high %v484, %v500
  %v520 = vunpack.c.l.s4 1934713408
  %v521 = vunpack.c.0.s8 %v520
  %v522 = vlaneseq
  %v523 = vshrl.u32 %v522, 7
  %v524 = vsub.s32 %v521, %v523
  %v525 = vrot.slane %v517, %v524
  %v527 = vunpack.c.l.s4 1934713408
  %v528 = vunpack.c.0.s8 %v527
  %v529 = vlaneseq
  %v530 = vshrl.u32 %v529, 7
  %v531 = vsub.s32 %v528, %v530
  %v532 = vrot.slane %v518, %v531
  %v533 = vcombine.high %v509, 0.0
  %v534 = vcombine.high %v516, 0.0
  %v535 = vcombine.high %v525, 0.0
  %v536 = vcombine.high %v532, 0.0
  %v537 = vcombine.low %v448, %v456
  %v538 = vcombine.high %v448, %v456
  %v540 = vunpack.c.l.s4 1983009808
  %v541 = vunpack.c.0.s8 %v540
  %v542 = vlaneseq
  %v543 = vshrl.u32 %v542, 7
  %v544 = vsub.s32 %v541, %v543
  %v545 = vrot.slane %v537, %v544
  %v547 = vunpack.c.l.s4 1983009808
  %v548 = vunpack.c.0.s8 %v547
  %v549 = vlaneseq
  %v550 = vshrl.u32 %v549, 7
  %v551 = vsub.s32 %v548, %v550
  %v552 = vrot.slane %v538, %v551
  %v553 = vcombine.low %v452, %v460
  %v554 = vcombine.high %v452, %v460
  %v556 = vunpack.c.l.s4 1983009808
  %v557 = vunpack.c.0.s8 %v556
  %v558 = vlaneseq
  %v559 = vshrl.u32 %v558, 7
  %v560 = vsub.s32 %v557, %v559
  %v561 = vrot.slane %v553, %v560
  %v563 = vunpack.c.l.s4 1983009808
  %v564 = vunpack.c.0.s8 %v563
  %v565 = vlaneseq
  %v566 = vshrl.u32 %v565, 7
  %v567 = vsub.s32 %v564, %v566
  %v568 = vrot.slane %v554, %v567
  %v569 = vcombine.low %v545, %v561
  %v570 = vcombine.high %v545, %v561
  %v572 = vunpack.c.l.s4 1934713408
  %v573 = vunpack.c.0.s8 %v572
  %v574 = vlaneseq
  %v575 = vshrl.u32 %v574, 7
  %v576 = vsub.s32 %v573, %v575
  %v577 = vrot.slane %v569, %v576
  %v579 = vunpack.c.l.s4 1934713408
  %v580 = vunpack.c.0.s8 %v579
  %v581 = vlaneseq
  %v582 = vshrl.u32 %v581, 7
  %v583 = vsub.s32 %v580, %v582
  %v584 = vrot.slane %v570, %v583
  %v585 = vcombine.low %v552, %v568
  %v586 = vcombine.high %v552, %v568
  %v588 = vunpack.c.l.s4 1934713408
  %v589 = vunpack.c.0.s8 %v588
  %v590 = vlaneseq
  %v591 = vshrl.u32 %v590, 7
  %v592 = vsub.s32 %v589, %v591
  %v593 = vrot.slane %v585, %v592
  %v595 = vunpack.c.l.s4 1934713408
  %v596 = vunpack.c.0.s8 %v595
  %v597 = vlaneseq
  %v598 = vshrl.u32 %v597, 7
  %v599 = vsub.s32 %v596, %v598
  %v600 = vrot.slane %v586, %v599
  %v601 = vcombine.high %v577, 0.0
  %v602 = vcombine.high %v584, 0.0
  %v603 = vcombine.high %v593, 0.0
  %v604 = vcombine.high %v600, 0.0
  %v605 = vcombine.low %v509, %v516
  %v607 = vunpack.c.l.s4 1983009808
  %v608 = vunpack.c.0.s8 %v607
  %v609 = vlaneseq
  %v610 = vshrl.u32 %v609, 7
  %v611 = vsub.s32 %v608, %v610
  %v612 = vrot.slane %v605, %v611
  %v613 = vcombine.low %v533, %v534
  %v615 = vunpack.c.l.s4 1983009808
  %v616 = vunpack.c.0.s8 %v615
  %v617 = vlaneseq
  %v618 = vshrl.u32 %v617, 7
  %v619 = vsub.s32 %v616, %v618
  %v620 = vrot.slane %v613, %v619
  %v621 = vcombine.low %v525, %v532
  %v623 = vunpack.c.l.s4 1983009808
  %v624 = vunpack.c.0.s8 %v623
  %v625 = vlaneseq
  %v626 = vshrl.u32 %v625, 7
  %v627 = vsub.s32 %v624, %v626
  %v628 = vrot.slane %v621, %v627
  %v629 = vcombine.low %v535, %v536
  %v631 = vunpack.c.l.s4 1983009808
  %v632 = vunpack.c.0.s8 %v631
  %v633 = vlaneseq
  %v634 = vshrl.u32 %v633, 7
  %v635 = vsub.s32 %v632, %v634
  %v636 = vrot.slane %v629, %v635
  %v637 = vcombine.low %v612, %v620
  %v638 = vcombine.high %v612, %v620
  %v640 = vunpack.c.l.s4 1934713408
  %v641 = vunpack.c.0.s8 %v640
  %v642 = vlaneseq
  %v643 = vshrl.u32 %v642, 7
  %v644 = vsub.s32 %v641, %v643
  %v645 = vrot.slane %v637, %v644
  %v647 = vunpack.c.l.s4 1934713408
  %v648 = vunpack.c.0.s8 %v647
  %v649 = vlaneseq
  %v650 = vshrl.u32 %v649, 7
  %v651 = vsub.s32 %v648, %v650
  %v652 = vrot.slane %v638, %v651
  %v653 = vcombine.low %v628, %v636
  %v654 = vcombine.high %v628, %v636
  %v656 = vunpack.c.l.s4 1934713408
  %v657 = vunpack.c.0.s8 %v656
  %v658 = vlaneseq
  %v659 = vshrl.u32 %v658, 7
  %v660 = vsub.s32 %v657, %v659
  %v661 = vrot.slane %v653, %v660
  %v663 = vunpack.c.l.s4 1934713408
  %v664 = vunpack.c.0.s8 %v663
  %v665 = vlaneseq
  %v666 = vshrl.u32 %v665, 7
  %v667 = vsub.s32 %v664, %v666
  %v668 = vrot.slane %v654, %v667
  %v669 = vcombine.low %v645, %v661
  %v670 = vcombine.high %v645, %v661
  %v671 = vcombine.low %v652, %v668
  %v672 = vcombine.high %v652, %v668
  %v673 = vcombine.low %v577, %v584
  %v675 = vunpack.c.l.s4 1983009808
  %v676 = vunpack.c.0.s8 %v675
  %v677 = vlaneseq
  %v678 = vshrl.u32 %v677, 7
  %v679 = vsub.s32 %v676, %v678
  %v680 = vrot.slane %v673, %v679
  %v681 = vcombine.low %v601, %v602
  %v683 = vunpack.c.l.s4 1983009808
  %v684 = vunpack.c.0.s8 %v683
  %v685 = vlaneseq
  %v686 = vshrl.u32 %v685, 7
  %v687 = vsub.s32 %v684, %v686
  %v688 = vrot.slane %v681, %v687
  %v689 = vcombine.low %v593, %v600
  %v691 = vunpack.c.l.s4 1983009808
  %v692 = vunpack.c.0.s8 %v691
  %v693 = vlaneseq
  %v694 = vshrl.u32 %v693, 7
  %v695 = vsub.s32 %v692, %v694
  %v696 = vrot.slane %v689, %v695
  %v697 = vcombine.low %v603, %v604
  %v699 = vunpack.c.l.s4 1983009808
  %v700 = vunpack.c.0.s8 %v699
  %v701 = vlaneseq
  %v702 = vshrl.u32 %v701, 7
  %v703 = vsub.s32 %v700, %v702
  %v704 = vrot.slane %v697, %v703
  %v705 = vcombine.low %v680, %v688
  %v706 = vcombine.high %v680, %v688
  %v708 = vunpack.c.l.s4 1934713408
  %v709 = vunpack.c.0.s8 %v708
  %v710 = vlaneseq
  %v711 = vshrl.u32 %v710, 7
  %v712 = vsub.s32 %v709, %v711
  %v713 = vrot.slane %v705, %v712
  %v715 = vunpack.c.l.s4 1934713408
  %v716 = vunpack.c.0.s8 %v715
  %v717 = vlaneseq
  %v718 = vshrl.u32 %v717, 7
  %v719 = vsub.s32 %v716, %v718
  %v720 = vrot.slane %v706, %v719
  %v721 = vcombine.low %v696, %v704
  %v722 = vcombine.high %v696, %v704
  %v724 = vunpack.c.l.s4 1934713408
  %v725 = vunpack.c.0.s8 %v724
  %v726 = vlaneseq
  %v727 = vshrl.u32 %v726, 7
  %v728 = vsub.s32 %v725, %v727
  %v729 = vrot.slane %v721, %v728
  %v731 = vunpack.c.l.s4 1934713408
  %v732 = vunpack.c.0.s8 %v731
  %v733 = vlaneseq
  %v734 = vshrl.u32 %v733, 7
  %v735 = vsub.s32 %v732, %v734
  %v736 = vrot.slane %v722, %v735
  %v737 = vcombine.low %v713, %v729
  %v738 = vcombine.high %v713, %v729
  %v739 = vcombine.low %v720, %v736
  %v740 = vcombine.high %v720, %v736
  %741 = vrot.lane.b32.xlu0 %v147, 64
  %v742 = vpop.permute.xlu0 %741
  %743 = vrot.lane.b32.xlu0 %v150, 64
  %v744 = vpop.permute.xlu0 %743
  %745 = vrot.lane.b32.xlu0 %v156, 64
  %v746 = vpop.permute.xlu0 %745
  %747 = vrot.lane.b32.xlu0 %v158, 64
  %v748 = vpop.permute.xlu0 %747
  %749 = vrot.lane.b32.xlu0 %v162, 64
  %v750 = vpop.permute.xlu0 %749
  %751 = vrot.lane.b32.xlu0 %v164, 64
  %v752 = vpop.permute.xlu0 %751
  %753 = vrot.lane.b32.xlu0 %v168, 64
  %v754 = vpop.permute.xlu0 %753
  %755 = vrot.lane.b32.xlu0 %v170, 64
  %v756 = vpop.permute.xlu0 %755
  %v765 = vcombine.low %v742, %v750
  %v766 = vcombine.high %v742, %v750
  %v768 = vunpack.c.l.s4 1983009808
  %v769 = vunpack.c.0.s8 %v768
  %v770 = vlaneseq
  %v771 = vshrl.u32 %v770, 7
  %v772 = vsub.s32 %v769, %v771
  %v773 = vrot.slane %v765, %v772
  %v775 = vunpack.c.l.s4 1983009808
  %v776 = vunpack.c.0.s8 %v775
  %v777 = vlaneseq
  %v778 = vshrl.u32 %v777, 7
  %v779 = vsub.s32 %v776, %v778
  %v780 = vrot.slane %v766, %v779
  %v781 = vcombine.low %v746, %v754
  %v782 = vcombine.high %v746, %v754
  %v784 = vunpack.c.l.s4 1983009808
  %v785 = vunpack.c.0.s8 %v784
  %v786 = vlaneseq
  %v787 = vshrl.u32 %v786, 7
  %v788 = vsub.s32 %v785, %v787
  %v789 = vrot.slane %v781, %v788
  %v791 = vunpack.c.l.s4 1983009808
  %v792 = vunpack.c.0.s8 %v791
  %v793 = vlaneseq
  %v794 = vshrl.u32 %v793, 7
  %v795 = vsub.s32 %v792, %v794
  %v796 = vrot.slane %v782, %v795
  %v797 = vcombine.low %v773, %v789
  %v798 = vcombine.high %v773, %v789
  %v800 = vunpack.c.l.s4 1934713408
  %v801 = vunpack.c.0.s8 %v800
  %v802 = vlaneseq
  %v803 = vshrl.u32 %v802, 7
  %v804 = vsub.s32 %v801, %v803
  %v805 = vrot.slane %v797, %v804
  %v807 = vunpack.c.l.s4 1934713408
  %v808 = vunpack.c.0.s8 %v807
  %v809 = vlaneseq
  %v810 = vshrl.u32 %v809, 7
  %v811 = vsub.s32 %v808, %v810
  %v812 = vrot.slane %v798, %v811
  %v813 = vcombine.low %v780, %v796
  %v814 = vcombine.high %v780, %v796
  %v816 = vunpack.c.l.s4 1934713408
  %v817 = vunpack.c.0.s8 %v816
  %v818 = vlaneseq
  %v819 = vshrl.u32 %v818, 7
  %v820 = vsub.s32 %v817, %v819
  %v821 = vrot.slane %v813, %v820
  %v823 = vunpack.c.l.s4 1934713408
  %v824 = vunpack.c.0.s8 %v823
  %v825 = vlaneseq
  %v826 = vshrl.u32 %v825, 7
  %v827 = vsub.s32 %v824, %v826
  %v828 = vrot.slane %v814, %v827
  %v829 = vcombine.high %v805, 0.0
  %v830 = vcombine.high %v812, 0.0
  %v831 = vcombine.high %v821, 0.0
  %v832 = vcombine.high %v828, 0.0
  %v833 = vcombine.low %v744, %v752
  %v834 = vcombine.high %v744, %v752
  %v836 = vunpack.c.l.s4 1983009808
  %v837 = vunpack.c.0.s8 %v836
  %v838 = vlaneseq
  %v839 = vshrl.u32 %v838, 7
  %v840 = vsub.s32 %v837, %v839
  %v841 = vrot.slane %v833, %v840
  %v843 = vunpack.c.l.s4 1983009808
  %v844 = vunpack.c.0.s8 %v843
  %v845 = vlaneseq
  %v846 = vshrl.u32 %v845, 7
  %v847 = vsub.s32 %v844, %v846
  %v848 = vrot.slane %v834, %v847
  %v849 = vcombine.low %v748, %v756
  %v850 = vcombine.high %v748, %v756
  %v852 = vunpack.c.l.s4 1983009808
  %v853 = vunpack.c.0.s8 %v852
  %v854 = vlaneseq
  %v855 = vshrl.u32 %v854, 7
  %v856 = vsub.s32 %v853, %v855
  %v857 = vrot.slane %v849, %v856
  %v859 = vunpack.c.l.s4 1983009808
  %v860 = vunpack.c.0.s8 %v859
  %v861 = vlaneseq
  %v862 = vshrl.u32 %v861, 7
  %v863 = vsub.s32 %v860, %v862
  %v864 = vrot.slane %v850, %v863
  %v865 = vcombine.low %v841, %v857
  %v866 = vcombine.high %v841, %v857
  %v868 = vunpack.c.l.s4 1934713408
  %v869 = vunpack.c.0.s8 %v868
  %v870 = vlaneseq
  %v871 = vshrl.u32 %v870, 7
  %v872 = vsub.s32 %v869, %v871
  %v873 = vrot.slane %v865, %v872
  %v875 = vunpack.c.l.s4 1934713408
  %v876 = vunpack.c.0.s8 %v875
  %v877 = vlaneseq
  %v878 = vshrl.u32 %v877, 7
  %v879 = vsub.s32 %v876, %v878
  %v880 = vrot.slane %v866, %v879
  %v881 = vcombine.low %v848, %v864
  %v882 = vcombine.high %v848, %v864
  %v884 = vunpack.c.l.s4 1934713408
  %v885 = vunpack.c.0.s8 %v884
  %v886 = vlaneseq
  %v887 = vshrl.u32 %v886, 7
  %v888 = vsub.s32 %v885, %v887
  %v889 = vrot.slane %v881, %v888
  %v891 = vunpack.c.l.s4 1934713408
  %v892 = vunpack.c.0.s8 %v891
  %v893 = vlaneseq
  %v894 = vshrl.u32 %v893, 7
  %v895 = vsub.s32 %v892, %v894
  %v896 = vrot.slane %v882, %v895
  %v897 = vcombine.high %v873, 0.0
  %v898 = vcombine.high %v880, 0.0
  %v899 = vcombine.high %v889, 0.0
  %v900 = vcombine.high %v896, 0.0
  %v901 = vcombine.low %v805, %v812
  %v903 = vunpack.c.l.s4 1983009808
  %v904 = vunpack.c.0.s8 %v903
  %v905 = vlaneseq
  %v906 = vshrl.u32 %v905, 7
  %v907 = vsub.s32 %v904, %v906
  %v908 = vrot.slane %v901, %v907
  %v909 = vcombine.low %v829, %v830
  %v911 = vunpack.c.l.s4 1983009808
  %v912 = vunpack.c.0.s8 %v911
  %v913 = vlaneseq
  %v914 = vshrl.u32 %v913, 7
  %v915 = vsub.s32 %v912, %v914
  %v916 = vrot.slane %v909, %v915
  %v917 = vcombine.low %v821, %v828
  %v919 = vunpack.c.l.s4 1983009808
  %v920 = vunpack.c.0.s8 %v919
  %v921 = vlaneseq
  %v922 = vshrl.u32 %v921, 7
  %v923 = vsub.s32 %v920, %v922
  %v924 = vrot.slane %v917, %v923
  %v925 = vcombine.low %v831, %v832
  %v927 = vunpack.c.l.s4 1983009808
  %v928 = vunpack.c.0.s8 %v927
  %v929 = vlaneseq
  %v930 = vshrl.u32 %v929, 7
  %v931 = vsub.s32 %v928, %v930
  %v932 = vrot.slane %v925, %v931
  %v933 = vcombine.low %v908, %v916
  %v934 = vcombine.high %v908, %v916
  %v936 = vunpack.c.l.s4 1934713408
  %v937 = vunpack.c.0.s8 %v936
  %v938 = vlaneseq
  %v939 = vshrl.u32 %v938, 7
  %v940 = vsub.s32 %v937, %v939
  %v941 = vrot.slane %v933, %v940
  %v943 = vunpack.c.l.s4 1934713408
  %v944 = vunpack.c.0.s8 %v943
  %v945 = vlaneseq
  %v946 = vshrl.u32 %v945, 7
  %v947 = vsub.s32 %v944, %v946
  %v948 = vrot.slane %v934, %v947
  %v949 = vcombine.low %v924, %v932
  %v950 = vcombine.high %v924, %v932
  %v952 = vunpack.c.l.s4 1934713408
  %v953 = vunpack.c.0.s8 %v952
  %v954 = vlaneseq
  %v955 = vshrl.u32 %v954, 7
  %v956 = vsub.s32 %v953, %v955
  %v957 = vrot.slane %v949, %v956
  %v959 = vunpack.c.l.s4 1934713408
  %v960 = vunpack.c.0.s8 %v959
  %v961 = vlaneseq
  %v962 = vshrl.u32 %v961, 7
  %v963 = vsub.s32 %v960, %v962
  %v964 = vrot.slane %v950, %v963
  %v965 = vcombine.low %v941, %v957
  %v966 = vcombine.high %v941, %v957
  %v967 = vcombine.low %v948, %v964
  %v968 = vcombine.high %v948, %v964
  %v969 = vcombine.low %v873, %v880
  %v971 = vunpack.c.l.s4 1983009808
  %v972 = vunpack.c.0.s8 %v971
  %v973 = vlaneseq
  %v974 = vshrl.u32 %v973, 7
  %v975 = vsub.s32 %v972, %v974
  %v976 = vrot.slane %v969, %v975
  %v977 = vcombine.low %v897, %v898
  %v979 = vunpack.c.l.s4 1983009808
  %v980 = vunpack.c.0.s8 %v979
  %v981 = vlaneseq
  %v982 = vshrl.u32 %v981, 7
  %v983 = vsub.s32 %v980, %v982
  %v984 = vrot.slane %v977, %v983
  %v985 = vcombine.low %v889, %v896
  %v987 = vunpack.c.l.s4 1983009808
  %v988 = vunpack.c.0.s8 %v987
  %v989 = vlaneseq
  %v990 = vshrl.u32 %v989, 7
  %v991 = vsub.s32 %v988, %v990
  %v992 = vrot.slane %v985, %v991
  %v993 = vcombine.low %v899, %v900
  %v995 = vunpack.c.l.s4 1983009808
  %v996 = vunpack.c.0.s8 %v995
  %v997 = vlaneseq
  %v998 = vshrl.u32 %v997, 7
  %v999 = vsub.s32 %v996, %v998
  %v1000 = vrot.slane %v993, %v999
  %v1001 = vcombine.low %v976, %v984
  %v1002 = vcombine.high %v976, %v984
  %v1004 = vunpack.c.l.s4 1934713408
  %v1005 = vunpack.c.0.s8 %v1004
  %v1006 = vlaneseq
  %v1007 = vshrl.u32 %v1006, 7
  %v1008 = vsub.s32 %v1005, %v1007
  %v1009 = vrot.slane %v1001, %v1008
  %v1011 = vunpack.c.l.s4 1934713408
  %v1012 = vunpack.c.0.s8 %v1011
  %v1013 = vlaneseq
  %v1014 = vshrl.u32 %v1013, 7
  %v1015 = vsub.s32 %v1012, %v1014
  %v1016 = vrot.slane %v1002, %v1015
  %v1017 = vcombine.low %v992, %v1000
  %v1018 = vcombine.high %v992, %v1000
  %v1020 = vunpack.c.l.s4 1934713408
  %v1021 = vunpack.c.0.s8 %v1020
  %v1022 = vlaneseq
  %v1023 = vshrl.u32 %v1022, 7
  %v1024 = vsub.s32 %v1021, %v1023
  %v1025 = vrot.slane %v1017, %v1024
  %v1027 = vunpack.c.l.s4 1934713408
  %v1028 = vunpack.c.0.s8 %v1027
  %v1029 = vlaneseq
  %v1030 = vshrl.u32 %v1029, 7
  %v1031 = vsub.s32 %v1028, %v1030
  %v1032 = vrot.slane %v1018, %v1031
  %v1033 = vcombine.low %v1009, %v1025
  %v1034 = vcombine.high %v1009, %v1025
  %v1035 = vcombine.low %v1016, %v1032
  %v1036 = vcombine.high %v1016, %v1032
  %vm1037 = vcmask 64512
  %v1039 = vsel %vm1037, %v373, 0
  %v1042 = vsel %vm1037, %v669, 0
  %1044 = vmatprep.subr.mxu0 0.0
  %1045 = vmatpush1.xpose.msra.mxu0 %v1042
  %1046 = vmatprep.subr.mxu0 0.0
  %1047 = vmatpush1.xpose.msra.mxu0 0.0
  %1048 = vmatprep.subr.mxu0 0.0
  %1049 = vmatpush1.xpose.msra.mxu0 0.0
  %1050 = vmatprep.subr.mxu0 0.0
  %1051 = vmatpush1.xpose.msra.mxu0 0.0
  %1052 = vmatprep.subr.mxu0 0.0
  %1053 = vmatpush1.xpose.msra.mxu0 0.0
  %1054 = vmatprep.subr.mxu0 0.0
  %1055 = vmatpush1.xpose.msra.mxu0 0.0
  %1056 = vmatprep.subr.mxu0 0.0
  %1057 = vmatpush1.xpose.msra.mxu0 0.0
  %1058 = vmatprep.subr.mxu0 0.0
  %1059 = vmatpush1.xpose.msra.mxu0 0.0
  %1060 = vmatprep.subr.mxu0 0.0
  %1061 = vmatpush1.xpose.msra.mxu0 0.0
  %1062 = vmatprep.subr.mxu0 0.0
  %1063 = vmatpush1.xpose.msra.mxu0 0.0
  %1064 = vmatprep.subr.mxu0 0.0
  %1065 = vmatpush1.xpose.msra.mxu0 0.0
  %1066 = vmatprep.subr.mxu0 0.0
  %1067 = vmatpush1.xpose.msra.mxu0 0.0
  %1068 = vmatprep.subr.mxu0 0.0
  %1069 = vmatpush1.xpose.msra.mxu0 0.0
  %1070 = vmatprep.subr.mxu0 0.0
  %1071 = vmatpush1.xpose.msra.mxu0 0.0
  %1072 = vmatprep.subr.mxu0 0.0
  %1073 = vmatpush1.xpose.msra.mxu0 0.0
  %1074 = vmatprep.subr.mxu0 0.0
  %1075 = vmatpush1.xpose.msra.mxu0 0.0
  %1076 = vmatprep.subr.mxu0 0.0
  %1077 = vmatpush1.xpose.msra.mxu0 0.0
  %1078 = vmatprep.subr.mxu0 0.0
  %1079 = vmatpush1.xpose.msra.mxu0 0.0
  %1080 = vmatprep.subr.mxu0 0.0
  %1081 = vmatpush1.xpose.msra.mxu0 0.0
  %1082 = vmatprep.subr.mxu0 0.0
  %1083 = vmatpush1.xpose.msra.mxu0 0.0
  %1084 = vmatprep.subr.mxu0 0.0
  %1085 = vmatpush1.xpose.msra.mxu0 0.0
  %1086 = vmatprep.subr.mxu0 0.0
  %1087 = vmatpush1.xpose.msra.mxu0 0.0
  %1088 = vmatprep.subr.mxu0 0.0
  %1089 = vmatpush1.xpose.msra.mxu0 0.0
  %1090 = vmatprep.subr.mxu0 0.0
  %1091 = vmatpush1.xpose.msra.mxu0 0.0
  %1092 = vmatprep.subr.mxu0 0.0
  %1093 = vmatpush1.xpose.msra.mxu0 0.0
  %1094 = vmatprep.subr.mxu0 0.0
  %1095 = vmatpush1.xpose.msra.mxu0 0.0
  %1096 = vmatprep.subr.mxu0 0.0
  %1097 = vmatpush1.xpose.msra.mxu0 0.0
  %1098 = vmatprep.subr.mxu0 0.0
  %1099 = vmatpush1.xpose.msra.mxu0 0.0
  %1100 = vmatprep.subr.mxu0 0.0
  %1101 = vmatpush1.xpose.msra.mxu0 0.0
  %1102 = vmatprep.subr.mxu0 0.0
  %1103 = vmatpush1.xpose.msra.mxu0 0.0
  %1104 = vmatprep.subr.mxu0 0.0
  %1105 = vmatpush1.xpose.msra.mxu0 0.0
  %1106 = vmatprep.subr.mxu0 0.0
  %1107 = vmatpush1.xpose.msra.mxu0 0.0
  %1108 = vmatprep.mubr.f32.mxu0 0.0
  %1109 = vmatmul.mubr.f32.gmra.mrb[0].mxu0 %v1039
  %v1110 = vpop.f32.mrb[0].mxu0
  %v1111 = vadd.f32 0.0, %v1110
  %v1112 = vpop.f32.mrb[0].mxu0
  %1113 = vdwg.mxu0
  %v1115 = vsel %vm1037, %v374, 0
  %v1118 = vsel %vm1037, %v670, 0
  %1120 = vmatprep.subr.mxu0 0.0
  %1121 = vmatpush1.xpose.msra.mxu0 %v1118
  %1122 = vmatprep.subr.mxu0 0.0
  %1123 = vmatpush1.xpose.msra.mxu0 0.0
  %1124 = vmatprep.subr.mxu0 0.0
  %1125 = vmatpush1.xpose.msra.mxu0 0.0
  %1126 = vmatprep.subr.mxu0 0.0
  %1127 = vmatpush1.xpose.msra.mxu0 0.0
  %1128 = vmatprep.subr.mxu0 0.0
  %1129 = vmatpush1.xpose.msra.mxu0 0.0
  %1130 = vmatprep.subr.mxu0 0.0
  %1131 = vmatpush1.xpose.msra.mxu0 0.0
  %1132 = vmatprep.subr.mxu0 0.0
  %1133 = vmatpush1.xpose.msra.mxu0 0.0
  %1134 = vmatprep.subr.mxu0 0.0
  %1135 = vmatpush1.xpose.msra.mxu0 0.0
  %1136 = vmatprep.subr.mxu0 0.0
  %1137 = vmatpush1.xpose.msra.mxu0 0.0
  %1138 = vmatprep.subr.mxu0 0.0
  %1139 = vmatpush1.xpose.msra.mxu0 0.0
  %1140 = vmatprep.subr.mxu0 0.0
  %1141 = vmatpush1.xpose.msra.mxu0 0.0
  %1142 = vmatprep.subr.mxu0 0.0
  %1143 = vmatpush1.xpose.msra.mxu0 0.0
  %1144 = vmatprep.subr.mxu0 0.0
  %1145 = vmatpush1.xpose.msra.mxu0 0.0
  %1146 = vmatprep.subr.mxu0 0.0
  %1147 = vmatpush1.xpose.msra.mxu0 0.0
  %1148 = vmatprep.subr.mxu0 0.0
  %1149 = vmatpush1.xpose.msra.mxu0 0.0
  %1150 = vmatprep.subr.mxu0 0.0
  %1151 = vmatpush1.xpose.msra.mxu0 0.0
  %1152 = vmatprep.subr.mxu0 0.0
  %1153 = vmatpush1.xpose.msra.mxu0 0.0
  %1154 = vmatprep.subr.mxu0 0.0
  %1155 = vmatpush1.xpose.msra.mxu0 0.0
  %1156 = vmatprep.subr.mxu0 0.0
  %1157 = vmatpush1.xpose.msra.mxu0 0.0
  %1158 = vmatprep.subr.mxu0 0.0
  %1159 = vmatpush1.xpose.msra.mxu0 0.0
  %1160 = vmatprep.subr.mxu0 0.0
  %1161 = vmatpush1.xpose.msra.mxu0 0.0
  %1162 = vmatprep.subr.mxu0 0.0
  %1163 = vmatpush1.xpose.msra.mxu0 0.0
  %1164 = vmatprep.subr.mxu0 0.0
  %1165 = vmatpush1.xpose.msra.mxu0 0.0
  %1166 = vmatprep.subr.mxu0 0.0
  %1167 = vmatpush1.xpose.msra.mxu0 0.0
  %1168 = vmatprep.subr.mxu0 0.0
  %1169 = vmatpush1.xpose.msra.mxu0 0.0
  %1170 = vmatprep.subr.mxu0 0.0
  %1171 = vmatpush1.xpose.msra.mxu0 0.0
  %1172 = vmatprep.subr.mxu0 0.0
  %1173 = vmatpush1.xpose.msra.mxu0 0.0
  %1174 = vmatprep.subr.mxu0 0.0
  %1175 = vmatpush1.xpose.msra.mxu0 0.0
  %1176 = vmatprep.subr.mxu0 0.0
  %1177 = vmatpush1.xpose.msra.mxu0 0.0
  %1178 = vmatprep.subr.mxu0 0.0
  %1179 = vmatpush1.xpose.msra.mxu0 0.0
  %1180 = vmatprep.subr.mxu0 0.0
  %1181 = vmatpush1.xpose.msra.mxu0 0.0
  %1182 = vmatprep.subr.mxu0 0.0
  %1183 = vmatpush1.xpose.msra.mxu0 0.0
  %1184 = vmatprep.mubr.f32.mxu0 0.0
  %1185 = vmatmul.mubr.f32.gmra.mrb[0].mxu0 %v1115
  %v1186 = vpop.f32.mrb[0].mxu0
  %v1187 = vadd.f32 0.0, %v1186
  %v1188 = vpop.f32.mrb[0].mxu0
  %1189 = vdwg.mxu0
  %v1191 = vsel %vm1037, %v375, 0
  %v1194 = vsel %vm1037, %v671, 0
  %1196 = vmatprep.subr.mxu0 0.0
  %1197 = vmatpush1.xpose.msra.mxu0 %v1194
  %1198 = vmatprep.subr.mxu0 0.0
  %1199 = vmatpush1.xpose.msra.mxu0 0.0
  %1200 = vmatprep.subr.mxu0 0.0
  %1201 = vmatpush1.xpose.msra.mxu0 0.0
  %1202 = vmatprep.subr.mxu0 0.0
  %1203 = vmatpush1.xpose.msra.mxu0 0.0
  %1204 = vmatprep.subr.mxu0 0.0
  %1205 = vmatpush1.xpose.msra.mxu0 0.0
  %1206 = vmatprep.subr.mxu0 0.0
  %1207 = vmatpush1.xpose.msra.mxu0 0.0
  %1208 = vmatprep.subr.mxu0 0.0
  %1209 = vmatpush1.xpose.msra.mxu0 0.0
  %1210 = vmatprep.subr.mxu0 0.0
  %1211 = vmatpush1.xpose.msra.mxu0 0.0
  %1212 = vmatprep.subr.mxu0 0.0
  %1213 = vmatpush1.xpose.msra.mxu0 0.0
  %1214 = vmatprep.subr.mxu0 0.0
  %1215 = vmatpush1.xpose.msra.mxu0 0.0
  %1216 = vmatprep.subr.mxu0 0.0
  %1217 = vmatpush1.xpose.msra.mxu0 0.0
  %1218 = vmatprep.subr.mxu0 0.0
  %1219 = vmatpush1.xpose.msra.mxu0 0.0
  %1220 = vmatprep.subr.mxu0 0.0
  %1221 = vmatpush1.xpose.msra.mxu0 0.0
  %1222 = vmatprep.subr.mxu0 0.0
  %1223 = vmatpush1.xpose.msra.mxu0 0.0
  %1224 = vmatprep.subr.mxu0 0.0
  %1225 = vmatpush1.xpose.msra.mxu0 0.0
  %1226 = vmatprep.subr.mxu0 0.0
  %1227 = vmatpush1.xpose.msra.mxu0 0.0
  %1228 = vmatprep.subr.mxu0 0.0
  %1229 = vmatpush1.xpose.msra.mxu0 0.0
  %1230 = vmatprep.subr.mxu0 0.0
  %1231 = vmatpush1.xpose.msra.mxu0 0.0
  %1232 = vmatprep.subr.mxu0 0.0
  %1233 = vmatpush1.xpose.msra.mxu0 0.0
  %1234 = vmatprep.subr.mxu0 0.0
  %1235 = vmatpush1.xpose.msra.mxu0 0.0
  %1236 = vmatprep.subr.mxu0 0.0
  %1237 = vmatpush1.xpose.msra.mxu0 0.0
  %1238 = vmatprep.subr.mxu0 0.0
  %1239 = vmatpush1.xpose.msra.mxu0 0.0
  %1240 = vmatprep.subr.mxu0 0.0
  %1241 = vmatpush1.xpose.msra.mxu0 0.0
  %1242 = vmatprep.subr.mxu0 0.0
  %1243 = vmatpush1.xpose.msra.mxu0 0.0
  %1244 = vmatprep.subr.mxu0 0.0
  %1245 = vmatpush1.xpose.msra.mxu0 0.0
  %1246 = vmatprep.subr.mxu0 0.0
  %1247 = vmatpush1.xpose.msra.mxu0 0.0
  %1248 = vmatprep.subr.mxu0 0.0
  %1249 = vmatpush1.xpose.msra.mxu0 0.0
  %1250 = vmatprep.subr.mxu0 0.0
  %1251 = vmatpush1.xpose.msra.mxu0 0.0
  %1252 = vmatprep.subr.mxu0 0.0
  %1253 = vmatpush1.xpose.msra.mxu0 0.0
  %1254 = vmatprep.subr.mxu0 0.0
  %1255 = vmatpush1.xpose.msra.mxu0 0.0
  %1256 = vmatprep.subr.mxu0 0.0
  %1257 = vmatpush1.xpose.msra.mxu0 0.0
  %1258 = vmatprep.subr.mxu0 0.0
  %1259 = vmatpush1.xpose.msra.mxu0 0.0
  %1260 = vmatprep.mubr.f32.mxu0 0.0
  %1261 = vmatmul.mubr.f32.gmra.mrb[0].mxu0 %v1191
  %v1262 = vpop.f32.mrb[0].mxu0
  %v1263 = vadd.f32 0.0, %v1262
  %v1264 = vpop.f32.mrb[0].mxu0
  %1265 = vdwg.mxu0
  %v1267 = vsel %vm1037, %v376, 0
  %v1270 = vsel %vm1037, %v672, 0
  %1272 = vmatprep.subr.mxu0 0.0
  %1273 = vmatpush1.xpose.msra.mxu0 %v1270
  %1274 = vmatprep.subr.mxu0 0.0
  %1275 = vmatpush1.xpose.msra.mxu0 0.0
  %1276 = vmatprep.subr.mxu0 0.0
  %1277 = vmatpush1.xpose.msra.mxu0 0.0
  %1278 = vmatprep.subr.mxu0 0.0
  %1279 = vmatpush1.xpose.msra.mxu0 0.0
  %1280 = vmatprep.subr.mxu0 0.0
  %1281 = vmatpush1.xpose.msra.mxu0 0.0
  %1282 = vmatprep.subr.mxu0 0.0
  %1283 = vmatpush1.xpose.msra.mxu0 0.0
  %1284 = vmatprep.subr.mxu0 0.0
  %1285 = vmatpush1.xpose.msra.mxu0 0.0
  %1286 = vmatprep.subr.mxu0 0.0
  %1287 = vmatpush1.xpose.msra.mxu0 0.0
  %1288 = vmatprep.subr.mxu0 0.0
  %1289 = vmatpush1.xpose.msra.mxu0 0.0
  %1290 = vmatprep.subr.mxu0 0.0
  %1291 = vmatpush1.xpose.msra.mxu0 0.0
  %1292 = vmatprep.subr.mxu0 0.0
  %1293 = vmatpush1.xpose.msra.mxu0 0.0
  %1294 = vmatprep.subr.mxu0 0.0
  %1295 = vmatpush1.xpose.msra.mxu0 0.0
  %1296 = vmatprep.subr.mxu0 0.0
  %1297 = vmatpush1.xpose.msra.mxu0 0.0
  %1298 = vmatprep.subr.mxu0 0.0
  %1299 = vmatpush1.xpose.msra.mxu0 0.0
  %1300 = vmatprep.subr.mxu0 0.0
  %1301 = vmatpush1.xpose.msra.mxu0 0.0
  %1302 = vmatprep.subr.mxu0 0.0
  %1303 = vmatpush1.xpose.msra.mxu0 0.0
  %1304 = vmatprep.subr.mxu0 0.0
  %1305 = vmatpush1.xpose.msra.mxu0 0.0
  %1306 = vmatprep.subr.mxu0 0.0
  %1307 = vmatpush1.xpose.msra.mxu0 0.0
  %1308 = vmatprep.subr.mxu0 0.0
  %1309 = vmatpush1.xpose.msra.mxu0 0.0
  %1310 = vmatprep.subr.mxu0 0.0
  %1311 = vmatpush1.xpose.msra.mxu0 0.0
  %1312 = vmatprep.subr.mxu0 0.0
  %1313 = vmatpush1.xpose.msra.mxu0 0.0
  %1314 = vmatprep.subr.mxu0 0.0
  %1315 = vmatpush1.xpose.msra.mxu0 0.0
  %1316 = vmatprep.subr.mxu0 0.0
  %1317 = vmatpush1.xpose.msra.mxu0 0.0
  %1318 = vmatprep.subr.mxu0 0.0
  %1319 = vmatpush1.xpose.msra.mxu0 0.0
  %1320 = vmatprep.subr.mxu0 0.0
  %1321 = vmatpush1.xpose.msra.mxu0 0.0
  %1322 = vmatprep.subr.mxu0 0.0
  %1323 = vmatpush1.xpose.msra.mxu0 0.0
  %1324 = vmatprep.subr.mxu0 0.0
  %1325 = vmatpush1.xpose.msra.mxu0 0.0
  %1326 = vmatprep.subr.mxu0 0.0
  %1327 = vmatpush1.xpose.msra.mxu0 0.0
  %1328 = vmatprep.subr.mxu0 0.0
  %1329 = vmatpush1.xpose.msra.mxu0 0.0
  %1330 = vmatprep.subr.mxu0 0.0
  %1331 = vmatpush1.xpose.msra.mxu0 0.0
  %1332 = vmatprep.subr.mxu0 0.0
  %1333 = vmatpush1.xpose.msra.mxu0 0.0
  %1334 = vmatprep.subr.mxu0 0.0
  %1335 = vmatpush1.xpose.msra.mxu0 0.0
  %1336 = vmatprep.mubr.f32.mxu0 0.0
  %1337 = vmatmul.mubr.f32.gmra.mrb[0].mxu0 %v1267
  %v1338 = vpop.f32.mrb[0].mxu0
  %v1339 = vadd.f32 0.0, %v1338
  %v1340 = vpop.f32.mrb[0].mxu0
  %1341 = vdwg.mxu0
  %v1343 = vsel %vm1037, %v441, 0
  %v1346 = vsel %vm1037, %v737, 0
  %1348 = vmatprep.subr.mxu0 0.0
  %1349 = vmatpush1.xpose.msra.mxu0 %v1346
  %1350 = vmatprep.subr.mxu0 0.0
  %1351 = vmatpush1.xpose.msra.mxu0 0.0
  %1352 = vmatprep.subr.mxu0 0.0
  %1353 = vmatpush1.xpose.msra.mxu0 0.0
  %1354 = vmatprep.subr.mxu0 0.0
  %1355 = vmatpush1.xpose.msra.mxu0 0.0
  %1356 = vmatprep.subr.mxu0 0.0
  %1357 = vmatpush1.xpose.msra.mxu0 0.0
  %1358 = vmatprep.subr.mxu0 0.0
  %1359 = vmatpush1.xpose.msra.mxu0 0.0
  %1360 = vmatprep.subr.mxu0 0.0
  %1361 = vmatpush1.xpose.msra.mxu0 0.0
  %1362 = vmatprep.subr.mxu0 0.0
  %1363 = vmatpush1.xpose.msra.mxu0 0.0
  %1364 = vmatprep.subr.mxu0 0.0
  %1365 = vmatpush1.xpose.msra.mxu0 0.0
  %1366 = vmatprep.subr.mxu0 0.0
  %1367 = vmatpush1.xpose.msra.mxu0 0.0
  %1368 = vmatprep.subr.mxu0 0.0
  %1369 = vmatpush1.xpose.msra.mxu0 0.0
  %1370 = vmatprep.subr.mxu0 0.0
  %1371 = vmatpush1.xpose.msra.mxu0 0.0
  %1372 = vmatprep.subr.mxu0 0.0
  %1373 = vmatpush1.xpose.msra.mxu0 0.0
  %1374 = vmatprep.subr.mxu0 0.0
  %1375 = vmatpush1.xpose.msra.mxu0 0.0
  %1376 = vmatprep.subr.mxu0 0.0
  %1377 = vmatpush1.xpose.msra.mxu0 0.0
  %1378 = vmatprep.subr.mxu0 0.0
  %1379 = vmatpush1.xpose.msra.mxu0 0.0
  %1380 = vmatprep.subr.mxu0 0.0
  %1381 = vmatpush1.xpose.msra.mxu0 0.0
  %1382 = vmatprep.subr.mxu0 0.0
  %1383 = vmatpush1.xpose.msra.mxu0 0.0
  %1384 = vmatprep.subr.mxu0 0.0
  %1385 = vmatpush1.xpose.msra.mxu0 0.0
  %1386 = vmatprep.subr.mxu0 0.0
  %1387 = vmatpush1.xpose.msra.mxu0 0.0
  %1388 = vmatprep.subr.mxu0 0.0
  %1389 = vmatpush1.xpose.msra.mxu0 0.0
  %1390 = vmatprep.subr.mxu0 0.0
  %1391 = vmatpush1.xpose.msra.mxu0 0.0
  %1392 = vmatprep.subr.mxu0 0.0
  %1393 = vmatpush1.xpose.msra.mxu0 0.0
  %1394 = vmatprep.subr.mxu0 0.0
  %1395 = vmatpush1.xpose.msra.mxu0 0.0
  %1396 = vmatprep.subr.mxu0 0.0
  %1397 = vmatpush1.xpose.msra.mxu0 0.0
  %1398 = vmatprep.subr.mxu0 0.0
  %1399 = vmatpush1.xpose.msra.mxu0 0.0
  %1400 = vmatprep.subr.mxu0 0.0
  %1401 = vmatpush1.xpose.msra.mxu0 0.0
  %1402 = vmatprep.subr.mxu0 0.0
  %1403 = vmatpush1.xpose.msra.mxu0 0.0
  %1404 = vmatprep.subr.mxu0 0.0
  %1405 = vmatpush1.xpose.msra.mxu0 0.0
  %1406 = vmatprep.subr.mxu0 0.0
  %1407 = vmatpush1.xpose.msra.mxu0 0.0
  %1408 = vmatprep.subr.mxu0 0.0
  %1409 = vmatpush1.xpose.msra.mxu0 0.0
  %1410 = vmatprep.subr.mxu0 0.0
  %1411 = vmatpush1.xpose.msra.mxu0 0.0
  %1412 = vmatprep.mubr.f32.mxu0 0.0
  %1413 = vmatmul.mubr.f32.gmra.mrb[0].mxu0 %v1343
  %v1414 = vpop.f32.mrb[0].mxu0
  %v1415 = vadd.f32 0.0, %v1414
  %v1416 = vpop.f32.mrb[0].mxu0
  %1417 = vdwg.mxu0
  %v1419 = vsel %vm1037, %v442, 0
  %v1422 = vsel %vm1037, %v738, 0
  %1424 = vmatprep.subr.mxu0 0.0
  %1425 = vmatpush1.xpose.msra.mxu0 %v1422
  %1426 = vmatprep.subr.mxu0 0.0
  %1427 = vmatpush1.xpose.msra.mxu0 0.0
  %1428 = vmatprep.subr.mxu0 0.0
  %1429 = vmatpush1.xpose.msra.mxu0 0.0
  %1430 = vmatprep.subr.mxu0 0.0
  %1431 = vmatpush1.xpose.msra.mxu0 0.0
  %1432 = vmatprep.subr.mxu0 0.0
  %1433 = vmatpush1.xpose.msra.mxu0 0.0
  %1434 = vmatprep.subr.mxu0 0.0
  %1435 = vmatpush1.xpose.msra.mxu0 0.0
  %1436 = vmatprep.subr.mxu0 0.0
  %1437 = vmatpush1.xpose.msra.mxu0 0.0
  %1438 = vmatprep.subr.mxu0 0.0
  %1439 = vmatpush1.xpose.msra.mxu0 0.0
  %1440 = vmatprep.subr.mxu0 0.0
  %1441 = vmatpush1.xpose.msra.mxu0 0.0
  %1442 = vmatprep.subr.mxu0 0.0
  %1443 = vmatpush1.xpose.msra.mxu0 0.0
  %1444 = vmatprep.subr.mxu0 0.0
  %1445 = vmatpush1.xpose.msra.mxu0 0.0
  %1446 = vmatprep.subr.mxu0 0.0
  %1447 = vmatpush1.xpose.msra.mxu0 0.0
  %1448 = vmatprep.subr.mxu0 0.0
  %1449 = vmatpush1.xpose.msra.mxu0 0.0
  %1450 = vmatprep.subr.mxu0 0.0
  %1451 = vmatpush1.xpose.msra.mxu0 0.0
  %1452 = vmatprep.subr.mxu0 0.0
  %1453 = vmatpush1.xpose.msra.mxu0 0.0
  %1454 = vmatprep.subr.mxu0 0.0
  %1455 = vmatpush1.xpose.msra.mxu0 0.0
  %1456 = vmatprep.subr.mxu0 0.0
  %1457 = vmatpush1.xpose.msra.mxu0 0.0
  %1458 = vmatprep.subr.mxu0 0.0
  %1459 = vmatpush1.xpose.msra.mxu0 0.0
  %1460 = vmatprep.subr.mxu0 0.0
  %1461 = vmatpush1.xpose.msra.mxu0 0.0
  %1462 = vmatprep.subr.mxu0 0.0
  %1463 = vmatpush1.xpose.msra.mxu0 0.0
  %1464 = vmatprep.subr.mxu0 0.0
  %1465 = vmatpush1.xpose.msra.mxu0 0.0
  %1466 = vmatprep.subr.mxu0 0.0
  %1467 = vmatpush1.xpose.msra.mxu0 0.0
  %1468 = vmatprep.subr.mxu0 0.0
  %1469 = vmatpush1.xpose.msra.mxu0 0.0
  %1470 = vmatprep.subr.mxu0 0.0
  %1471 = vmatpush1.xpose.msra.mxu0 0.0
  %1472 = vmatprep.subr.mxu0 0.0
  %1473 = vmatpush1.xpose.msra.mxu0 0.0
  %1474 = vmatprep.subr.mxu0 0.0
  %1475 = vmatpush1.xpose.msra.mxu0 0.0
  %1476 = vmatprep.subr.mxu0 0.0
  %1477 = vmatpush1.xpose.msra.mxu0 0.0
  %1478 = vmatprep.subr.mxu0 0.0
  %1479 = vmatpush1.xpose.msra.mxu0 0.0
  %1480 = vmatprep.subr.mxu0 0.0
  %1481 = vmatpush1.xpose.msra.mxu0 0.0
  %1482 = vmatprep.subr.mxu0 0.0
  %1483 = vmatpush1.xpose.msra.mxu0 0.0
  %1484 = vmatprep.subr.mxu0 0.0
  %1485 = vmatpush1.xpose.msra.mxu0 0.0
  %1486 = vmatprep.subr.mxu0 0.0
  %1487 = vmatpush1.xpose.msra.mxu0 0.0
  %1488 = vmatprep.mubr.f32.mxu0 0.0
  %1489 = vmatmul.mubr.f32.gmra.mrb[0].mxu0 %v1419
  %v1490 = vpop.f32.mrb[0].mxu0
  %v1491 = vadd.f32 0.0, %v1490
  %v1492 = vpop.f32.mrb[0].mxu0
  %1493 = vdwg.mxu0
  %v1495 = vsel %vm1037, %v443, 0
  %v1498 = vsel %vm1037, %v739, 0
  %1500 = vmatprep.subr.mxu0 0.0
  %1501 = vmatpush1.xpose.msra.mxu0 %v1498
  %1502 = vmatprep.subr.mxu0 0.0
  %1503 = vmatpush1.xpose.msra.mxu0 0.0
  %1504 = vmatprep.subr.mxu0 0.0
  %1505 = vmatpush1.xpose.msra.mxu0 0.0
  %1506 = vmatprep.subr.mxu0 0.0
  %1507 = vmatpush1.xpose.msra.mxu0 0.0
  %1508 = vmatprep.subr.mxu0 0.0
  %1509 = vmatpush1.xpose.msra.mxu0 0.0
  %1510 = vmatprep.subr.mxu0 0.0
  %1511 = vmatpush1.xpose.msra.mxu0 0.0
  %1512 = vmatprep.subr.mxu0 0.0
  %1513 = vmatpush1.xpose.msra.mxu0 0.0
  %1514 = vmatprep.subr.mxu0 0.0
  %1515 = vmatpush1.xpose.msra.mxu0 0.0
  %1516 = vmatprep.subr.mxu0 0.0
  %1517 = vmatpush1.xpose.msra.mxu0 0.0
  %1518 = vmatprep.subr.mxu0 0.0
  %1519 = vmatpush1.xpose.msra.mxu0 0.0
  %1520 = vmatprep.subr.mxu0 0.0
  %1521 = vmatpush1.xpose.msra.mxu0 0.0
  %1522 = vmatprep.subr.mxu0 0.0
  %1523 = vmatpush1.xpose.msra.mxu0 0.0
  %1524 = vmatprep.subr.mxu0 0.0
  %1525 = vmatpush1.xpose.msra.mxu0 0.0
  %1526 = vmatprep.subr.mxu0 0.0
  %1527 = vmatpush1.xpose.msra.mxu0 0.0
  %1528 = vmatprep.subr.mxu0 0.0
  %1529 = vmatpush1.xpose.msra.mxu0 0.0
  %1530 = vmatprep.subr.mxu0 0.0
  %1531 = vmatpush1.xpose.msra.mxu0 0.0
  %1532 = vmatprep.subr.mxu0 0.0
  %1533 = vmatpush1.xpose.msra.mxu0 0.0
  %1534 = vmatprep.subr.mxu0 0.0
  %1535 = vmatpush1.xpose.msra.mxu0 0.0
  %1536 = vmatprep.subr.mxu0 0.0
  %1537 = vmatpush1.xpose.msra.mxu0 0.0
  %1538 = vmatprep.subr.mxu0 0.0
  %1539 = vmatpush1.xpose.msra.mxu0 0.0
  %1540 = vmatprep.subr.mxu0 0.0
  %1541 = vmatpush1.xpose.msra.mxu0 0.0
  %1542 = vmatprep.subr.mxu0 0.0
  %1543 = vmatpush1.xpose.msra.mxu0 0.0
  %1544 = vmatprep.subr.mxu0 0.0
  %1545 = vmatpush1.xpose.msra.mxu0 0.0
  %1546 = vmatprep.subr.mxu0 0.0
  %1547 = vmatpush1.xpose.msra.mxu0 0.0
  %1548 = vmatprep.subr.mxu0 0.0
  %1549 = vmatpush1.xpose.msra.mxu0 0.0
  %1550 = vmatprep.subr.mxu0 0.0
  %1551 = vmatpush1.xpose.msra.mxu0 0.0
  %1552 = vmatprep.subr.mxu0 0.0
  %1553 = vmatpush1.xpose.msra.mxu0 0.0
  %1554 = vmatprep.subr.mxu0 0.0
  %1555 = vmatpush1.xpose.msra.mxu0 0.0
  %1556 = vmatprep.subr.mxu0 0.0
  %1557 = vmatpush1.xpose.msra.mxu0 0.0
  %1558 = vmatprep.subr.mxu0 0.0
  %1559 = vmatpush1.xpose.msra.mxu0 0.0
  %1560 = vmatprep.subr.mxu0 0.0
  %1561 = vmatpush1.xpose.msra.mxu0 0.0
  %1562 = vmatprep.subr.mxu0 0.0
  %1563 = vmatpush1.xpose.msra.mxu0 0.0
  %1564 = vmatprep.mubr.f32.mxu0 0.0
  %1565 = vmatmul.mubr.f32.gmra.mrb[0].mxu0 %v1495
  %v1566 = vpop.f32.mrb[0].mxu0
  %v1567 = vadd.f32 0.0, %v1566
  %v1568 = vpop.f32.mrb[0].mxu0
  %1569 = vdwg.mxu0
  %v1571 = vsel %vm1037, %v444, 0
  %v1574 = vsel %vm1037, %v740, 0
  %1576 = vmatprep.subr.mxu0 0.0
  %1577 = vmatpush1.xpose.msra.mxu0 %v1574
  %1578 = vmatprep.subr.mxu0 0.0
  %1579 = vmatpush1.xpose.msra.mxu0 0.0
  %1580 = vmatprep.subr.mxu0 0.0
  %1581 = vmatpush1.xpose.msra.mxu0 0.0
  %1582 = vmatprep.subr.mxu0 0.0
  %1583 = vmatpush1.xpose.msra.mxu0 0.0
  %1584 = vmatprep.subr.mxu0 0.0
  %1585 = vmatpush1.xpose.msra.mxu0 0.0
  %1586 = vmatprep.subr.mxu0 0.0
  %1587 = vmatpush1.xpose.msra.mxu0 0.0
  %1588 = vmatprep.subr.mxu0 0.0
  %1589 = vmatpush1.xpose.msra.mxu0 0.0
  %1590 = vmatprep.subr.mxu0 0.0
  %1591 = vmatpush1.xpose.msra.mxu0 0.0
  %1592 = vmatprep.subr.mxu0 0.0
  %1593 = vmatpush1.xpose.msra.mxu0 0.0
  %1594 = vmatprep.subr.mxu0 0.0
  %1595 = vmatpush1.xpose.msra.mxu0 0.0
  %1596 = vmatprep.subr.mxu0 0.0
  %1597 = vmatpush1.xpose.msra.mxu0 0.0
  %1598 = vmatprep.subr.mxu0 0.0
  %1599 = vmatpush1.xpose.msra.mxu0 0.0
  %1600 = vmatprep.subr.mxu0 0.0
  %1601 = vmatpush1.xpose.msra.mxu0 0.0
  %1602 = vmatprep.subr.mxu0 0.0
  %1603 = vmatpush1.xpose.msra.mxu0 0.0
  %1604 = vmatprep.subr.mxu0 0.0
  %1605 = vmatpush1.xpose.msra.mxu0 0.0
  %1606 = vmatprep.subr.mxu0 0.0
  %1607 = vmatpush1.xpose.msra.mxu0 0.0
  %1608 = vmatprep.subr.mxu0 0.0
  %1609 = vmatpush1.xpose.msra.mxu0 0.0
  %1610 = vmatprep.subr.mxu0 0.0
  %1611 = vmatpush1.xpose.msra.mxu0 0.0
  %1612 = vmatprep.subr.mxu0 0.0
  %1613 = vmatpush1.xpose.msra.mxu0 0.0
  %1614 = vmatprep.subr.mxu0 0.0
  %1615 = vmatpush1.xpose.msra.mxu0 0.0
  %1616 = vmatprep.subr.mxu0 0.0
  %1617 = vmatpush1.xpose.msra.mxu0 0.0
  %1618 = vmatprep.subr.mxu0 0.0
  %1619 = vmatpush1.xpose.msra.mxu0 0.0
  %1620 = vmatprep.subr.mxu0 0.0
  %1621 = vmatpush1.xpose.msra.mxu0 0.0
  %1622 = vmatprep.subr.mxu0 0.0
  %1623 = vmatpush1.xpose.msra.mxu0 0.0
  %1624 = vmatprep.subr.mxu0 0.0
  %1625 = vmatpush1.xpose.msra.mxu0 0.0
  %1626 = vmatprep.subr.mxu0 0.0
  %1627 = vmatpush1.xpose.msra.mxu0 0.0
  %1628 = vmatprep.subr.mxu0 0.0
  %1629 = vmatpush1.xpose.msra.mxu0 0.0
  %1630 = vmatprep.subr.mxu0 0.0
  %1631 = vmatpush1.xpose.msra.mxu0 0.0
  %1632 = vmatprep.subr.mxu0 0.0
  %1633 = vmatpush1.xpose.msra.mxu0 0.0
  %1634 = vmatprep.subr.mxu0 0.0
  %1635 = vmatpush1.xpose.msra.mxu0 0.0
  %1636 = vmatprep.subr.mxu0 0.0
  %1637 = vmatpush1.xpose.msra.mxu0 0.0
  %1638 = vmatprep.subr.mxu0 0.0
  %1639 = vmatpush1.xpose.msra.mxu0 0.0
  %1640 = vmatprep.mubr.f32.mxu0 0.0
  %1641 = vmatmul.mubr.f32.gmra.mrb[0].mxu0 %v1571
  %v1642 = vpop.f32.mrb[0].mxu0
  %v1643 = vadd.f32 0.0, %v1642
  %v1644 = vpop.f32.mrb[0].mxu0
  %1645 = vdwg.mxu0
  %v1646 = vmul.f32 %v1111, 0.35355338
  %v1647 = vmul.f32 %v1187, 0.35355338
  %v1648 = vmul.f32 %v1263, 0.35355338
  %v1649 = vmul.f32 %v1339, 0.35355338
  %v1650 = vmul.f32 %v1415, 0.35355338
  %v1651 = vmul.f32 %v1491, 0.35355338
  %v1652 = vmul.f32 %v1567, 0.35355338
  %v1653 = vmul.f32 %v1643, 0.35355338
  %v1654 = vadd.f32 %v1646, %v37
  %v1655 = vadd.f32 %v1647, %v38
  %v1656 = vadd.f32 %v1648, %v39
  %v1657 = vadd.f32 %v1649, %v40
  %v1658 = vadd.f32 %v1650, %v41
  %v1659 = vadd.f32 %v1651, %v42
  %v1660 = vadd.f32 %v1652, %v43
  %v1661 = vadd.f32 %v1653, %v44
  %v1662 = vsel %vm1037, %v1654, -inf
  %1663 = vmax.xlane.f32.xlu0 %v1662
  %v1664 = vpop.xlane.xlu0 %1663
  %v1665 = vsel %vm1037, %v1655, -inf
  %1666 = vmax.xlane.f32.xlu0 %v1665
  %v1667 = vpop.xlane.xlu0 %1666
  %v1668 = vsel %vm1037, %v1656, -inf
  %1669 = vmax.xlane.f32.xlu0 %v1668
  %v1670 = vpop.xlane.xlu0 %1669
  %v1671 = vsel %vm1037, %v1657, -inf
  %1672 = vmax.xlane.f32.xlu0 %v1671
  %v1673 = vpop.xlane.xlu0 %1672
  %v1674 = vsel %vm1037, %v1658, -inf
  %1675 = vmax.xlane.f32.xlu0 %v1674
  %v1676 = vpop.xlane.xlu0 %1675
  %v1677 = vsel %vm1037, %v1659, -inf
  %1678 = vmax.xlane.f32.xlu0 %v1677
  %v1679 = vpop.xlane.xlu0 %1678
  %v1680 = vsel %vm1037, %v1660, -inf
  %1681 = vmax.xlane.f32.xlu0 %v1680
  %v1682 = vpop.xlane.xlu0 %1681
  %v1683 = vsel %vm1037, %v1661, -inf
  %1684 = vmax.xlane.f32.xlu0 %v1683
  %v1685 = vpop.xlane.xlu0 %1684
  %v1686 = vsub.f32 %v1654, %v1664
  %v1687 = vsub.f32 %v1655, %v1667
  %v1688 = vsub.f32 %v1656, %v1670
  %v1689 = vsub.f32 %v1657, %v1673
  %v1690 = vsub.f32 %v1658, %v1676
  %v1691 = vsub.f32 %v1659, %v1679
  %v1692 = vsub.f32 %v1660, %v1682
  %v1693 = vsub.f32 %v1661, %v1685
  %v1694 = vmul.f32 %v1686, 1.442695
  %v1695 = vpow.pop %v1694
  %v1696 = vmul.f32 %v1687, 1.442695
  %v1697 = vpow.pop %v1696
  %v1698 = vmul.f32 %v1688, 1.442695
  %v1699 = vpow.pop %v1698
  %v1700 = vmul.f32 %v1689, 1.442695
  %v1701 = vpow.pop %v1700
  %v1702 = vmul.f32 %v1690, 1.442695
  %v1703 = vpow.pop %v1702
  %v1704 = vmul.f32 %v1691, 1.442695
  %v1705 = vpow.pop %v1704
  %v1706 = vmul.f32 %v1692, 1.442695
  %v1707 = vpow.pop %v1706
  %v1708 = vmul.f32 %v1693, 1.442695
  %v1709 = vpow.pop %v1708
  %v1710 = vsel %vm1037, %v1695, 0.0
  %1711 = vadd.xlane.f32.xlu0 %v1710
  %v1712 = vpop.xlane.xlu0 %1711
  %v1713 = vsel %vm1037, %v1697, 0.0
  %1714 = vadd.xlane.f32.xlu0 %v1713
  %v1715 = vpop.xlane.xlu0 %1714
  %v1716 = vsel %vm1037, %v1699, 0.0
  %1717 = vadd.xlane.f32.xlu0 %v1716
  %v1718 = vpop.xlane.xlu0 %1717
  %v1719 = vsel %vm1037, %v1701, 0.0
  %1720 = vadd.xlane.f32.xlu0 %v1719
  %v1721 = vpop.xlane.xlu0 %1720
  %v1722 = vsel %vm1037, %v1703, 0.0
  %1723 = vadd.xlane.f32.xlu0 %v1722
  %v1724 = vpop.xlane.xlu0 %1723
  %v1725 = vsel %vm1037, %v1705, 0.0
  %1726 = vadd.xlane.f32.xlu0 %v1725
  %v1727 = vpop.xlane.xlu0 %1726
  %v1728 = vsel %vm1037, %v1707, 0.0
  %1729 = vadd.xlane.f32.xlu0 %v1728
  %v1730 = vpop.xlane.xlu0 %1729
  %v1731 = vsel %vm1037, %v1709, 0.0
  %1732 = vadd.xlane.f32.xlu0 %v1731
  %v1733 = vpop.xlane.xlu0 %1732
  %v1734 = vrcp.pop %v1712
  %v1735 = vrcp.pop %v1715
  %v1736 = vrcp.pop %v1718
  %v1737 = vrcp.pop %v1721
  %v1738 = vrcp.pop %v1724
  %v1739 = vrcp.pop %v1727
  %v1740 = vrcp.pop %v1730
  %v1741 = vrcp.pop %v1733
  %v1742 = vmul.f32 %v1695, %v1734
  %v1743 = vmul.f32 %v1697, %v1735
  %v1744 = vmul.f32 %v1699, %v1736
  %v1745 = vmul.f32 %v1701, %v1737
  %v1746 = vmul.f32 %v1703, %v1738
  %v1747 = vmul.f32 %v1705, %v1739
  %v1748 = vmul.f32 %v1707, %v1740
  %v1749 = vmul.f32 %v1709, %v1741
  %v1751 = vsel %vm1037, %v1742, 0
  %1753 = vmatprep.subr.mxu0 0.0
  %1754 = vmatpush1.msra.mxu0 %v965
  %1755 = vmatprep.subr.mxu0 0.0
  %1756 = vmatpush1.msra.mxu0 0.0
  %1757 = vmatprep.subr.mxu0 0.0
  %1758 = vmatpush1.msra.mxu0 0.0
  %1759 = vmatprep.subr.mxu0 0.0
  %1760 = vmatpush1.msra.mxu0 0.0
  %1761 = vmatprep.subr.mxu0 0.0
  %1762 = vmatpush1.msra.mxu0 0.0
  %1763 = vmatprep.subr.mxu0 0.0
  %1764 = vmatpush1.msra.mxu0 0.0
  %1765 = vmatprep.subr.mxu0 0.0
  %1766 = vmatpush1.msra.mxu0 0.0
  %1767 = vmatprep.subr.mxu0 0.0
  %1768 = vmatpush1.msra.mxu0 0.0
  %1769 = vmatprep.subr.mxu0 0.0
  %1770 = vmatpush1.msra.mxu0 0.0
  %1771 = vmatprep.subr.mxu0 0.0
  %1772 = vmatpush1.msra.mxu0 0.0
  %1773 = vmatprep.subr.mxu0 0.0
  %1774 = vmatpush1.msra.mxu0 0.0
  %1775 = vmatprep.subr.mxu0 0.0
  %1776 = vmatpush1.msra.mxu0 0.0
  %1777 = vmatprep.subr.mxu0 0.0
  %1778 = vmatpush1.msra.mxu0 0.0
  %1779 = vmatprep.subr.mxu0 0.0
  %1780 = vmatpush1.msra.mxu0 0.0
  %1781 = vmatprep.subr.mxu0 0.0
  %1782 = vmatpush1.msra.mxu0 0.0
  %1783 = vmatprep.subr.mxu0 0.0
  %1784 = vmatpush1.msra.mxu0 0.0
  %1785 = vmatprep.subr.mxu0 0.0
  %1786 = vmatpush1.msra.mxu0 0.0
  %1787 = vmatprep.subr.mxu0 0.0
  %1788 = vmatpush1.msra.mxu0 0.0
  %1789 = vmatprep.subr.mxu0 0.0
  %1790 = vmatpush1.msra.mxu0 0.0
  %1791 = vmatprep.subr.mxu0 0.0
  %1792 = vmatpush1.msra.mxu0 0.0
  %1793 = vmatprep.subr.mxu0 0.0
  %1794 = vmatpush1.msra.mxu0 0.0
  %1795 = vmatprep.subr.mxu0 0.0
  %1796 = vmatpush1.msra.mxu0 0.0
  %1797 = vmatprep.subr.mxu0 0.0
  %1798 = vmatpush1.msra.mxu0 0.0
  %1799 = vmatprep.subr.mxu0 0.0
  %1800 = vmatpush1.msra.mxu0 0.0
  %1801 = vmatprep.subr.mxu0 0.0
  %1802 = vmatpush1.msra.mxu0 0.0
  %1803 = vmatprep.subr.mxu0 0.0
  %1804 = vmatpush1.msra.mxu0 0.0
  %1805 = vmatprep.subr.mxu0 0.0
  %1806 = vmatpush1.msra.mxu0 0.0
  %1807 = vmatprep.subr.mxu0 0.0
  %1808 = vmatpush1.msra.mxu0 0.0
  %1809 = vmatprep.subr.mxu0 0.0
  %1810 = vmatpush1.msra.mxu0 0.0
  %1811 = vmatprep.subr.mxu0 0.0
  %1812 = vmatpush1.msra.mxu0 0.0
  %1813 = vmatprep.subr.mxu0 0.0
  %1814 = vmatpush1.msra.mxu0 0.0
  %1815 = vmatprep.subr.mxu0 0.0
  %1816 = vmatpush1.msra.mxu0 0.0
  %1817 = vmatprep.mubr.f32.mxu0 0.0
  %1818 = vmatmul.mubr.f32.gmra.mrb[0].mxu0 %v1751
  %v1819 = vpop.f32.mrb[0].mxu0
  %v1820 = vadd.f32 0.0, %v1819
  %v1821 = vpop.f32.mrb[0].mxu0
  %1822 = vdwg.mxu0
  %v1824 = vsel %vm1037, %v1743, 0
  %1826 = vmatprep.subr.mxu0 0.0
  %1827 = vmatpush1.msra.mxu0 %v966
  %1828 = vmatprep.subr.mxu0 0.0
  %1829 = vmatpush1.msra.mxu0 0.0
  %1830 = vmatprep.subr.mxu0 0.0
  %1831 = vmatpush1.msra.mxu0 0.0
  %1832 = vmatprep.subr.mxu0 0.0
  %1833 = vmatpush1.msra.mxu0 0.0
  %1834 = vmatprep.subr.mxu0 0.0
  %1835 = vmatpush1.msra.mxu0 0.0
  %1836 = vmatprep.subr.mxu0 0.0
  %1837 = vmatpush1.msra.mxu0 0.0
  %1838 = vmatprep.subr.mxu0 0.0
  %1839 = vmatpush1.msra.mxu0 0.0
  %1840 = vmatprep.subr.mxu0 0.0
  %1841 = vmatpush1.msra.mxu0 0.0
  %1842 = vmatprep.subr.mxu0 0.0
  %1843 = vmatpush1.msra.mxu0 0.0
  %1844 = vmatprep.subr.mxu0 0.0
  %1845 = vmatpush1.msra.mxu0 0.0
  %1846 = vmatprep.subr.mxu0 0.0
  %1847 = vmatpush1.msra.mxu0 0.0
  %1848 = vmatprep.subr.mxu0 0.0
  %1849 = vmatpush1.msra.mxu0 0.0
  %1850 = vmatprep.subr.mxu0 0.0
  %1851 = vmatpush1.msra.mxu0 0.0
  %1852 = vmatprep.subr.mxu0 0.0
  %1853 = vmatpush1.msra.mxu0 0.0
  %1854 = vmatprep.subr.mxu0 0.0
  %1855 = vmatpush1.msra.mxu0 0.0
  %1856 = vmatprep.subr.mxu0 0.0
  %1857 = vmatpush1.msra.mxu0 0.0
  %1858 = vmatprep.subr.mxu0 0.0
  %1859 = vmatpush1.msra.mxu0 0.0
  %1860 = vmatprep.subr.mxu0 0.0
  %1861 = vmatpush1.msra.mxu0 0.0
  %1862 = vmatprep.subr.mxu0 0.0
  %1863 = vmatpush1.msra.mxu0 0.0
  %1864 = vmatprep.subr.mxu0 0.0
  %1865 = vmatpush1.msra.mxu0 0.0
  %1866 = vmatprep.subr.mxu0 0.0
  %1867 = vmatpush1.msra.mxu0 0.0
  %1868 = vmatprep.subr.mxu0 0.0
  %1869 = vmatpush1.msra.mxu0 0.0
  %1870 = vmatprep.subr.mxu0 0.0
  %1871 = vmatpush1.msra.mxu0 0.0
  %1872 = vmatprep.subr.mxu0 0.0
  %1873 = vmatpush1.msra.mxu0 0.0
  %1874 = vmatprep.subr.mxu0 0.0
  %1875 = vmatpush1.msra.mxu0 0.0
  %1876 = vmatprep.subr.mxu0 0.0
  %1877 = vmatpush1.msra.mxu0 0.0
  %1878 = vmatprep.subr.mxu0 0.0
  %1879 = vmatpush1.msra.mxu0 0.0
  %1880 = vmatprep.subr.mxu0 0.0
  %1881 = vmatpush1.msra.mxu0 0.0
  %1882 = vmatprep.subr.mxu0 0.0
  %1883 = vmatpush1.msra.mxu0 0.0
  %1884 = vmatprep.subr.mxu0 0.0
  %1885 = vmatpush1.msra.mxu0 0.0
  %1886 = vmatprep.subr.mxu0 0.0
  %1887 = vmatpush1.msra.mxu0 0.0
  %1888 = vmatprep.subr.mxu0 0.0
  %1889 = vmatpush1.msra.mxu0 0.0
  %1890 = vmatprep.mubr.f32.mxu0 0.0
  %1891 = vmatmul.mubr.f32.gmra.mrb[0].mxu0 %v1824
  %v1892 = vpop.f32.mrb[0].mxu0
  %v1893 = vadd.f32 0.0, %v1892
  %v1894 = vpop.f32.mrb[0].mxu0
  %1895 = vdwg.mxu0
  %v1897 = vsel %vm1037, %v1744, 0
  %1899 = vmatprep.subr.mxu0 0.0
  %1900 = vmatpush1.msra.mxu0 %v967
  %1901 = vmatprep.subr.mxu0 0.0
  %1902 = vmatpush1.msra.mxu0 0.0
  %1903 = vmatprep.subr.mxu0 0.0
  %1904 = vmatpush1.msra.mxu0 0.0
  %1905 = vmatprep.subr.mxu0 0.0
  %1906 = vmatpush1.msra.mxu0 0.0
  %1907 = vmatprep.subr.mxu0 0.0
  %1908 = vmatpush1.msra.mxu0 0.0
  %1909 = vmatprep.subr.mxu0 0.0
  %1910 = vmatpush1.msra.mxu0 0.0
  %1911 = vmatprep.subr.mxu0 0.0
  %1912 = vmatpush1.msra.mxu0 0.0
  %1913 = vmatprep.subr.mxu0 0.0
  %1914 = vmatpush1.msra.mxu0 0.0
  %1915 = vmatprep.subr.mxu0 0.0
  %1916 = vmatpush1.msra.mxu0 0.0
  %1917 = vmatprep.subr.mxu0 0.0
  %1918 = vmatpush1.msra.mxu0 0.0
  %1919 = vmatprep.subr.mxu0 0.0
  %1920 = vmatpush1.msra.mxu0 0.0
  %1921 = vmatprep.subr.mxu0 0.0
  %1922 = vmatpush1.msra.mxu0 0.0
  %1923 = vmatprep.subr.mxu0 0.0
  %1924 = vmatpush1.msra.mxu0 0.0
  %1925 = vmatprep.subr.mxu0 0.0
  %1926 = vmatpush1.msra.mxu0 0.0
  %1927 = vmatprep.subr.mxu0 0.0
  %1928 = vmatpush1.msra.mxu0 0.0
  %1929 = vmatprep.subr.mxu0 0.0
  %1930 = vmatpush1.msra.mxu0 0.0
  %1931 = vmatprep.subr.mxu0 0.0
  %1932 = vmatpush1.msra.mxu0 0.0
  %1933 = vmatprep.subr.mxu0 0.0
  %1934 = vmatpush1.msra.mxu0 0.0
  %1935 = vmatprep.subr.mxu0 0.0
  %1936 = vmatpush1.msra.mxu0 0.0
  %1937 = vmatprep.subr.mxu0 0.0
  %1938 = vmatpush1.msra.mxu0 0.0
  %1939 = vmatprep.subr.mxu0 0.0
  %1940 = vmatpush1.msra.mxu0 0.0
  %1941 = vmatprep.subr.mxu0 0.0
  %1942 = vmatpush1.msra.mxu0 0.0
  %1943 = vmatprep.subr.mxu0 0.0
  %1944 = vmatpush1.msra.mxu0 0.0
  %1945 = vmatprep.subr.mxu0 0.0
  %1946 = vmatpush1.msra.mxu0 0.0
  %1947 = vmatprep.subr.mxu0 0.0
  %1948 = vmatpush1.msra.mxu0 0.0
  %1949 = vmatprep.subr.mxu0 0.0
  %1950 = vmatpush1.msra.mxu0 0.0
  %1951 = vmatprep.subr.mxu0 0.0
  %1952 = vmatpush1.msra.mxu0 0.0
  %1953 = vmatprep.subr.mxu0 0.0
  %1954 = vmatpush1.msra.mxu0 0.0
  %1955 = vmatprep.subr.mxu0 0.0
  %1956 = vmatpush1.msra.mxu0 0.0
  %1957 = vmatprep.subr.mxu0 0.0
  %1958 = vmatpush1.msra.mxu0 0.0
  %1959 = vmatprep.subr.mxu0 0.0
  %1960 = vmatpush1.msra.mxu0 0.0
  %1961 = vmatprep.subr.mxu0 0.0
  %1962 = vmatpush1.msra.mxu0 0.0
  %1963 = vmatprep.mubr.f32.mxu0 0.0
  %1964 = vmatmul.mubr.f32.gmra.mrb[0].mxu0 %v1897
  %v1965 = vpop.f32.mrb[0].mxu0
  %v1966 = vadd.f32 0.0, %v1965
  %v1967 = vpop.f32.mrb[0].mxu0
  %1968 = vdwg.mxu0
  %v1970 = vsel %vm1037, %v1745, 0
  %1972 = vmatprep.subr.mxu0 0.0
  %1973 = vmatpush1.msra.mxu0 %v968
  %1974 = vmatprep.subr.mxu0 0.0
  %1975 = vmatpush1.msra.mxu0 0.0
  %1976 = vmatprep.subr.mxu0 0.0
  %1977 = vmatpush1.msra.mxu0 0.0
  %1978 = vmatprep.subr.mxu0 0.0
  %1979 = vmatpush1.msra.mxu0 0.0
  %1980 = vmatprep.subr.mxu0 0.0
  %1981 = vmatpush1.msra.mxu0 0.0
  %1982 = vmatprep.subr.mxu0 0.0
  %1983 = vmatpush1.msra.mxu0 0.0
  %1984 = vmatprep.subr.mxu0 0.0
  %1985 = vmatpush1.msra.mxu0 0.0
  %1986 = vmatprep.subr.mxu0 0.0
  %1987 = vmatpush1.msra.mxu0 0.0
  %1988 = vmatprep.subr.mxu0 0.0
  %1989 = vmatpush1.msra.mxu0 0.0
  %1990 = vmatprep.subr.mxu0 0.0
  %1991 = vmatpush1.msra.mxu0 0.0
  %1992 = vmatprep.subr.mxu0 0.0
  %1993 = vmatpush1.msra.mxu0 0.0
  %1994 = vmatprep.subr.mxu0 0.0
  %1995 = vmatpush1.msra.mxu0 0.0
  %1996 = vmatprep.subr.mxu0 0.0
  %1997 = vmatpush1.msra.mxu0 0.0
  %1998 = vmatprep.subr.mxu0 0.0
  %1999 = vmatpush1.msra.mxu0 0.0
  %2000 = vmatprep.subr.mxu0 0.0
  %2001 = vmatpush1.msra.mxu0 0.0
  %2002 = vmatprep.subr.mxu0 0.0
  %2003 = vmatpush1.msra.mxu0 0.0
  %2004 = vmatprep.subr.mxu0 0.0
  %2005 = vmatpush1.msra.mxu0 0.0
  %2006 = vmatprep.subr.mxu0 0.0
  %2007 = vmatpush1.msra.mxu0 0.0
  %2008 = vmatprep.subr.mxu0 0.0
  %2009 = vmatpush1.msra.mxu0 0.0
  %2010 = vmatprep.subr.mxu0 0.0
  %2011 = vmatpush1.msra.mxu0 0.0
  %2012 = vmatprep.subr.mxu0 0.0
  %2013 = vmatpush1.msra.mxu0 0.0
  %2014 = vmatprep.subr.mxu0 0.0
  %2015 = vmatpush1.msra.mxu0 0.0
  %2016 = vmatprep.subr.mxu0 0.0
  %2017 = vmatpush1.msra.mxu0 0.0
  %2018 = vmatprep.subr.mxu0 0.0
  %2019 = vmatpush1.msra.mxu0 0.0
  %2020 = vmatprep.subr.mxu0 0.0
  %2021 = vmatpush1.msra.mxu0 0.0
  %2022 = vmatprep.subr.mxu0 0.0
  %2023 = vmatpush1.msra.mxu0 0.0
  %2024 = vmatprep.subr.mxu0 0.0
  %2025 = vmatpush1.msra.mxu0 0.0
  %2026 = vmatprep.subr.mxu0 0.0
  %2027 = vmatpush1.msra.mxu0 0.0
  %2028 = vmatprep.subr.mxu0 0.0
  %2029 = vmatpush1.msra.mxu0 0.0
  %2030 = vmatprep.subr.mxu0 0.0
  %2031 = vmatpush1.msra.mxu0 0.0
  %2032 = vmatprep.subr.mxu0 0.0
  %2033 = vmatpush1.msra.mxu0 0.0
  %2034 = vmatprep.subr.mxu0 0.0
  %2035 = vmatpush1.msra.mxu0 0.0
  %2036 = vmatprep.mubr.f32.mxu0 0.0
  %2037 = vmatmul.mubr.f32.gmra.mrb[0].mxu0 %v1970
  %v2038 = vpop.f32.mrb[0].mxu0
  %v2039 = vadd.f32 0.0, %v2038
  %v2040 = vpop.f32.mrb[0].mxu0
  %2041 = vdwg.mxu0
  %v2043 = vsel %vm1037, %v1746, 0
  %2045 = vmatprep.subr.mxu0 0.0
  %2046 = vmatpush1.msra.mxu0 %v1033
  %2047 = vmatprep.subr.mxu0 0.0
  %2048 = vmatpush1.msra.mxu0 0.0
  %2049 = vmatprep.subr.mxu0 0.0
  %2050 = vmatpush1.msra.mxu0 0.0
  %2051 = vmatprep.subr.mxu0 0.0
  %2052 = vmatpush1.msra.mxu0 0.0
  %2053 = vmatprep.subr.mxu0 0.0
  %2054 = vmatpush1.msra.mxu0 0.0
  %2055 = vmatprep.subr.mxu0 0.0
  %2056 = vmatpush1.msra.mxu0 0.0
  %2057 = vmatprep.subr.mxu0 0.0
  %2058 = vmatpush1.msra.mxu0 0.0
  %2059 = vmatprep.subr.mxu0 0.0
  %2060 = vmatpush1.msra.mxu0 0.0
  %2061 = vmatprep.subr.mxu0 0.0
  %2062 = vmatpush1.msra.mxu0 0.0
  %2063 = vmatprep.subr.mxu0 0.0
  %2064 = vmatpush1.msra.mxu0 0.0
  %2065 = vmatprep.subr.mxu0 0.0
  %2066 = vmatpush1.msra.mxu0 0.0
  %2067 = vmatprep.subr.mxu0 0.0
  %2068 = vmatpush1.msra.mxu0 0.0
  %2069 = vmatprep.subr.mxu0 0.0
  %2070 = vmatpush1.msra.mxu0 0.0
  %2071 = vmatprep.subr.mxu0 0.0
  %2072 = vmatpush1.msra.mxu0 0.0
  %2073 = vmatprep.subr.mxu0 0.0
  %2074 = vmatpush1.msra.mxu0 0.0
  %2075 = vmatprep.subr.mxu0 0.0
  %2076 = vmatpush1.msra.mxu0 0.0
  %2077 = vmatprep.subr.mxu0 0.0
  %2078 = vmatpush1.msra.mxu0 0.0
  %2079 = vmatprep.subr.mxu0 0.0
  %2080 = vmatpush1.msra.mxu0 0.0
  %2081 = vmatprep.subr.mxu0 0.0
  %2082 = vmatpush1.msra.mxu0 0.0
  %2083 = vmatprep.subr.mxu0 0.0
  %2084 = vmatpush1.msra.mxu0 0.0
  %2085 = vmatprep.subr.mxu0 0.0
  %2086 = vmatpush1.msra.mxu0 0.0
  %2087 = vmatprep.subr.mxu0 0.0
  %2088 = vmatpush1.msra.mxu0 0.0
  %2089 = vmatprep.subr.mxu0 0.0
  %2090 = vmatpush1.msra.mxu0 0.0
  %2091 = vmatprep.subr.mxu0 0.0
  %2092 = vmatpush1.msra.mxu0 0.0
  %2093 = vmatprep.subr.mxu0 0.0
  %2094 = vmatpush1.msra.mxu0 0.0
  %2095 = vmatprep.subr.mxu0 0.0
  %2096 = vmatpush1.msra.mxu0 0.0
  %2097 = vmatprep.subr.mxu0 0.0
  %2098 = vmatpush1.msra.mxu0 0.0
  %2099 = vmatprep.subr.mxu0 0.0
  %2100 = vmatpush1.msra.mxu0 0.0
  %2101 = vmatprep.subr.mxu0 0.0
  %2102 = vmatpush1.msra.mxu0 0.0
  %2103 = vmatprep.subr.mxu0 0.0
  %2104 = vmatpush1.msra.mxu0 0.0
  %2105 = vmatprep.subr.mxu0 0.0
  %2106 = vmatpush1.msra.mxu0 0.0
  %2107 = vmatprep.subr.mxu0 0.0
  %2108 = vmatpush1.msra.mxu0 0.0
  %2109 = vmatprep.mubr.f32.mxu0 0.0
  %2110 = vmatmul.mubr.f32.gmra.mrb[0].mxu0 %v2043
  %v2111 = vpop.f32.mrb[0].mxu0
  %v2112 = vadd.f32 0.0, %v2111
  %v2113 = vpop.f32.mrb[0].mxu0
  %2114 = vdwg.mxu0
  %v2116 = vsel %vm1037, %v1747, 0
  %2118 = vmatprep.subr.mxu0 0.0
  %2119 = vmatpush1.msra.mxu0 %v1034
  %2120 = vmatprep.subr.mxu0 0.0
  %2121 = vmatpush1.msra.mxu0 0.0
  %2122 = vmatprep.subr.mxu0 0.0
  %2123 = vmatpush1.msra.mxu0 0.0
  %2124 = vmatprep.subr.mxu0 0.0
  %2125 = vmatpush1.msra.mxu0 0.0
  %2126 = vmatprep.subr.mxu0 0.0
  %2127 = vmatpush1.msra.mxu0 0.0
  %2128 = vmatprep.subr.mxu0 0.0
  %2129 = vmatpush1.msra.mxu0 0.0
  %2130 = vmatprep.subr.mxu0 0.0
  %2131 = vmatpush1.msra.mxu0 0.0
  %2132 = vmatprep.subr.mxu0 0.0
  %2133 = vmatpush1.msra.mxu0 0.0
  %2134 = vmatprep.subr.mxu0 0.0
  %2135 = vmatpush1.msra.mxu0 0.0
  %2136 = vmatprep.subr.mxu0 0.0
  %2137 = vmatpush1.msra.mxu0 0.0
  %2138 = vmatprep.subr.mxu0 0.0
  %2139 = vmatpush1.msra.mxu0 0.0
  %2140 = vmatprep.subr.mxu0 0.0
  %2141 = vmatpush1.msra.mxu0 0.0
  %2142 = vmatprep.subr.mxu0 0.0
  %2143 = vmatpush1.msra.mxu0 0.0
  %2144 = vmatprep.subr.mxu0 0.0
  %2145 = vmatpush1.msra.mxu0 0.0
  %2146 = vmatprep.subr.mxu0 0.0
  %2147 = vmatpush1.msra.mxu0 0.0
  %2148 = vmatprep.subr.mxu0 0.0
  %2149 = vmatpush1.msra.mxu0 0.0
  %2150 = vmatprep.subr.mxu0 0.0
  %2151 = vmatpush1.msra.mxu0 0.0
  %2152 = vmatprep.subr.mxu0 0.0
  %2153 = vmatpush1.msra.mxu0 0.0
  %2154 = vmatprep.subr.mxu0 0.0
  %2155 = vmatpush1.msra.mxu0 0.0
  %2156 = vmatprep.subr.mxu0 0.0
  %2157 = vmatpush1.msra.mxu0 0.0
  %2158 = vmatprep.subr.mxu0 0.0
  %2159 = vmatpush1.msra.mxu0 0.0
  %2160 = vmatprep.subr.mxu0 0.0
  %2161 = vmatpush1.msra.mxu0 0.0
  %2162 = vmatprep.subr.mxu0 0.0
  %2163 = vmatpush1.msra.mxu0 0.0
  %2164 = vmatprep.subr.mxu0 0.0
  %2165 = vmatpush1.msra.mxu0 0.0
  %2166 = vmatprep.subr.mxu0 0.0
  %2167 = vmatpush1.msra.mxu0 0.0
  %2168 = vmatprep.subr.mxu0 0.0
  %2169 = vmatpush1.msra.mxu0 0.0
  %2170 = vmatprep.subr.mxu0 0.0
  %2171 = vmatpush1.msra.mxu0 0.0
  %2172 = vmatprep.subr.mxu0 0.0
  %2173 = vmatpush1.msra.mxu0 0.0
  %2174 = vmatprep.subr.mxu0 0.0
  %2175 = vmatpush1.msra.mxu0 0.0
  %2176 = vmatprep.subr.mxu0 0.0
  %2177 = vmatpush1.msra.mxu0 0.0
  %2178 = vmatprep.subr.mxu0 0.0
  %2179 = vmatpush1.msra.mxu0 0.0
  %2180 = vmatprep.subr.mxu0 0.0
  %2181 = vmatpush1.msra.mxu0 0.0
  %2182 = vmatprep.mubr.f32.mxu0 0.0
  %2183 = vmatmul.mubr.f32.gmra.mrb[0].mxu0 %v2116
  %v2184 = vpop.f32.mrb[0].mxu0
  %v2185 = vadd.f32 0.0, %v2184
  %v2186 = vpop.f32.mrb[0].mxu0
  %2187 = vdwg.mxu0
  %v2189 = vsel %vm1037, %v1748, 0
  %2191 = vmatprep.subr.mxu0 0.0
  %2192 = vmatpush1.msra.mxu0 %v1035
  %2193 = vmatprep.subr.mxu0 0.0
  %2194 = vmatpush1.msra.mxu0 0.0
  %2195 = vmatprep.subr.mxu0 0.0
  %2196 = vmatpush1.msra.mxu0 0.0
  %2197 = vmatprep.subr.mxu0 0.0
  %2198 = vmatpush1.msra.mxu0 0.0
  %2199 = vmatprep.subr.mxu0 0.0
  %2200 = vmatpush1.msra.mxu0 0.0
  %2201 = vmatprep.subr.mxu0 0.0
  %2202 = vmatpush1.msra.mxu0 0.0
  %2203 = vmatprep.subr.mxu0 0.0
  %2204 = vmatpush1.msra.mxu0 0.0
  %2205 = vmatprep.subr.mxu0 0.0
  %2206 = vmatpush1.msra.mxu0 0.0
  %2207 = vmatprep.subr.mxu0 0.0
  %2208 = vmatpush1.msra.mxu0 0.0
  %2209 = vmatprep.subr.mxu0 0.0
  %2210 = vmatpush1.msra.mxu0 0.0
  %2211 = vmatprep.subr.mxu0 0.0
  %2212 = vmatpush1.msra.mxu0 0.0
  %2213 = vmatprep.subr.mxu0 0.0
  %2214 = vmatpush1.msra.mxu0 0.0
  %2215 = vmatprep.subr.mxu0 0.0
  %2216 = vmatpush1.msra.mxu0 0.0
  %2217 = vmatprep.subr.mxu0 0.0
  %2218 = vmatpush1.msra.mxu0 0.0
  %2219 = vmatprep.subr.mxu0 0.0
  %2220 = vmatpush1.msra.mxu0 0.0
  %2221 = vmatprep.subr.mxu0 0.0
  %2222 = vmatpush1.msra.mxu0 0.0
  %2223 = vmatprep.subr.mxu0 0.0
  %2224 = vmatpush1.msra.mxu0 0.0
  %2225 = vmatprep.subr.mxu0 0.0
  %2226 = vmatpush1.msra.mxu0 0.0
  %2227 = vmatprep.subr.mxu0 0.0
  %2228 = vmatpush1.msra.mxu0 0.0
  %2229 = vmatprep.subr.mxu0 0.0
  %2230 = vmatpush1.msra.mxu0 0.0
  %2231 = vmatprep.subr.mxu0 0.0
  %2232 = vmatpush1.msra.mxu0 0.0
  %2233 = vmatprep.subr.mxu0 0.0
  %2234 = vmatpush1.msra.mxu0 0.0
  %2235 = vmatprep.subr.mxu0 0.0
  %2236 = vmatpush1.msra.mxu0 0.0
  %2237 = vmatprep.subr.mxu0 0.0
  %2238 = vmatpush1.msra.mxu0 0.0
  %2239 = vmatprep.subr.mxu0 0.0
  %2240 = vmatpush1.msra.mxu0 0.0
  %2241 = vmatprep.subr.mxu0 0.0
  %2242 = vmatpush1.msra.mxu0 0.0
  %2243 = vmatprep.subr.mxu0 0.0
  %2244 = vmatpush1.msra.mxu0 0.0
  %2245 = vmatprep.subr.mxu0 0.0
  %2246 = vmatpush1.msra.mxu0 0.0
  %2247 = vmatprep.subr.mxu0 0.0
  %2248 = vmatpush1.msra.mxu0 0.0
  %2249 = vmatprep.subr.mxu0 0.0
  %2250 = vmatpush1.msra.mxu0 0.0
  %2251 = vmatprep.subr.mxu0 0.0
  %2252 = vmatpush1.msra.mxu0 0.0
  %2253 = vmatprep.subr.mxu0 0.0
  %2254 = vmatpush1.msra.mxu0 0.0
  %2255 = vmatprep.mubr.f32.mxu0 0.0
  %2256 = vmatmul.mubr.f32.gmra.mrb[0].mxu0 %v2189
  %v2257 = vpop.f32.mrb[0].mxu0
  %v2258 = vadd.f32 0.0, %v2257
  %v2259 = vpop.f32.mrb[0].mxu0
  %2260 = vdwg.mxu0
  %v2262 = vsel %vm1037, %v1749, 0
  %2264 = vmatprep.subr.mxu0 0.0
  %2265 = vmatpush1.msra.mxu0 %v1036
  %2266 = vmatprep.subr.mxu0 0.0
  %2267 = vmatpush1.msra.mxu0 0.0
  %2268 = vmatprep.subr.mxu0 0.0
  %2269 = vmatpush1.msra.mxu0 0.0
  %2270 = vmatprep.subr.mxu0 0.0
  %2271 = vmatpush1.msra.mxu0 0.0
  %2272 = vmatprep.subr.mxu0 0.0
  %2273 = vmatpush1.msra.mxu0 0.0
  %2274 = vmatprep.subr.mxu0 0.0
  %2275 = vmatpush1.msra.mxu0 0.0
  %2276 = vmatprep.subr.mxu0 0.0
  %2277 = vmatpush1.msra.mxu0 0.0
  %2278 = vmatprep.subr.mxu0 0.0
  %2279 = vmatpush1.msra.mxu0 0.0
  %2280 = vmatprep.subr.mxu0 0.0
  %2281 = vmatpush1.msra.mxu0 0.0
  %2282 = vmatprep.subr.mxu0 0.0
  %2283 = vmatpush1.msra.mxu0 0.0
  %2284 = vmatprep.subr.mxu0 0.0
  %2285 = vmatpush1.msra.mxu0 0.0
  %2286 = vmatprep.subr.mxu0 0.0
  %2287 = vmatpush1.msra.mxu0 0.0
  %2288 = vmatprep.subr.mxu0 0.0
  %2289 = vmatpush1.msra.mxu0 0.0
  %2290 = vmatprep.subr.mxu0 0.0
  %2291 = vmatpush1.msra.mxu0 0.0
  %2292 = vmatprep.subr.mxu0 0.0
  %2293 = vmatpush1.msra.mxu0 0.0
  %2294 = vmatprep.subr.mxu0 0.0
  %2295 = vmatpush1.msra.mxu0 0.0
  %2296 = vmatprep.subr.mxu0 0.0
  %2297 = vmatpush1.msra.mxu0 0.0
  %2298 = vmatprep.subr.mxu0 0.0
  %2299 = vmatpush1.msra.mxu0 0.0
  %2300 = vmatprep.subr.mxu0 0.0
  %2301 = vmatpush1.msra.mxu0 0.0
  %2302 = vmatprep.subr.mxu0 0.0
  %2303 = vmatpush1.msra.mxu0 0.0
  %2304 = vmatprep.subr.mxu0 0.0
  %2305 = vmatpush1.msra.mxu0 0.0
  %2306 = vmatprep.subr.mxu0 0.0
  %2307 = vmatpush1.msra.mxu0 0.0
  %2308 = vmatprep.subr.mxu0 0.0
  %2309 = vmatpush1.msra.mxu0 0.0
  %2310 = vmatprep.subr.mxu0 0.0
  %2311 = vmatpush1.msra.mxu0 0.0
  %2312 = vmatprep.subr.mxu0 0.0
  %2313 = vmatpush1.msra.mxu0 0.0
  %2314 = vmatprep.subr.mxu0 0.0
  %2315 = vmatpush1.msra.mxu0 0.0
  %2316 = vmatprep.subr.mxu0 0.0
  %2317 = vmatpush1.msra.mxu0 0.0
  %2318 = vmatprep.subr.mxu0 0.0
  %2319 = vmatpush1.msra.mxu0 0.0
  %2320 = vmatprep.subr.mxu0 0.0
  %2321 = vmatpush1.msra.mxu0 0.0
  %2322 = vmatprep.subr.mxu0 0.0
  %2323 = vmatpush1.msra.mxu0 0.0
  %2324 = vmatprep.subr.mxu0 0.0
  %2325 = vmatpush1.msra.mxu0 0.0
  %2326 = vmatprep.subr.mxu0 0.0
  %2327 = vmatpush1.msra.mxu0 0.0
  %2328 = vmatprep.mubr.f32.mxu0 0.0
  %2329 = vmatmul.mubr.f32.gmra.mrb[0].mxu0 %v2262
  %v2330 = vpop.f32.mrb[0].mxu0
  %v2331 = vadd.f32 0.0, %v2330
  %v2332 = vpop.f32.mrb[0].mxu0
  %2333 = vdwg.mxu0
  %v2334 = vcombine.low %v1820, %v1966
  %v2335 = vcombine.high %v1820, %v1966
  %v2337 = vunpack.c.l.s4 1983009808
  %v2338 = vunpack.c.0.s8 %v2337
  %v2339 = vlaneseq
  %v2340 = vshrl.u32 %v2339, 7
  %v2341 = vsub.s32 %v2338, %v2340
  %v2342 = vrot.slane %v2334, %v2341
  %v2344 = vunpack.c.l.s4 1983009808
  %v2345 = vunpack.c.0.s8 %v2344
  %v2346 = vlaneseq
  %v2347 = vshrl.u32 %v2346, 7
  %v2348 = vsub.s32 %v2345, %v2347
  %v2349 = vrot.slane %v2335, %v2348
  %v2350 = vcombine.low %v1893, %v2039
  %v2351 = vcombine.high %v1893, %v2039
  %v2353 = vunpack.c.l.s4 1983009808
  %v2354 = vunpack.c.0.s8 %v2353
  %v2355 = vlaneseq
  %v2356 = vshrl.u32 %v2355, 7
  %v2357 = vsub.s32 %v2354, %v2356
  %v2358 = vrot.slane %v2350, %v2357
  %v2360 = vunpack.c.l.s4 1983009808
  %v2361 = vunpack.c.0.s8 %v2360
  %v2362 = vlaneseq
  %v2363 = vshrl.u32 %v2362, 7
  %v2364 = vsub.s32 %v2361, %v2363
  %v2365 = vrot.slane %v2351, %v2364
  %v2366 = vcombine.low %v2342, %v2358
  %v2367 = vcombine.high %v2342, %v2358
  %v2369 = vunpack.c.l.s4 1934713408
  %v2370 = vunpack.c.0.s8 %v2369
  %v2371 = vlaneseq
  %v2372 = vshrl.u32 %v2371, 7
  %v2373 = vsub.s32 %v2370, %v2372
  %v2374 = vrot.slane %v2366, %v2373
  %v2376 = vunpack.c.l.s4 1934713408
  %v2377 = vunpack.c.0.s8 %v2376
  %v2378 = vlaneseq
  %v2379 = vshrl.u32 %v2378, 7
  %v2380 = vsub.s32 %v2377, %v2379
  %v2381 = vrot.slane %v2367, %v2380
  %v2382 = vcombine.low %v2349, %v2365
  %v2383 = vcombine.high %v2349, %v2365
  %v2385 = vunpack.c.l.s4 1934713408
  %v2386 = vunpack.c.0.s8 %v2385
  %v2387 = vlaneseq
  %v2388 = vshrl.u32 %v2387, 7
  %v2389 = vsub.s32 %v2386, %v2388
  %v2390 = vrot.slane %v2382, %v2389
  %v2392 = vunpack.c.l.s4 1934713408
  %v2393 = vunpack.c.0.s8 %v2392
  %v2394 = vlaneseq
  %v2395 = vshrl.u32 %v2394, 7
  %v2396 = vsub.s32 %v2393, %v2395
  %v2397 = vrot.slane %v2383, %v2396
  %v2398 = vcombine.high %v2374, 0.0
  %v2399 = vcombine.high %v2381, 0.0
  %v2400 = vcombine.high %v2390, 0.0
  %v2401 = vcombine.high %v2397, 0.0
  %v2402 = vcombine.low %v2112, %v2258
  %v2403 = vcombine.high %v2112, %v2258
  %v2405 = vunpack.c.l.s4 1983009808
  %v2406 = vunpack.c.0.s8 %v2405
  %v2407 = vlaneseq
  %v2408 = vshrl.u32 %v2407, 7
  %v2409 = vsub.s32 %v2406, %v2408
  %v2410 = vrot.slane %v2402, %v2409
  %v2412 = vunpack.c.l.s4 1983009808
  %v2413 = vunpack.c.0.s8 %v2412
  %v2414 = vlaneseq
  %v2415 = vshrl.u32 %v2414, 7
  %v2416 = vsub.s32 %v2413, %v2415
  %v2417 = vrot.slane %v2403, %v2416
  %v2418 = vcombine.low %v2185, %v2331
  %v2419 = vcombine.high %v2185, %v2331
  %v2421 = vunpack.c.l.s4 1983009808
  %v2422 = vunpack.c.0.s8 %v2421
  %v2423 = vlaneseq
  %v2424 = vshrl.u32 %v2423, 7
  %v2425 = vsub.s32 %v2422, %v2424
  %v2426 = vrot.slane %v2418, %v2425
  %v2428 = vunpack.c.l.s4 1983009808
  %v2429 = vunpack.c.0.s8 %v2428
  %v2430 = vlaneseq
  %v2431 = vshrl.u32 %v2430, 7
  %v2432 = vsub.s32 %v2429, %v2431
  %v2433 = vrot.slane %v2419, %v2432
  %v2434 = vcombine.low %v2410, %v2426
  %v2435 = vcombine.high %v2410, %v2426
  %v2437 = vunpack.c.l.s4 1934713408
  %v2438 = vunpack.c.0.s8 %v2437
  %v2439 = vlaneseq
  %v2440 = vshrl.u32 %v2439, 7
  %v2441 = vsub.s32 %v2438, %v2440
  %v2442 = vrot.slane %v2434, %v2441
  %v2444 = vunpack.c.l.s4 1934713408
  %v2445 = vunpack.c.0.s8 %v2444
  %v2446 = vlaneseq
  %v2447 = vshrl.u32 %v2446, 7
  %v2448 = vsub.s32 %v2445, %v2447
  %v2449 = vrot.slane %v2435, %v2448
  %v2450 = vcombine.low %v2417, %v2433
  %v2451 = vcombine.high %v2417, %v2433
  %v2453 = vunpack.c.l.s4 1934713408
  %v2454 = vunpack.c.0.s8 %v2453
  %v2455 = vlaneseq
  %v2456 = vshrl.u32 %v2455, 7
  %v2457 = vsub.s32 %v2454, %v2456
  %v2458 = vrot.slane %v2450, %v2457
  %v2460 = vunpack.c.l.s4 1934713408
  %v2461 = vunpack.c.0.s8 %v2460
  %v2462 = vlaneseq
  %v2463 = vshrl.u32 %v2462, 7
  %v2464 = vsub.s32 %v2461, %v2463
  %v2465 = vrot.slane %v2451, %v2464
  %v2466 = vcombine.high %v2442, 0.0
  %v2467 = vcombine.high %v2449, 0.0
  %v2468 = vcombine.high %v2458, 0.0
  %v2469 = vcombine.high %v2465, 0.0
  %v2470 = vcombine.low %v2374, %v2381
  %v2472 = vunpack.c.l.s4 1983009808
  %v2473 = vunpack.c.0.s8 %v2472
  %v2474 = vlaneseq
  %v2475 = vshrl.u32 %v2474, 7
  %v2476 = vsub.s32 %v2473, %v2475
  %v2477 = vrot.slane %v2470, %v2476
  %v2478 = vcombine.low %v2398, %v2399
  %v2480 = vunpack.c.l.s4 1983009808
  %v2481 = vunpack.c.0.s8 %v2480
  %v2482 = vlaneseq
  %v2483 = vshrl.u32 %v2482, 7
  %v2484 = vsub.s32 %v2481, %v2483
  %v2485 = vrot.slane %v2478, %v2484
  %v2486 = vcombine.low %v2390, %v2397
  %v2488 = vunpack.c.l.s4 1983009808
  %v2489 = vunpack.c.0.s8 %v2488
  %v2490 = vlaneseq
  %v2491 = vshrl.u32 %v2490, 7
  %v2492 = vsub.s32 %v2489, %v2491
  %v2493 = vrot.slane %v2486, %v2492
  %v2494 = vcombine.low %v2400, %v2401
  %v2496 = vunpack.c.l.s4 1983009808
  %v2497 = vunpack.c.0.s8 %v2496
  %v2498 = vlaneseq
  %v2499 = vshrl.u32 %v2498, 7
  %v2500 = vsub.s32 %v2497, %v2499
  %v2501 = vrot.slane %v2494, %v2500
  %v2502 = vcombine.low %v2477, %v2485
  %v2503 = vcombine.high %v2477, %v2485
  %v2505 = vunpack.c.l.s4 1934713408
  %v2506 = vunpack.c.0.s8 %v2505
  %v2507 = vlaneseq
  %v2508 = vshrl.u32 %v2507, 7
  %v2509 = vsub.s32 %v2506, %v2508
  %v2510 = vrot.slane %v2502, %v2509
  %v2512 = vunpack.c.l.s4 1934713408
  %v2513 = vunpack.c.0.s8 %v2512
  %v2514 = vlaneseq
  %v2515 = vshrl.u32 %v2514, 7
  %v2516 = vsub.s32 %v2513, %v2515
  %v2517 = vrot.slane %v2503, %v2516
  %v2518 = vcombine.low %v2493, %v2501
  %v2519 = vcombine.high %v2493, %v2501
  %v2521 = vunpack.c.l.s4 1934713408
  %v2522 = vunpack.c.0.s8 %v2521
  %v2523 = vlaneseq
  %v2524 = vshrl.u32 %v2523, 7
  %v2525 = vsub.s32 %v2522, %v2524
  %v2526 = vrot.slane %v2518, %v2525
  %v2528 = vunpack.c.l.s4 1934713408
  %v2529 = vunpack.c.0.s8 %v2528
  %v2530 = vlaneseq
  %v2531 = vshrl.u32 %v2530, 7
  %v2532 = vsub.s32 %v2529, %v2531
  %v2533 = vrot.slane %v2519, %v2532
  %v2534 = vcombine.low %v2510, %v2526
  %v2535 = vcombine.high %v2510, %v2526
  %v2536 = vcombine.low %v2517, %v2533
  %v2537 = vcombine.high %v2517, %v2533
  %v2538 = vcombine.low %v2442, %v2449
  %v2540 = vunpack.c.l.s4 1983009808
  %v2541 = vunpack.c.0.s8 %v2540
  %v2542 = vlaneseq
  %v2543 = vshrl.u32 %v2542, 7
  %v2544 = vsub.s32 %v2541, %v2543
  %v2545 = vrot.slane %v2538, %v2544
  %v2546 = vcombine.low %v2466, %v2467
  %v2548 = vunpack.c.l.s4 1983009808
  %v2549 = vunpack.c.0.s8 %v2548
  %v2550 = vlaneseq
  %v2551 = vshrl.u32 %v2550, 7
  %v2552 = vsub.s32 %v2549, %v2551
  %v2553 = vrot.slane %v2546, %v2552
  %v2554 = vcombine.low %v2458, %v2465
  %v2556 = vunpack.c.l.s4 1983009808
  %v2557 = vunpack.c.0.s8 %v2556
  %v2558 = vlaneseq
  %v2559 = vshrl.u32 %v2558, 7
  %v2560 = vsub.s32 %v2557, %v2559
  %v2561 = vrot.slane %v2554, %v2560
  %v2562 = vcombine.low %v2468, %v2469
  %v2564 = vunpack.c.l.s4 1983009808
  %v2565 = vunpack.c.0.s8 %v2564
  %v2566 = vlaneseq
  %v2567 = vshrl.u32 %v2566, 7
  %v2568 = vsub.s32 %v2565, %v2567
  %v2569 = vrot.slane %v2562, %v2568
  %v2570 = vcombine.low %v2545, %v2553
  %v2571 = vcombine.high %v2545, %v2553
  %v2573 = vunpack.c.l.s4 1934713408
  %v2574 = vunpack.c.0.s8 %v2573
  %v2575 = vlaneseq
  %v2576 = vshrl.u32 %v2575, 7
  %v2577 = vsub.s32 %v2574, %v2576
  %v2578 = vrot.slane %v2570, %v2577
  %v2580 = vunpack.c.l.s4 1934713408
  %v2581 = vunpack.c.0.s8 %v2580
  %v2582 = vlaneseq
  %v2583 = vshrl.u32 %v2582, 7
  %v2584 = vsub.s32 %v2581, %v2583
  %v2585 = vrot.slane %v2571, %v2584
  %v2586 = vcombine.low %v2561, %v2569
  %v2587 = vcombine.high %v2561, %v2569
  %v2589 = vunpack.c.l.s4 1934713408
  %v2590 = vunpack.c.0.s8 %v2589
  %v2591 = vlaneseq
  %v2592 = vshrl.u32 %v2591, 7
  %v2593 = vsub.s32 %v2590, %v2592
  %v2594 = vrot.slane %v2586, %v2593
  %v2596 = vunpack.c.l.s4 1934713408
  %v2597 = vunpack.c.0.s8 %v2596
  %v2598 = vlaneseq
  %v2599 = vshrl.u32 %v2598, 7
  %v2600 = vsub.s32 %v2597, %v2599
  %v2601 = vrot.slane %v2587, %v2600
  %v2602 = vcombine.low %v2578, %v2594
  %v2603 = vcombine.high %v2578, %v2594
  %v2604 = vcombine.low %v2585, %v2601
  %v2605 = vcombine.high %v2585, %v2601
  %2608 = vrot.lane.b32.xlu0 %v2535, 8
  %v2609 = vpop.permute.xlu0 %2608
  %2610 = vrot.lane.b32.xlu0 %v2603, 8
  %v2611 = vpop.permute.xlu0 %2610
  %2616 = vrot.lane.b32.xlu0 %v2536, 16
  %v2617 = vpop.permute.xlu0 %2616
  %2618 = vrot.lane.b32.xlu0 %v2604, 16
  %v2619 = vpop.permute.xlu0 %2618
  %2624 = vrot.lane.b32.xlu0 %v2537, 24
  %v2625 = vpop.permute.xlu0 %2624
  %2626 = vrot.lane.b32.xlu0 %v2605, 24
  %v2627 = vpop.permute.xlu0 %2626
  %v2630 = vsel %vm1037, %v2534, %v2609
  %v2631 = vsel %vm1037, %v2602, %v2611
  %vm2632 = vcmask 130048
  %v2633 = vsel %vm2632, %v2630, %v2617
  %v2634 = vsel %vm2632, %v2631, %v2619
  %vm2635 = vcmask 195584
  %v2636 = vsel %vm2635, %v2633, %v2625
  %v2637 = vsel %vm2635, %v2634, %v2627
  %v2638 = vpack.c.bf16 %v2637, %v2636
  %v2639 = vld [vmem:[%s4] sm:$0xf]
  %v2640 = vld [vmem:[%s4 + $0x4] sm:$0xf]
  %v2641 = vld [vmem:[%s4 + $0x8] sm:$0xf]
  %v2642 = vld [vmem:[%s4 + $0xc] sm:$0xf]
  %v2643 = vlaneseq
  %v2644 = vshrl.u32 %v2643, 7
  %v2645 = vsub.s32 1, %v2644
  %v2646 = vrot.slane %v87, %v2645
  %v2651 = vunpack.c.l.b16 %v2639
  %v2652 = vunpack.c.l.b16 %v2640
  %v2653 = vunpack.c.l.b16 %v2641
  %v2654 = vunpack.c.l.b16 %v2642
  %v2655 = vpack.c.b16 %v2652, %v2651
  %v2656 = vpack.c.b16 %v2654, %v2653
  %v2660 = vsel %vm47, %v2638, 0
  %2662 = vmatprep.subr.bf16.mxu0 0
  %2663 = vmatpush1.bf16.msra.mxu0 %v2655
  %2664 = vmatprep.subr.bf16.mxu0 0
  %2665 = vmatpush1.bf16.msra.mxu0 %v2656
  %2666 = vmatprep.subr.bf16.mxu0 0
  %2667 = vmatpush1.bf16.msra.mxu0 0
  %2668 = vmatprep.subr.bf16.mxu0 0
  %2669 = vmatpush1.bf16.msra.mxu0 0
  %2670 = vmatprep.subr.bf16.mxu0 0
  %2671 = vmatpush1.bf16.msra.mxu0 0
  %2672 = vmatprep.subr.bf16.mxu0 0
  %2673 = vmatpush1.bf16.msra.mxu0 0
  %2674 = vmatprep.subr.bf16.mxu0 0
  %2675 = vmatpush1.bf16.msra.mxu0 0
  %2676 = vmatprep.subr.bf16.mxu0 0
  %2677 = vmatpush1.bf16.msra.mxu0 0
  %2678 = vmatprep.subr.bf16.mxu0 0
  %2679 = vmatpush1.bf16.msra.mxu0 0
  %2680 = vmatprep.subr.bf16.mxu0 0
  %2681 = vmatpush1.bf16.msra.mxu0 0
  %2682 = vmatprep.subr.bf16.mxu0 0
  %2683 = vmatpush1.bf16.msra.mxu0 0
  %2684 = vmatprep.subr.bf16.mxu0 0
  %2685 = vmatpush1.bf16.msra.mxu0 0
  %2686 = vmatprep.subr.bf16.mxu0 0
  %2687 = vmatpush1.bf16.msra.mxu0 0
  %2688 = vmatprep.subr.bf16.mxu0 0
  %2689 = vmatpush1.bf16.msra.mxu0 0
  %2690 = vmatprep.subr.bf16.mxu0 0
  %2691 = vmatpush1.bf16.msra.mxu0 0
  %2692 = vmatprep.subr.bf16.mxu0 0
  %2693 = vmatpush1.bf16.msra.mxu0 0
  %2694 = vmatprep.mubr.bf16.mxu0 0
  %2695 = vmatmul.mubr.bf16.gmra.mrb[0].mxu0 %v2660
  %v2696 = vpop.f32.mrb[0].mxu0
  %v2697 = vadd.f32 %v2646, %v2696
  %v2698 = vpop.f32.mrb[0].mxu0
  %v2699 = vpop.f32.mrb[0].mxu0
  %v2700 = vadd.f32 %v2646, %v2699
  %v2701 = vpop.f32.mrb[0].mxu0
  %2702 = vdwg.mxu0
  %v2703 = vadd.f32 %v85, %v2697
  %v2704 = vadd.f32 %v86, %v2700
  %v2705 = vsel %vm47, %v2703, 0.0
  %2706 = vadd.xlane.f32.xlu0 %v2705
  %v2707 = vpop.xlane.xlu0 %2706
  %v2708 = vsel %vm47, %v2704, 0.0
  %2709 = vadd.xlane.f32.xlu0 %v2708
  %v2710 = vpop.xlane.xlu0 %2709
  %v2711 = vmul.f32 %v2707, %v54
  %v2712 = vmul.f32 %v2710, %v54
  %v2713 = vsub.f32 %v2703, %v2711
  %v2714 = vsub.f32 %v2704, %v2712
  %v2715 = vmul.f32 %v2713, %v2713
  %v2716 = vmul.f32 %v2714, %v2714
  %v2717 = vsel %vm47, %v2715, 0.0
  %2718 = vadd.xlane.f32.xlu0 %v2717
  %v2719 = vpop.xlane.xlu0 %2718
  %v2720 = vsel %vm47, %v2716, 0.0
  %2721 = vadd.xlane.f32.xlu0 %v2720
  %v2722 = vpop.xlane.xlu0 %2721
  %v2723 = vmul.f32 %v2719, %v54
  %v2724 = vmul.f32 %v2722, %v54
  %v2725 = vadd.f32 %v2723, 1e-12
  %v2726 = vadd.f32 %v2724, 1e-12
  %v2727 = vrsqrt.pop %v2725
  %v2728 = vrsqrt.pop %v2726
  %v2729 = vmul.f32 %v2713, %v2727
  %v2730 = vmul.f32 %v2714, %v2728
  %v2731 = vlaneseq
  %v2732 = vshrl.u32 %v2731, 7
  %v2733 = vsub.s32 2, %v2732
  %v2734 = vrot.slane %v87, %v2733
  %v2735 = vmul.f32 %v2729, %v2734
  %v2736 = vmul.f32 %v2730, %v2734
  %v2737 = vlaneseq
  %v2738 = vshrl.u32 %v2737, 7
  %v2739 = vsub.s32 3, %v2738
  %v2740 = vrot.slane %v87, %v2739
  %v2741 = vadd.f32 %v2735, %v2740
  %v2742 = vadd.f32 %v2736, %v2740
  %v2743 = vpack.c.bf16 %v2742, %v2741
  %v2744 = vld [vmem:[%s5] sm:$0xf]
  %v2745 = vld [vmem:[%s5 + $0x4] sm:$0xf]
  %v2746 = vld [vmem:[%s5 + $0x8] sm:$0xf]
  %v2747 = vld [vmem:[%s5 + $0xc] sm:$0xf]
  %v2748 = vlaneseq
  %v2749 = vshrl.u32 %v2748, 7
  %v2750 = vsub.s32 4, %v2749
  %v2751 = vrot.slane %v87, %v2750
  %v2756 = vunpack.c.l.b16 %v2744
  %v2757 = vunpack.c.l.b16 %v2745
  %v2758 = vunpack.c.l.b16 %v2746
  %v2759 = vunpack.c.l.b16 %v2747
  %v2760 = vpack.c.b16 %v2757, %v2756
  %v2761 = vpack.c.b16 %v2759, %v2758
  %v2765 = vsel %vm47, %v2743, 0
  %2767 = vmatprep.subr.bf16.mxu0 0
  %2768 = vmatpush1.bf16.msra.mxu0 %v2760
  %2769 = vmatprep.subr.bf16.mxu0 0
  %2770 = vmatpush1.bf16.msra.mxu0 %v2761
  %2771 = vmatprep.subr.bf16.mxu0 0
  %2772 = vmatpush1.bf16.msra.mxu0 0
  %2773 = vmatprep.subr.bf16.mxu0 0
  %2774 = vmatpush1.bf16.msra.mxu0 0
  %2775 = vmatprep.subr.bf16.mxu0 0
  %2776 = vmatpush1.bf16.msra.mxu0 0
  %2777 = vmatprep.subr.bf16.mxu0 0
  %2778 = vmatpush1.bf16.msra.mxu0 0
  %2779 = vmatprep.subr.bf16.mxu0 0
  %2780 = vmatpush1.bf16.msra.mxu0 0
  %2781 = vmatprep.subr.bf16.mxu0 0
  %2782 = vmatpush1.bf16.msra.mxu0 0
  %2783 = vmatprep.subr.bf16.mxu0 0
  %2784 = vmatpush1.bf16.msra.mxu0 0
  %2785 = vmatprep.subr.bf16.mxu0 0
  %2786 = vmatpush1.bf16.msra.mxu0 0
  %2787 = vmatprep.subr.bf16.mxu0 0
  %2788 = vmatpush1.bf16.msra.mxu0 0
  %2789 = vmatprep.subr.bf16.mxu0 0
  %2790 = vmatpush1.bf16.msra.mxu0 0
  %2791 = vmatprep.subr.bf16.mxu0 0
  %2792 = vmatpush1.bf16.msra.mxu0 0
  %2793 = vmatprep.subr.bf16.mxu0 0
  %2794 = vmatpush1.bf16.msra.mxu0 0
  %2795 = vmatprep.subr.bf16.mxu0 0
  %2796 = vmatpush1.bf16.msra.mxu0 0
  %2797 = vmatprep.subr.bf16.mxu0 0
  %2798 = vmatpush1.bf16.msra.mxu0 0
  %2799 = vmatprep.mubr.bf16.mxu0 0
  %2800 = vmatmul.mubr.bf16.gmra.mrb[0].mxu0 %v2765
  %v2801 = vpop.f32.mrb[0].mxu0
  %v2802 = vadd.f32 %v2751, %v2801
  %v2803 = vpop.f32.mrb[0].mxu0
  %v2804 = vpop.f32.mrb[0].mxu0
  %v2805 = vadd.f32 %v2751, %v2804
  %v2806 = vpop.f32.mrb[0].mxu0
  %2807 = vdwg.mxu0
  %v2808 = vmul.f32 %v2802, 0.5
  %v2809 = vmul.f32 %v2805, 0.5
  %v2810 = vmul.f32 %v2802, 0.044715
  %v2811 = vmul.f32 %v2805, 0.044715
  %v2812 = vmul.f32 %v2810, %v2802
  %v2813 = vmul.f32 %v2811, %v2805
  %v2814 = vmul.f32 %v2812, %v2802
  %v2815 = vmul.f32 %v2813, %v2805
  %v2816 = vadd.f32 %v2802, %v2814
  %v2817 = vadd.f32 %v2805, %v2815
  %v2818 = vmul.f32 %v2816, 0.7978846
  %v2819 = vmul.f32 %v2817, 0.7978846
  %v2820 = vtanh.pop %v2818
  %v2821 = vtanh.pop %v2819
  %v2822 = vadd.f32 %v2820, 1.0
  %v2823 = vadd.f32 %v2821, 1.0
  %v2824 = vmul.f32 %v2808, %v2822
  %v2825 = vmul.f32 %v2809, %v2823
  %v2826 = vpack.c.bf16 %v2825, %v2824
  %v2827 = vld [vmem:[%s6] sm:$0xf]
  %v2828 = vld [vmem:[%s6 + $0x4] sm:$0xf]
  %v2829 = vld [vmem:[%s6 + $0x8] sm:$0xf]
  %v2830 = vld [vmem:[%s6 + $0xc] sm:$0xf]
  %v2831 = vld [vmem:[%s6 + $0x10] sm:$0xf]
  %v2832 = vld [vmem:[%s6 + $0x14] sm:$0xf]
  %v2833 = vld [vmem:[%s6 + $0x18] sm:$0xf]
  %v2834 = vld [vmem:[%s6 + $0x1c] sm:$0xf]
  %v2835 = vlaneseq
  %v2836 = vshrl.u32 %v2835, 7
  %v2837 = vsub.s32 5, %v2836
  %v2838 = vrot.slane %v87, %v2837
  %v2847 = vunpack.c.l.b16 %v2827
  %v2848 = vunpack.c.l.b16 %v2828
  %v2849 = vunpack.c.l.b16 %v2829
  %v2850 = vunpack.c.l.b16 %v2830
  %v2851 = vunpack.c.l.b16 %v2831
  %v2852 = vunpack.c.l.b16 %v2832
  %v2853 = vunpack.c.l.b16 %v2833
  %v2854 = vunpack.c.l.b16 %v2834
  %v2855 = vpack.c.b16 %v2848, %v2847
  %v2856 = vpack.c.b16 %v2850, %v2849
  %v2857 = vpack.c.b16 %v2852, %v2851
  %v2858 = vpack.c.b16 %v2854, %v2853
  %vm2863 = vcmask 523264
  %v2865 = vsel %vm2863, %v2826, 0
  %2867 = vmatprep.subr.bf16.mxu0 0
  %2868 = vmatpush1.bf16.msra.mxu0 %v2855
  %2869 = vmatprep.subr.bf16.mxu0 0
  %2870 = vmatpush1.bf16.msra.mxu0 %v2856
  %2871 = vmatprep.subr.bf16.mxu0 0
  %2872 = vmatpush1.bf16.msra.mxu0 %v2857
  %2873 = vmatprep.subr.bf16.mxu0 0
  %2874 = vmatpush1.bf16.msra.mxu0 %v2858
  %2875 = vmatprep.subr.bf16.mxu0 0
  %2876 = vmatpush1.bf16.msra.mxu0 0
  %2877 = vmatprep.subr.bf16.mxu0 0
  %2878 = vmatpush1.bf16.msra.mxu0 0
  %2879 = vmatprep.subr.bf16.mxu0 0
  %2880 = vmatpush1.bf16.msra.mxu0 0
  %2881 = vmatprep.subr.bf16.mxu0 0
  %2882 = vmatpush1.bf16.msra.mxu0 0
  %2883 = vmatprep.subr.bf16.mxu0 0
  %2884 = vmatpush1.bf16.msra.mxu0 0
  %2885 = vmatprep.subr.bf16.mxu0 0
  %2886 = vmatpush1.bf16.msra.mxu0 0
  %2887 = vmatprep.subr.bf16.mxu0 0
  %2888 = vmatpush1.bf16.msra.mxu0 0
  %2889 = vmatprep.subr.bf16.mxu0 0
  %2890 = vmatpush1.bf16.msra.mxu0 0
  %2891 = vmatprep.subr.bf16.mxu0 0
  %2892 = vmatpush1.bf16.msra.mxu0 0
  %2893 = vmatprep.subr.bf16.mxu0 0
  %2894 = vmatpush1.bf16.msra.mxu0 0
  %2895 = vmatprep.subr.bf16.mxu0 0
  %2896 = vmatpush1.bf16.msra.mxu0 0
  %2897 = vmatprep.subr.bf16.mxu0 0
  %2898 = vmatpush1.bf16.msra.mxu0 0
  %2899 = vmatprep.mubr.bf16.mxu0 0
  %2900 = vmatmul.mubr.bf16.gmra.mrb[0].mxu0 %v2865
  %v2901 = vpop.f32.mrb[0].mxu0
  %v2902 = vadd.f32 %v2838, %v2901
  %v2903 = vpop.f32.mrb[0].mxu0
  %v2904 = vpop.f32.mrb[0].mxu0
  %v2905 = vadd.f32 %v2838, %v2904
  %v2906 = vpop.f32.mrb[0].mxu0
  %2907 = vdwg.mxu0
  %v2908 = vadd.f32 %v2741, %v2902
  %v2909 = vadd.f32 %v2742, %v2905
  %v2910 = vsel %vm47, %v2908, 0.0
  %2911 = vadd.xlane.f32.xlu0 %v2910
  %v2912 = vpop.xlane.xlu0 %2911
  %v2913 = vsel %vm47, %v2909, 0.0
  %2914 = vadd.xlane.f32.xlu0 %v2913
  %v2915 = vpop.xlane.xlu0 %2914
  %v2916 = vmul.f32 %v2912, %v54
  %v2917 = vmul.f32 %v2915, %v54
  %v2918 = vsub.f32 %v2908, %v2916
  %v2919 = vsub.f32 %v2909, %v2917
  %v2920 = vmul.f32 %v2918, %v2918
  %v2921 = vmul.f32 %v2919, %v2919
  %v2922 = vsel %vm47, %v2920, 0.0
  %2923 = vadd.xlane.f32.xlu0 %v2922
  %v2924 = vpop.xlane.xlu0 %2923
  %v2925 = vsel %vm47, %v2921, 0.0
  %2926 = vadd.xlane.f32.xlu0 %v2925
  %v2927 = vpop.xlane.xlu0 %2926
  %v2928 = vmul.f32 %v2924, %v54
  %v2929 = vmul.f32 %v2927, %v54
  %v2930 = vadd.f32 %v2928, 1e-12
  %v2931 = vadd.f32 %v2929, 1e-12
  %v2932 = vrsqrt.pop %v2930
  %v2933 = vrsqrt.pop %v2931
  %v2934 = vmul.f32 %v2918, %v2932
  %v2935 = vmul.f32 %v2919, %v2933
  %v2936 = vlaneseq
  %v2937 = vshrl.u32 %v2936, 7
  %v2938 = vsub.s32 6, %v2937
  %v2939 = vrot.slane %v87, %v2938
  %v2940 = vmul.f32 %v2934, %v2939
  %v2941 = vmul.f32 %v2935, %v2939
  %v2942 = vlaneseq
  %v2943 = vshrl.u32 %v2942, 7
  %v2944 = vsub.s32 7, %v2943
  %v2945 = vrot.slane %v87, %v2944
  %v2946 = vadd.f32 %v2940, %v2945
  %v2947 = vadd.f32 %v2941, %v2945
  %s2948 = scalar_lea.vmem %s7, 8
  %v2949 = vld [vmem:[%s2948] sm:$0xff]
  %v2950 = vpack.c.bf16 %v2947, %v2946
  %s2951 = scalar_lea.vmem %s3, 16
  %v2952 = vld [vmem:[%s2951] sm:$0xf]
  %v2953 = vld [vmem:[%s2951 + $0x4] sm:$0xf]
  %v2954 = vld [vmem:[%s2951 + $0x8] sm:$0xf]
  %v2955 = vld [vmem:[%s2951 + $0xc] sm:$0xf]
  %v2956 = vlaneseq
  %v2957 = vshrl.u32 %v2956, 7
  %v2958 = vsub.s32 0, %v2957
  %v2959 = vrot.slane %v2949, %v2958
  %v2964 = vunpack.c.l.b16 %v2952
  %v2965 = vunpack.c.l.b16 %v2953
  %v2966 = vunpack.c.l.b16 %v2954
  %v2967 = vunpack.c.l.b16 %v2955
  %v2968 = vpack.c.b16 %v2965, %v2964
  %v2969 = vpack.c.b16 %v2967, %v2966
  %v2973 = vsel %vm47, %v2950, 0
  %2975 = vmatprep.subr.bf16.mxu0 0
  %2976 = vmatpush1.bf16.msra.mxu0 %v2968
  %2977 = vmatprep.subr.bf16.mxu0 0
  %2978 = vmatpush1.bf16.msra.mxu0 %v2969
  %2979 = vmatprep.subr.bf16.mxu0 0
  %2980 = vmatpush1.bf16.msra.mxu0 0
  %2981 = vmatprep.subr.bf16.mxu0 0
  %2982 = vmatpush1.bf16.msra.mxu0 0
  %2983 = vmatprep.subr.bf16.mxu0 0
  %2984 = vmatpush1.bf16.msra.mxu0 0
  %2985 = vmatprep.subr.bf16.mxu0 0
  %2986 = vmatpush1.bf16.msra.mxu0 0
  %2987 = vmatprep.subr.bf16.mxu0 0
  %2988 = vmatpush1.bf16.msra.mxu0 0
  %2989 = vmatprep.subr.bf16.mxu0 0
  %2990 = vmatpush1.bf16.msra.mxu0 0
  %2991 = vmatprep.subr.bf16.mxu0 0
  %2992 = vmatpush1.bf16.msra.mxu0 0
  %2993 = vmatprep.subr.bf16.mxu0 0
  %2994 = vmatpush1.bf16.msra.mxu0 0
  %2995 = vmatprep.subr.bf16.mxu0 0
  %2996 = vmatpush1.bf16.msra.mxu0 0
  %2997 = vmatprep.subr.bf16.mxu0 0
  %2998 = vmatpush1.bf16.msra.mxu0 0
  %2999 = vmatprep.subr.bf16.mxu0 0
  %3000 = vmatpush1.bf16.msra.mxu0 0
  %3001 = vmatprep.subr.bf16.mxu0 0
  %3002 = vmatpush1.bf16.msra.mxu0 0
  %3003 = vmatprep.subr.bf16.mxu0 0
  %3004 = vmatpush1.bf16.msra.mxu0 0
  %3005 = vmatprep.subr.bf16.mxu0 0
  %3006 = vmatpush1.bf16.msra.mxu0 0
  %3007 = vmatprep.mubr.bf16.mxu0 0
  %3008 = vmatmul.mubr.bf16.gmra.mrb[0].mxu0 %v2973
  %v3009 = vpop.f32.mrb[0].mxu0
  %v3010 = vadd.f32 %v2959, %v3009
  %v3011 = vpop.f32.mrb[0].mxu0
  %v3012 = vpop.f32.mrb[0].mxu0
  %v3013 = vadd.f32 %v2959, %v3012
  %v3014 = vpop.f32.mrb[0].mxu0
  %3015 = vdwg.mxu0
  %3018 = vrot.lane.b32.xlu0 %v3010, 120
  %v3019 = vpop.permute.xlu0 %3018
  %3020 = vrot.lane.b32.xlu0 %v3013, 120
  %v3021 = vpop.permute.xlu0 %3020
  %3024 = vrot.lane.b32.xlu0 %v3010, 112
  %v3025 = vpop.permute.xlu0 %3024
  %3026 = vrot.lane.b32.xlu0 %v3013, 112
  %v3027 = vpop.permute.xlu0 %3026
  %3030 = vrot.lane.b32.xlu0 %v3010, 104
  %v3031 = vpop.permute.xlu0 %3030
  %3032 = vrot.lane.b32.xlu0 %v3013, 104
  %v3033 = vpop.permute.xlu0 %3032
  %v3036 = vcombine.low %v3010, %v3025
  %v3037 = vcombine.high %v3010, %v3025
  %v3039 = vunpack.c.l.s4 1983009808
  %v3040 = vunpack.c.0.s8 %v3039
  %v3041 = vlaneseq
  %v3042 = vshrl.u32 %v3041, 7
  %v3043 = vsub.s32 %v3040, %v3042
  %v3044 = vrot.slane %v3036, %v3043
  %v3046 = vunpack.c.l.s4 1983009808
  %v3047 = vunpack.c.0.s8 %v3046
  %v3048 = vlaneseq
  %v3049 = vshrl.u32 %v3048, 7
  %v3050 = vsub.s32 %v3047, %v3049
  %v3051 = vrot.slane %v3037, %v3050
  %v3052 = vcombine.low %v3019, %v3031
  %v3053 = vcombine.high %v3019, %v3031
  %v3055 = vunpack.c.l.s4 1983009808
  %v3056 = vunpack.c.0.s8 %v3055
  %v3057 = vlaneseq
  %v3058 = vshrl.u32 %v3057, 7
  %v3059 = vsub.s32 %v3056, %v3058
  %v3060 = vrot.slane %v3052, %v3059
  %v3062 = vunpack.c.l.s4 1983009808
  %v3063 = vunpack.c.0.s8 %v3062
  %v3064 = vlaneseq
  %v3065 = vshrl.u32 %v3064, 7
  %v3066 = vsub.s32 %v3063, %v3065
  %v3067 = vrot.slane %v3053, %v3066
  %v3068 = vcombine.low %v3044, %v3060
  %v3069 = vcombine.high %v3044, %v3060
  %v3071 = vunpack.c.l.s4 1934713408
  %v3072 = vunpack.c.0.s8 %v3071
  %v3073 = vlaneseq
  %v3074 = vshrl.u32 %v3073, 7
  %v3075 = vsub.s32 %v3072, %v3074
  %v3076 = vrot.slane %v3068, %v3075
  %v3078 = vunpack.c.l.s4 1934713408
  %v3079 = vunpack.c.0.s8 %v3078
  %v3080 = vlaneseq
  %v3081 = vshrl.u32 %v3080, 7
  %v3082 = vsub.s32 %v3079, %v3081
  %v3083 = vrot.slane %v3069, %v3082
  %v3084 = vcombine.low %v3051, %v3067
  %v3085 = vcombine.high %v3051, %v3067
  %v3087 = vunpack.c.l.s4 1934713408
  %v3088 = vunpack.c.0.s8 %v3087
  %v3089 = vlaneseq
  %v3090 = vshrl.u32 %v3089, 7
  %v3091 = vsub.s32 %v3088, %v3090
  %v3092 = vrot.slane %v3084, %v3091
  %v3094 = vunpack.c.l.s4 1934713408
  %v3095 = vunpack.c.0.s8 %v3094
  %v3096 = vlaneseq
  %v3097 = vshrl.u32 %v3096, 7
  %v3098 = vsub.s32 %v3095, %v3097
  %v3099 = vrot.slane %v3085, %v3098
  %v3100 = vcombine.high %v3076, 0.0
  %v3101 = vcombine.high %v3083, 0.0
  %v3102 = vcombine.high %v3092, 0.0
  %v3103 = vcombine.high %v3099, 0.0
  %v3104 = vcombine.low %v3013, %v3027
  %v3105 = vcombine.high %v3013, %v3027
  %v3107 = vunpack.c.l.s4 1983009808
  %v3108 = vunpack.c.0.s8 %v3107
  %v3109 = vlaneseq
  %v3110 = vshrl.u32 %v3109, 7
  %v3111 = vsub.s32 %v3108, %v3110
  %v3112 = vrot.slane %v3104, %v3111
  %v3114 = vunpack.c.l.s4 1983009808
  %v3115 = vunpack.c.0.s8 %v3114
  %v3116 = vlaneseq
  %v3117 = vshrl.u32 %v3116, 7
  %v3118 = vsub.s32 %v3115, %v3117
  %v3119 = vrot.slane %v3105, %v3118
  %v3120 = vcombine.low %v3021, %v3033
  %v3121 = vcombine.high %v3021, %v3033
  %v3123 = vunpack.c.l.s4 1983009808
  %v3124 = vunpack.c.0.s8 %v3123
  %v3125 = vlaneseq
  %v3126 = vshrl.u32 %v3125, 7
  %v3127 = vsub.s32 %v3124, %v3126
  %v3128 = vrot.slane %v3120, %v3127
  %v3130 = vunpack.c.l.s4 1983009808
  %v3131 = vunpack.c.0.s8 %v3130
  %v3132 = vlaneseq
  %v3133 = vshrl.u32 %v3132, 7
  %v3134 = vsub.s32 %v3131, %v3133
  %v3135 = vrot.slane %v3121, %v3134
  %v3136 = vcombine.low %v3112, %v3128
  %v3137 = vcombine.high %v3112, %v3128
  %v3139 = vunpack.c.l.s4 1934713408
  %v3140 = vunpack.c.0.s8 %v3139
  %v3141 = vlaneseq
  %v3142 = vshrl.u32 %v3141, 7
  %v3143 = vsub.s32 %v3140, %v3142
  %v3144 = vrot.slane %v3136, %v3143
  %v3146 = vunpack.c.l.s4 1934713408
  %v3147 = vunpack.c.0.s8 %v3146
  %v3148 = vlaneseq
  %v3149 = vshrl.u32 %v3148, 7
  %v3150 = vsub.s32 %v3147, %v3149
  %v3151 = vrot.slane %v3137, %v3150
  %v3152 = vcombine.low %v3119, %v3135
  %v3153 = vcombine.high %v3119, %v3135
  %v3155 = vunpack.c.l.s4 1934713408
  %v3156 = vunpack.c.0.s8 %v3155
  %v3157 = vlaneseq
  %v3158 = vshrl.u32 %v3157, 7
  %v3159 = vsub.s32 %v3156, %v3158
  %v3160 = vrot.slane %v3152, %v3159
  %v3162 = vunpack.c.l.s4 1934713408
  %v3163 = vunpack.c.0.s8 %v3162
  %v3164 = vlaneseq
  %v3165 = vshrl.u32 %v3164, 7
  %v3166 = vsub.s32 %v3163, %v3165
  %v3167 = vrot.slane %v3153, %v3166
  %v3168 = vcombine.high %v3144, 0.0
  %v3169 = vcombine.high %v3151, 0.0
  %v3170 = vcombine.high %v3160, 0.0
  %v3171 = vcombine.high %v3167, 0.0
  %v3172 = vcombine.low %v3076, %v3083
  %v3174 = vunpack.c.l.s4 1983009808
  %v3175 = vunpack.c.0.s8 %v3174
  %v3176 = vlaneseq
  %v3177 = vshrl.u32 %v3176, 7
  %v3178 = vsub.s32 %v3175, %v3177
  %v3179 = vrot.slane %v3172, %v3178
  %v3180 = vcombine.low %v3100, %v3101
  %v3182 = vunpack.c.l.s4 1983009808
  %v3183 = vunpack.c.0.s8 %v3182
  %v3184 = vlaneseq
  %v3185 = vshrl.u32 %v3184, 7
  %v3186 = vsub.s32 %v3183, %v3185
  %v3187 = vrot.slane %v3180, %v3186
  %v3188 = vcombine.low %v3092, %v3099
  %v3190 = vunpack.c.l.s4 1983009808
  %v3191 = vunpack.c.0.s8 %v3190
  %v3192 = vlaneseq
  %v3193 = vshrl.u32 %v3192, 7
  %v3194 = vsub.s32 %v3191, %v3193
  %v3195 = vrot.slane %v3188, %v3194
  %v3196 = vcombine.low %v3102, %v3103
  %v3198 = vunpack.c.l.s4 1983009808
  %v3199 = vunpack.c.0.s8 %v3198
  %v3200 = vlaneseq
  %v3201 = vshrl.u32 %v3200, 7
  %v3202 = vsub.s32 %v3199, %v3201
  %v3203 = vrot.slane %v3196, %v3202
  %v3204 = vcombine.low %v3179, %v3187
  %v3205 = vcombine.high %v3179, %v3187
  %v3207 = vunpack.c.l.s4 1934713408
  %v3208 = vunpack.c.0.s8 %v3207
  %v3209 = vlaneseq
  %v3210 = vshrl.u32 %v3209, 7
  %v3211 = vsub.s32 %v3208, %v3210
  %v3212 = vrot.slane %v3204, %v3211
  %v3214 = vunpack.c.l.s4 1934713408
  %v3215 = vunpack.c.0.s8 %v3214
  %v3216 = vlaneseq
  %v3217 = vshrl.u32 %v3216, 7
  %v3218 = vsub.s32 %v3215, %v3217
  %v3219 = vrot.slane %v3205, %v3218
  %v3220 = vcombine.low %v3195, %v3203
  %v3221 = vcombine.high %v3195, %v3203
  %v3223 = vunpack.c.l.s4 1934713408
  %v3224 = vunpack.c.0.s8 %v3223
  %v3225 = vlaneseq
  %v3226 = vshrl.u32 %v3225, 7
  %v3227 = vsub.s32 %v3224, %v3226
  %v3228 = vrot.slane %v3220, %v3227
  %v3230 = vunpack.c.l.s4 1934713408
  %v3231 = vunpack.c.0.s8 %v3230
  %v3232 = vlaneseq
  %v3233 = vshrl.u32 %v3232, 7
  %v3234 = vsub.s32 %v3231, %v3233
  %v3235 = vrot.slane %v3221, %v3234
  %v3236 = vcombine.low %v3212, %v3228
  %v3237 = vcombine.high %v3212, %v3228
  %v3238 = vcombine.low %v3219, %v3235
  %v3239 = vcombine.high %v3219, %v3235
  %v3240 = vcombine.low %v3144, %v3151
  %v3242 = vunpack.c.l.s4 1983009808
  %v3243 = vunpack.c.0.s8 %v3242
  %v3244 = vlaneseq
  %v3245 = vshrl.u32 %v3244, 7
  %v3246 = vsub.s32 %v3243, %v3245
  %v3247 = vrot.slane %v3240, %v3246
  %v3248 = vcombine.low %v3168, %v3169
  %v3250 = vunpack.c.l.s4 1983009808
  %v3251 = vunpack.c.0.s8 %v3250
  %v3252 = vlaneseq
  %v3253 = vshrl.u32 %v3252, 7
  %v3254 = vsub.s32 %v3251, %v3253
  %v3255 = vrot.slane %v3248, %v3254
  %v3256 = vcombine.low %v3160, %v3167
  %v3258 = vunpack.c.l.s4 1983009808
  %v3259 = vunpack.c.0.s8 %v3258
  %v3260 = vlaneseq
  %v3261 = vshrl.u32 %v3260, 7
  %v3262 = vsub.s32 %v3259, %v3261
  %v3263 = vrot.slane %v3256, %v3262
  %v3264 = vcombine.low %v3170, %v3171
  %v3266 = vunpack.c.l.s4 1983009808
  %v3267 = vunpack.c.0.s8 %v3266
  %v3268 = vlaneseq
  %v3269 = vshrl.u32 %v3268, 7
  %v3270 = vsub.s32 %v3267, %v3269
  %v3271 = vrot.slane %v3264, %v3270
  %v3272 = vcombine.low %v3247, %v3255
  %v3273 = vcombine.high %v3247, %v3255
  %v3275 = vunpack.c.l.s4 1934713408
  %v3276 = vunpack.c.0.s8 %v3275
  %v3277 = vlaneseq
  %v3278 = vshrl.u32 %v3277, 7
  %v3279 = vsub.s32 %v3276, %v3278
  %v3280 = vrot.slane %v3272, %v3279
  %v3282 = vunpack.c.l.s4 1934713408
  %v3283 = vunpack.c.0.s8 %v3282
  %v3284 = vlaneseq
  %v3285 = vshrl.u32 %v3284, 7
  %v3286 = vsub.s32 %v3283, %v3285
  %v3287 = vrot.slane %v3273, %v3286
  %v3288 = vcombine.low %v3263, %v3271
  %v3289 = vcombine.high %v3263, %v3271
  %v3291 = vunpack.c.l.s4 1934713408
  %v3292 = vunpack.c.0.s8 %v3291
  %v3293 = vlaneseq
  %v3294 = vshrl.u32 %v3293, 7
  %v3295 = vsub.s32 %v3292, %v3294
  %v3296 = vrot.slane %v3288, %v3295
  %v3298 = vunpack.c.l.s4 1934713408
  %v3299 = vunpack.c.0.s8 %v3298
  %v3300 = vlaneseq
  %v3301 = vshrl.u32 %v3300, 7
  %v3302 = vsub.s32 %v3299, %v3301
  %v3303 = vrot.slane %v3289, %v3302
  %v3304 = vcombine.low %v3280, %v3296
  %v3305 = vcombine.high %v3280, %v3296
  %v3306 = vcombine.low %v3287, %v3303
  %v3307 = vcombine.high %v3287, %v3303
  %3308 = vrot.lane.b32.xlu0 %v3010, 96
  %v3309 = vpop.permute.xlu0 %3308
  %3310 = vrot.lane.b32.xlu0 %v3013, 96
  %v3311 = vpop.permute.xlu0 %3310
  %3312 = vrot.lane.b32.xlu0 %v3019, 96
  %v3313 = vpop.permute.xlu0 %3312
  %3314 = vrot.lane.b32.xlu0 %v3021, 96
  %v3315 = vpop.permute.xlu0 %3314
  %3316 = vrot.lane.b32.xlu0 %v3025, 96
  %v3317 = vpop.permute.xlu0 %3316
  %3318 = vrot.lane.b32.xlu0 %v3027, 96
  %v3319 = vpop.permute.xlu0 %3318
  %3320 = vrot.lane.b32.xlu0 %v3031, 96
  %v3321 = vpop.permute.xlu0 %3320
  %3322 = vrot.lane.b32.xlu0 %v3033, 96
  %v3323 = vpop.permute.xlu0 %3322
  %v3332 = vcombine.low %v3309, %v3317
  %v3333 = vcombine.high %v3309, %v3317
  %v3335 = vunpack.c.l.s4 1983009808
  %v3336 = vunpack.c.0.s8 %v3335
  %v3337 = vlaneseq
  %v3338 = vshrl.u32 %v3337, 7
  %v3339 = vsub.s32 %v3336, %v3338
  %v3340 = vrot.slane %v3332, %v3339
  %v3342 = vunpack.c.l.s4 1983009808
  %v3343 = vunpack.c.0.s8 %v3342
  %v3344 = vlaneseq
  %v3345 = vshrl.u32 %v3344, 7
  %v3346 = vsub.s32 %v3343, %v3345
  %v3347 = vrot.slane %v3333, %v3346
  %v3348 = vcombine.low %v3313, %v3321
  %v3349 = vcombine.high %v3313, %v3321
  %v3351 = vunpack.c.l.s4 1983009808
  %v3352 = vunpack.c.0.s8 %v3351
  %v3353 = vlaneseq
  %v3354 = vshrl.u32 %v3353, 7
  %v3355 = vsub.s32 %v3352, %v3354
  %v3356 = vrot.slane %v3348, %v3355
  %v3358 = vunpack.c.l.s4 1983009808
  %v3359 = vunpack.c.0.s8 %v3358
  %v3360 = vlaneseq
  %v3361 = vshrl.u32 %v3360, 7
  %v3362 = vsub.s32 %v3359, %v3361
  %v3363 = vrot.slane %v3349, %v3362
  %v3364 = vcombine.low %v3340, %v3356
  %v3365 = vcombine.high %v3340, %v3356
  %v3367 = vunpack.c.l.s4 1934713408
  %v3368 = vunpack.c.0.s8 %v3367
  %v3369 = vlaneseq
  %v3370 = vshrl.u32 %v3369, 7
  %v3371 = vsub.s32 %v3368, %v3370
  %v3372 = vrot.slane %v3364, %v3371
  %v3374 = vunpack.c.l.s4 1934713408
  %v3375 = vunpack.c.0.s8 %v3374
  %v3376 = vlaneseq
  %v3377 = vshrl.u32 %v3376, 7
  %v3378 = vsub.s32 %v3375, %v3377
  %v3379 = vrot.slane %v3365, %v3378
  %v3380 = vcombine.low %v3347, %v3363
  %v3381 = vcombine.high %v3347, %v3363
  %v3383 = vunpack.c.l.s4 1934713408
  %v3384 = vunpack.c.0.s8 %v3383
  %v3385 = vlaneseq
  %v3386 = vshrl.u32 %v3385, 7
  %v3387 = vsub.s32 %v3384, %v3386
  %v3388 = vrot.slane %v3380, %v3387
  %v3390 = vunpack.c.l.s4 1934713408
  %v3391 = vunpack.c.0.s8 %v3390
  %v3392 = vlaneseq
  %v3393 = vshrl.u32 %v3392, 7
  %v3394 = vsub.s32 %v3391, %v3393
  %v3395 = vrot.slane %v3381, %v3394
  %v3396 = vcombine.high %v3372, 0.0
  %v3397 = vcombine.high %v3379, 0.0
  %v3398 = vcombine.high %v3388, 0.0
  %v3399 = vcombine.high %v3395, 0.0
  %v3400 = vcombine.low %v3311, %v3319
  %v3401 = vcombine.high %v3311, %v3319
  %v3403 = vunpack.c.l.s4 1983009808
  %v3404 = vunpack.c.0.s8 %v3403
  %v3405 = vlaneseq
  %v3406 = vshrl.u32 %v3405, 7
  %v3407 = vsub.s32 %v3404, %v3406
  %v3408 = vrot.slane %v3400, %v3407
  %v3410 = vunpack.c.l.s4 1983009808
  %v3411 = vunpack.c.0.s8 %v3410
  %v3412 = vlaneseq
  %v3413 = vshrl.u32 %v3412, 7
  %v3414 = vsub.s32 %v3411, %v3413
  %v3415 = vrot.slane %v3401, %v3414
  %v3416 = vcombine.low %v3315, %v3323
  %v3417 = vcombine.high %v3315, %v3323
  %v3419 = vunpack.c.l.s4 1983009808
  %v3420 = vunpack.c.0.s8 %v3419
  %v3421 = vlaneseq
  %v3422 = vshrl.u32 %v3421, 7
  %v3423 = vsub.s32 %v3420, %v3422
  %v3424 = vrot.slane %v3416, %v3423
  %v3426 = vunpack.c.l.s4 1983009808
  %v3427 = vunpack.c.0.s8 %v3426
  %v3428 = vlaneseq
  %v3429 = vshrl.u32 %v3428, 7
  %v3430 = vsub.s32 %v3427, %v3429
  %v3431 = vrot.slane %v3417, %v3430
  %v3432 = vcombine.low %v3408, %v3424
  %v3433 = vcombine.high %v3408, %v3424
  %v3435 = vunpack.c.l.s4 1934713408
  %v3436 = vunpack.c.0.s8 %v3435
  %v3437 = vlaneseq
  %v3438 = vshrl.u32 %v3437, 7
  %v3439 = vsub.s32 %v3436, %v3438
  %v3440 = vrot.slane %v3432, %v3439
  %v3442 = vunpack.c.l.s4 1934713408
  %v3443 = vunpack.c.0.s8 %v3442
  %v3444 = vlaneseq
  %v3445 = vshrl.u32 %v3444, 7
  %v3446 = vsub.s32 %v3443, %v3445
  %v3447 = vrot.slane %v3433, %v3446
  %v3448 = vcombine.low %v3415, %v3431
  %v3449 = vcombine.high %v3415, %v3431
  %v3451 = vunpack.c.l.s4 1934713408
  %v3452 = vunpack.c.0.s8 %v3451
  %v3453 = vlaneseq
  %v3454 = vshrl.u32 %v3453, 7
  %v3455 = vsub.s32 %v3452, %v3454
  %v3456 = vrot.slane %v3448, %v3455
  %v3458 = vunpack.c.l.s4 1934713408
  %v3459 = vunpack.c.0.s8 %v3458
  %v3460 = vlaneseq
  %v3461 = vshrl.u32 %v3460, 7
  %v3462 = vsub.s32 %v3459, %v3461
  %v3463 = vrot.slane %v3449, %v3462
  %v3464 = vcombine.high %v3440, 0.0
  %v3465 = vcombine.high %v3447, 0.0
  %v3466 = vcombine.high %v3456, 0.0
  %v3467 = vcombine.high %v3463, 0.0
  %v3468 = vcombine.low %v3372, %v3379
  %v3470 = vunpack.c.l.s4 1983009808
  %v3471 = vunpack.c.0.s8 %v3470
  %v3472 = vlaneseq
  %v3473 = vshrl.u32 %v3472, 7
  %v3474 = vsub.s32 %v3471, %v3473
  %v3475 = vrot.slane %v3468, %v3474
  %v3476 = vcombine.low %v3396, %v3397
  %v3478 = vunpack.c.l.s4 1983009808
  %v3479 = vunpack.c.0.s8 %v3478
  %v3480 = vlaneseq
  %v3481 = vshrl.u32 %v3480, 7
  %v3482 = vsub.s32 %v3479, %v3481
  %v3483 = vrot.slane %v3476, %v3482
  %v3484 = vcombine.low %v3388, %v3395
  %v3486 = vunpack.c.l.s4 1983009808
  %v3487 = vunpack.c.0.s8 %v3486
  %v3488 = vlaneseq
  %v3489 = vshrl.u32 %v3488, 7
  %v3490 = vsub.s32 %v3487, %v3489
  %v3491 = vrot.slane %v3484, %v3490
  %v3492 = vcombine.low %v3398, %v3399
  %v3494 = vunpack.c.l.s4 1983009808
  %v3495 = vunpack.c.0.s8 %v3494
  %v3496 = vlaneseq
  %v3497 = vshrl.u32 %v3496, 7
  %v3498 = vsub.s32 %v3495, %v3497
  %v3499 = vrot.slane %v3492, %v3498
  %v3500 = vcombine.low %v3475, %v3483
  %v3501 = vcombine.high %v3475, %v3483
  %v3503 = vunpack.c.l.s4 1934713408
  %v3504 = vunpack.c.0.s8 %v3503
  %v3505 = vlaneseq
  %v3506 = vshrl.u32 %v3505, 7
  %v3507 = vsub.s32 %v3504, %v3506
  %v3508 = vrot.slane %v3500, %v3507
  %v3510 = vunpack.c.l.s4 1934713408
  %v3511 = vunpack.c.0.s8 %v3510
  %v3512 = vlaneseq
  %v3513 = vshrl.u32 %v3512, 7
  %v3514 = vsub.s32 %v3511, %v3513
  %v3515 = vrot.slane %v3501, %v3514
  %v3516 = vcombine.low %v3491, %v3499
  %v3517 = vcombine.high %v3491, %v3499
  %v3519 = vunpack.c.l.s4 1934713408
  %v3520 = vunpack.c.0.s8 %v3519
  %v3521 = vlaneseq
  %v3522 = vshrl.u32 %v3521, 7
  %v3523 = vsub.s32 %v3520, %v3522
  %v3524 = vrot.slane %v3516, %v3523
  %v3526 = vunpack.c.l.s4 1934713408
  %v3527 = vunpack.c.0.s8 %v3526
  %v3528 = vlaneseq
  %v3529 = vshrl.u32 %v3528, 7
  %v3530 = vsub.s32 %v3527, %v3529
  %v3531 = vrot.slane %v3517, %v3530
  %v3532 = vcombine.low %v3508, %v3524
  %v3533 = vcombine.high %v3508, %v3524
  %v3534 = vcombine.low %v3515, %v3531
  %v3535 = vcombine.high %v3515, %v3531
  %v3536 = vcombine.low %v3440, %v3447
  %v3538 = vunpack.c.l.s4 1983009808
  %v3539 = vunpack.c.0.s8 %v3538
  %v3540 = vlaneseq
  %v3541 = vshrl.u32 %v3540, 7
  %v3542 = vsub.s32 %v3539, %v3541
  %v3543 = vrot.slane %v3536, %v3542
  %v3544 = vcombine.low %v3464, %v3465
  %v3546 = vunpack.c.l.s4 1983009808
  %v3547 = vunpack.c.0.s8 %v3546
  %v3548 = vlaneseq
  %v3549 = vshrl.u32 %v3548, 7
  %v3550 = vsub.s32 %v3547, %v3549
  %v3551 = vrot.slane %v3544, %v3550
  %v3552 = vcombine.low %v3456, %v3463
  %v3554 = vunpack.c.l.s4 1983009808
  %v3555 = vunpack.c.0.s8 %v3554
  %v3556 = vlaneseq
  %v3557 = vshrl.u32 %v3556, 7
  %v3558 = vsub.s32 %v3555, %v3557
  %v3559 = vrot.slane %v3552, %v3558
  %v3560 = vcombine.low %v3466, %v3467
  %v3562 = vunpack.c.l.s4 1983009808
  %v3563 = vunpack.c.0.s8 %v3562
  %v3564 = vlaneseq
  %v3565 = vshrl.u32 %v3564, 7
  %v3566 = vsub.s32 %v3563, %v3565
  %v3567 = vrot.slane %v3560, %v3566
  %v3568 = vcombine.low %v3543, %v3551
  %v3569 = vcombine.high %v3543, %v3551
  %v3571 = vunpack.c.l.s4 1934713408
  %v3572 = vunpack.c.0.s8 %v3571
  %v3573 = vlaneseq
  %v3574 = vshrl.u32 %v3573, 7
  %v3575 = vsub.s32 %v3572, %v3574
  %v3576 = vrot.slane %v3568, %v3575
  %v3578 = vunpack.c.l.s4 1934713408
  %v3579 = vunpack.c.0.s8 %v3578
  %v3580 = vlaneseq
  %v3581 = vshrl.u32 %v3580, 7
  %v3582 = vsub.s32 %v3579, %v3581
  %v3583 = vrot.slane %v3569, %v3582
  %v3584 = vcombine.low %v3559, %v3567
  %v3585 = vcombine.high %v3559, %v3567
  %v3587 = vunpack.c.l.s4 1934713408
  %v3588 = vunpack.c.0.s8 %v3587
  %v3589 = vlaneseq
  %v3590 = vshrl.u32 %v3589, 7
  %v3591 = vsub.s32 %v3588, %v3590
  %v3592 = vrot.slane %v3584, %v3591
  %v3594 = vunpack.c.l.s4 1934713408
  %v3595 = vunpack.c.0.s8 %v3594
  %v3596 = vlaneseq
  %v3597 = vshrl.u32 %v3596, 7
  %v3598 = vsub.s32 %v3595, %v3597
  %v3599 = vrot.slane %v3585, %v3598
  %v3600 = vcombine.low %v3576, %v3592
  %v3601 = vcombine.high %v3576, %v3592
  %v3602 = vcombine.low %v3583, %v3599
  %v3603 = vcombine.high %v3583, %v3599
  %3604 = vrot.lane.b32.xlu0 %v3010, 64
  %v3605 = vpop.permute.xlu0 %3604
  %3606 = vrot.lane.b32.xlu0 %v3013, 64
  %v3607 = vpop.permute.xlu0 %3606
  %3608 = vrot.lane.b32.xlu0 %v3019, 64
  %v3609 = vpop.permute.xlu0 %3608
  %3610 = vrot.lane.b32.xlu0 %v3021, 64
  %v3611 = vpop.permute.xlu0 %3610
  %3612 = vrot.lane.b32.xlu0 %v3025, 64
  %v3613 = vpop.permute.xlu0 %3612
  %3614 = vrot.lane.b32.xlu0 %v3027, 64
  %v3615 = vpop.permute.xlu0 %3614
  %3616 = vrot.lane.b32.xlu0 %v3031, 64
  %v3617 = vpop.permute.xlu0 %3616
  %3618 = vrot.lane.b32.xlu0 %v3033, 64
  %v3619 = vpop.permute.xlu0 %3618
  %v3628 = vcombine.low %v3605, %v3613
  %v3629 = vcombine.high %v3605, %v3613
  %v3631 = vunpack.c.l.s4 1983009808
  %v3632 = vunpack.c.0.s8 %v3631
  %v3633 = vlaneseq
  %v3634 = vshrl.u32 %v3633, 7
  %v3635 = vsub.s32 %v3632, %v3634
  %v3636 = vrot.slane %v3628, %v3635
  %v3638 = vunpack.c.l.s4 1983009808
  %v3639 = vunpack.c.0.s8 %v3638
  %v3640 = vlaneseq
  %v3641 = vshrl.u32 %v3640, 7
  %v3642 = vsub.s32 %v3639, %v3641
  %v3643 = vrot.slane %v3629, %v3642
  %v3644 = vcombine.low %v3609, %v3617
  %v3645 = vcombine.high %v3609, %v3617
  %v3647 = vunpack.c.l.s4 1983009808
  %v3648 = vunpack.c.0.s8 %v3647
  %v3649 = vlaneseq
  %v3650 = vshrl.u32 %v3649, 7
  %v3651 = vsub.s32 %v3648, %v3650
  %v3652 = vrot.slane %v3644, %v3651
  %v3654 = vunpack.c.l.s4 1983009808
  %v3655 = vunpack.c.0.s8 %v3654
  %v3656 = vlaneseq
  %v3657 = vshrl.u32 %v3656, 7
  %v3658 = vsub.s32 %v3655, %v3657
  %v3659 = vrot.slane %v3645, %v3658
  %v3660 = vcombine.low %v3636, %v3652
  %v3661 = vcombine.high %v3636, %v3652
  %v3663 = vunpack.c.l.s4 1934713408
  %v3664 = vunpack.c.0.s8 %v3663
  %v3665 = vlaneseq
  %v3666 = vshrl.u32 %v3665, 7
  %v3667 = vsub.s32 %v3664, %v3666
  %v3668 = vrot.slane %v3660, %v3667
  %v3670 = vunpack.c.l.s4 1934713408
  %v3671 = vunpack.c.0.s8 %v3670
  %v3672 = vlaneseq
  %v3673 = vshrl.u32 %v3672, 7
  %v3674 = vsub.s32 %v3671, %v3673
  %v3675 = vrot.slane %v3661, %v3674
  %v3676 = vcombine.low %v3643, %v3659
  %v3677 = vcombine.high %v3643, %v3659
  %v3679 = vunpack.c.l.s4 1934713408
  %v3680 = vunpack.c.0.s8 %v3679
  %v3681 = vlaneseq
  %v3682 = vshrl.u32 %v3681, 7
  %v3683 = vsub.s32 %v3680, %v3682
  %v3684 = vrot.slane %v3676, %v3683
  %v3686 = vunpack.c.l.s4 1934713408
  %v3687 = vunpack.c.0.s8 %v3686
  %v3688 = vlaneseq
  %v3689 = vshrl.u32 %v3688, 7
  %v3690 = vsub.s32 %v3687, %v3689
  %v3691 = vrot.slane %v3677, %v3690
  %v3692 = vcombine.high %v3668, 0.0
  %v3693 = vcombine.high %v3675, 0.0
  %v3694 = vcombine.high %v3684, 0.0
  %v3695 = vcombine.high %v3691, 0.0
  %v3696 = vcombine.low %v3607, %v3615
  %v3697 = vcombine.high %v3607, %v3615
  %v3699 = vunpack.c.l.s4 1983009808
  %v3700 = vunpack.c.0.s8 %v3699
  %v3701 = vlaneseq
  %v3702 = vshrl.u32 %v3701, 7
  %v3703 = vsub.s32 %v3700, %v3702
  %v3704 = vrot.slane %v3696, %v3703
  %v3706 = vunpack.c.l.s4 1983009808
  %v3707 = vunpack.c.0.s8 %v3706
  %v3708 = vlaneseq
  %v3709 = vshrl.u32 %v3708, 7
  %v3710 = vsub.s32 %v3707, %v3709
  %v3711 = vrot.slane %v3697, %v3710
  %v3712 = vcombine.low %v3611, %v3619
  %v3713 = vcombine.high %v3611, %v3619
  %v3715 = vunpack.c.l.s4 1983009808
  %v3716 = vunpack.c.0.s8 %v3715
  %v3717 = vlaneseq
  %v3718 = vshrl.u32 %v3717, 7
  %v3719 = vsub.s32 %v3716, %v3718
  %v3720 = vrot.slane %v3712, %v3719
  %v3722 = vunpack.c.l.s4 1983009808
  %v3723 = vunpack.c.0.s8 %v3722
  %v3724 = vlaneseq
  %v3725 = vshrl.u32 %v3724, 7
  %v3726 = vsub.s32 %v3723, %v3725
  %v3727 = vrot.slane %v3713, %v3726
  %v3728 = vcombine.low %v3704, %v3720
  %v3729 = vcombine.high %v3704, %v3720
  %v3731 = vunpack.c.l.s4 1934713408
  %v3732 = vunpack.c.0.s8 %v3731
  %v3733 = vlaneseq
  %v3734 = vshrl.u32 %v3733, 7
  %v3735 = vsub.s32 %v3732, %v3734
  %v3736 = vrot.slane %v3728, %v3735
  %v3738 = vunpack.c.l.s4 1934713408
  %v3739 = vunpack.c.0.s8 %v3738
  %v3740 = vlaneseq
  %v3741 = vshrl.u32 %v3740, 7
  %v3742 = vsub.s32 %v3739, %v3741
  %v3743 = vrot.slane %v3729, %v3742
  %v3744 = vcombine.low %v3711, %v3727
  %v3745 = vcombine.high %v3711, %v3727
  %v3747 = vunpack.c.l.s4 1934713408
  %v3748 = vunpack.c.0.s8 %v3747
  %v3749 = vlaneseq
  %v3750 = vshrl.u32 %v3749, 7
  %v3751 = vsub.s32 %v3748, %v3750
  %v3752 = vrot.slane %v3744, %v3751
  %v3754 = vunpack.c.l.s4 1934713408
  %v3755 = vunpack.c.0.s8 %v3754
  %v3756 = vlaneseq
  %v3757 = vshrl.u32 %v3756, 7
  %v3758 = vsub.s32 %v3755, %v3757
  %v3759 = vrot.slane %v3745, %v3758
  %v3760 = vcombine.high %v3736, 0.0
  %v3761 = vcombine.high %v3743, 0.0
  %v3762 = vcombine.high %v3752, 0.0
  %v3763 = vcombine.high %v3759, 0.0
  %v3764 = vcombine.low %v3668, %v3675
  %v3766 = vunpack.c.l.s4 1983009808
  %v3767 = vunpack.c.0.s8 %v3766
  %v3768 = vlaneseq
  %v3769 = vshrl.u32 %v3768, 7
  %v3770 = vsub.s32 %v3767, %v3769
  %v3771 = vrot.slane %v3764, %v3770
  %v3772 = vcombine.low %v3692, %v3693
  %v3774 = vunpack.c.l.s4 1983009808
  %v3775 = vunpack.c.0.s8 %v3774
  %v3776 = vlaneseq
  %v3777 = vshrl.u32 %v3776, 7
  %v3778 = vsub.s32 %v3775, %v3777
  %v3779 = vrot.slane %v3772, %v3778
  %v3780 = vcombine.low %v3684, %v3691
  %v3782 = vunpack.c.l.s4 1983009808
  %v3783 = vunpack.c.0.s8 %v3782
  %v3784 = vlaneseq
  %v3785 = vshrl.u32 %v3784, 7
  %v3786 = vsub.s32 %v3783, %v3785
  %v3787 = vrot.slane %v3780, %v3786
  %v3788 = vcombine.low %v3694, %v3695
  %v3790 = vunpack.c.l.s4 1983009808
  %v3791 = vunpack.c.0.s8 %v3790
  %v3792 = vlaneseq
  %v3793 = vshrl.u32 %v3792, 7
  %v3794 = vsub.s32 %v3791, %v3793
  %v3795 = vrot.slane %v3788, %v3794
  %v3796 = vcombine.low %v3771, %v3779
  %v3797 = vcombine.high %v3771, %v3779
  %v3799 = vunpack.c.l.s4 1934713408
  %v3800 = vunpack.c.0.s8 %v3799
  %v3801 = vlaneseq
  %v3802 = vshrl.u32 %v3801, 7
  %v3803 = vsub.s32 %v3800, %v3802
  %v3804 = vrot.slane %v3796, %v3803
  %v3806 = vunpack.c.l.s4 1934713408
  %v3807 = vunpack.c.0.s8 %v3806
  %v3808 = vlaneseq
  %v3809 = vshrl.u32 %v3808, 7
  %v3810 = vsub.s32 %v3807, %v3809
  %v3811 = vrot.slane %v3797, %v3810
  %v3812 = vcombine.low %v3787, %v3795
  %v3813 = vcombine.high %v3787, %v3795
  %v3815 = vunpack.c.l.s4 1934713408
  %v3816 = vunpack.c.0.s8 %v3815
  %v3817 = vlaneseq
  %v3818 = vshrl.u32 %v3817, 7
  %v3819 = vsub.s32 %v3816, %v3818
  %v3820 = vrot.slane %v3812, %v3819
  %v3822 = vunpack.c.l.s4 1934713408
  %v3823 = vunpack.c.0.s8 %v3822
  %v3824 = vlaneseq
  %v3825 = vshrl.u32 %v3824, 7
  %v3826 = vsub.s32 %v3823, %v3825
  %v3827 = vrot.slane %v3813, %v3826
  %v3828 = vcombine.low %v3804, %v3820
  %v3829 = vcombine.high %v3804, %v3820
  %v3830 = vcombine.low %v3811, %v3827
  %v3831 = vcombine.high %v3811, %v3827
  %v3832 = vcombine.low %v3736, %v3743
  %v3834 = vunpack.c.l.s4 1983009808
  %v3835 = vunpack.c.0.s8 %v3834
  %v3836 = vlaneseq
  %v3837 = vshrl.u32 %v3836, 7
  %v3838 = vsub.s32 %v3835, %v3837
  %v3839 = vrot.slane %v3832, %v3838
  %v3840 = vcombine.low %v3760, %v3761
  %v3842 = vunpack.c.l.s4 1983009808
  %v3843 = vunpack.c.0.s8 %v3842
  %v3844 = vlaneseq
  %v3845 = vshrl.u32 %v3844, 7
  %v3846 = vsub.s32 %v3843, %v3845
  %v3847 = vrot.slane %v3840, %v3846
  %v3848 = vcombine.low %v3752, %v3759
  %v3850 = vunpack.c.l.s4 1983009808
  %v3851 = vunpack.c.0.s8 %v3850
  %v3852 = vlaneseq
  %v3853 = vshrl.u32 %v3852, 7
  %v3854 = vsub.s32 %v3851, %v3853
  %v3855 = vrot.slane %v3848, %v3854
  %v3856 = vcombine.low %v3762, %v3763
  %v3858 = vunpack.c.l.s4 1983009808
  %v3859 = vunpack.c.0.s8 %v3858
  %v3860 = vlaneseq
  %v3861 = vshrl.u32 %v3860, 7
  %v3862 = vsub.s32 %v3859, %v3861
  %v3863 = vrot.slane %v3856, %v3862
  %v3864 = vcombine.low %v3839, %v3847
  %v3865 = vcombine.high %v3839, %v3847
  %v3867 = vunpack.c.l.s4 1934713408
  %v3868 = vunpack.c.0.s8 %v3867
  %v3869 = vlaneseq
  %v3870 = vshrl.u32 %v3869, 7
  %v3871 = vsub.s32 %v3868, %v3870
  %v3872 = vrot.slane %v3864, %v3871
  %v3874 = vunpack.c.l.s4 1934713408
  %v3875 = vunpack.c.0.s8 %v3874
  %v3876 = vlaneseq
  %v3877 = vshrl.u32 %v3876, 7
  %v3878 = vsub.s32 %v3875, %v3877
  %v3879 = vrot.slane %v3865, %v3878
  %v3880 = vcombine.low %v3855, %v3863
  %v3881 = vcombine.high %v3855, %v3863
  %v3883 = vunpack.c.l.s4 1934713408
  %v3884 = vunpack.c.0.s8 %v3883
  %v3885 = vlaneseq
  %v3886 = vshrl.u32 %v3885, 7
  %v3887 = vsub.s32 %v3884, %v3886
  %v3888 = vrot.slane %v3880, %v3887
  %v3890 = vunpack.c.l.s4 1934713408
  %v3891 = vunpack.c.0.s8 %v3890
  %v3892 = vlaneseq
  %v3893 = vshrl.u32 %v3892, 7
  %v3894 = vsub.s32 %v3891, %v3893
  %v3895 = vrot.slane %v3881, %v3894
  %v3896 = vcombine.low %v3872, %v3888
  %v3897 = vcombine.high %v3872, %v3888
  %v3898 = vcombine.low %v3879, %v3895
  %v3899 = vcombine.high %v3879, %v3895
  %v3901 = vsel %vm1037, %v3236, 0
  %v3904 = vsel %vm1037, %v3532, 0
  %3906 = vmatprep.subr.mxu0 0.0
  %3907 = vmatpush1.xpose.msra.mxu0 %v3904
  %3908 = vmatprep.subr.mxu0 0.0
  %3909 = vmatpush1.xpose.msra.mxu0 0.0
  %3910 = vmatprep.subr.mxu0 0.0
  %3911 = vmatpush1.xpose.msra.mxu0 0.0
  %3912 = vmatprep.subr.mxu0 0.0
  %3913 = vmatpush1.xpose.msra.mxu0 0.0
  %3914 = vmatprep.subr.mxu0 0.0
  %3915 = vmatpush1.xpose.msra.mxu0 0.0
  %3916 = vmatprep.subr.mxu0 0.0
  %3917 = vmatpush1.xpose.msra.mxu0 0.0
  %3918 = vmatprep.subr.mxu0 0.0
  %3919 = vmatpush1.xpose.msra.mxu0 0.0
  %3920 = vmatprep.subr.mxu0 0.0
  %3921 = vmatpush1.xpose.msra.mxu0 0.0
  %3922 = vmatprep.subr.mxu0 0.0
  %3923 = vmatpush1.xpose.msra.mxu0 0.0
  %3924 = vmatprep.subr.mxu0 0.0
  %3925 = vmatpush1.xpose.msra.mxu0 0.0
  %3926 = vmatprep.subr.mxu0 0.0
  %3927 = vmatpush1.xpose.msra.mxu0 0.0
  %3928 = vmatprep.subr.mxu0 0.0
  %3929 = vmatpush1.xpose.msra.mxu0 0.0
  %3930 = vmatprep.subr.mxu0 0.0
  %3931 = vmatpush1.xpose.msra.mxu0 0.0
  %3932 = vmatprep.subr.mxu0 0.0
  %3933 = vmatpush1.xpose.msra.mxu0 0.0
  %3934 = vmatprep.subr.mxu0 0.0
  %3935 = vmatpush1.xpose.msra.mxu0 0.0
  %3936 = vmatprep.subr.mxu0 0.0
  %3937 = vmatpush1.xpose.msra.mxu0 0.0
  %3938 = vmatprep.subr.mxu0 0.0
  %3939 = vmatpush1.xpose.msra.mxu0 0.0
  %3940 = vmatprep.subr.mxu0 0.0
  %3941 = vmatpush1.xpose.msra.mxu0 0.0
  %3942 = vmatprep.subr.mxu0 0.0
  %3943 = vmatpush1.xpose.msra.mxu0 0.0
  %3944 = vmatprep.subr.mxu0 0.0
  %3945 = vmatpush1.xpose.msra.mxu0 0.0
  %3946 = vmatprep.subr.mxu0 0.0
  %3947 = vmatpush1.xpose.msra.mxu0 0.0
  %3948 = vmatprep.subr.mxu0 0.0
  %3949 = vmatpush1.xpose.msra.mxu0 0.0
  %3950 = vmatprep.subr.mxu0 0.0
  %3951 = vmatpush1.xpose.msra.mxu0 0.0
  %3952 = vmatprep.subr.mxu0 0.0
  %3953 = vmatpush1.xpose.msra.mxu0 0.0
  %3954 = vmatprep.subr.mxu0 0.0
  %3955 = vmatpush1.xpose.msra.mxu0 0.0
  %3956 = vmatprep.subr.mxu0 0.0
  %3957 = vmatpush1.xpose.msra.mxu0 0.0
  %3958 = vmatprep.subr.mxu0 0.0
  %3959 = vmatpush1.xpose.msra.mxu0 0.0
  %3960 = vmatprep.subr.mxu0 0.0
  %3961 = vmatpush1.xpose.msra.mxu0 0.0
  %3962 = vmatprep.subr.mxu0 0.0
  %3963 = vmatpush1.xpose.msra.mxu0 0.0
  %3964 = vmatprep.subr.mxu0 0.0
  %3965 = vmatpush1.xpose.msra.mxu0 0.0
  %3966 = vmatprep.subr.mxu0 0.0
  %3967 = vmatpush1.xpose.msra.mxu0 0.0
  %3968 = vmatprep.subr.mxu0 0.0
  %3969 = vmatpush1.xpose.msra.mxu0 0.0
  %3970 = vmatprep.mubr.f32.mxu0 0.0
  %3971 = vmatmul.mubr.f32.gmra.mrb[0].mxu0 %v3901
  %v3972 = vpop.f32.mrb[0].mxu0
  %v3973 = vadd.f32 0.0, %v3972
  %v3974 = vpop.f32.mrb[0].mxu0
  %3975 = vdwg.mxu0
  %v3977 = vsel %vm1037, %v3237, 0
  %v3980 = vsel %vm1037, %v3533, 0
  %3982 = vmatprep.subr.mxu0 0.0
  %3983 = vmatpush1.xpose.msra.mxu0 %v3980
  %3984 = vmatprep.subr.mxu0 0.0
  %3985 = vmatpush1.xpose.msra.mxu0 0.0
  %3986 = vmatprep.subr.mxu0 0.0
  %3987 = vmatpush1.xpose.msra.mxu0 0.0
  %3988 = vmatprep.subr.mxu0 0.0
  %3989 = vmatpush1.xpose.msra.mxu0 0.0
  %3990 = vmatprep.subr.mxu0 0.0
  %3991 = vmatpush1.xpose.msra.mxu0 0.0
  %3992 = vmatprep.subr.mxu0 0.0
  %3993 = vmatpush1.xpose.msra.mxu0 0.0
  %3994 = vmatprep.subr.mxu0 0.0
  %3995 = vmatpush1.xpose.msra.mxu0 0.0
  %3996 = vmatprep.subr.mxu0 0.0
  %3997 = vmatpush1.xpose.msra.mxu0 0.0
  %3998 = vmatprep.subr.mxu0 0.0
  %3999 = vmatpush1.xpose.msra.mxu0 0.0
  %4000 = vmatprep.subr.mxu0 0.0
  %4001 = vmatpush1.xpose.msra.mxu0 0.0
  %4002 = vmatprep.subr.mxu0 0.0
  %4003 = vmatpush1.xpose.msra.mxu0 0.0
  %4004 = vmatprep.subr.mxu0 0.0
  %4005 = vmatpush1.xpose.msra.mxu0 0.0
  %4006 = vmatprep.subr.mxu0 0.0
  %4007 = vmatpush1.xpose.msra.mxu0 0.0
  %4008 = vmatprep.subr.mxu0 0.0
  %4009 = vmatpush1.xpose.msra.mxu0 0.0
  %4010 = vmatprep.subr.mxu0 0.0
  %4011 = vmatpush1.xpose.msra.mxu0 0.0
  %4012 = vmatprep.subr.mxu0 0.0
  %4013 = vmatpush1.xpose.msra.mxu0 0.0
  %4014 = vmatprep.subr.mxu0 0.0
  %4015 = vmatpush1.xpose.msra.mxu0 0.0
  %4016 = vmatprep.subr.mxu0 0.0
  %4017 = vmatpush1.xpose.msra.mxu0 0.0
  %4018 = vmatprep.subr.mxu0 0.0
  %4019 = vmatpush1.xpose.msra.mxu0 0.0
  %4020 = vmatprep.subr.mxu0 0.0
  %4021 = vmatpush1.xpose.msra.mxu0 0.0
  %4022 = vmatprep.subr.mxu0 0.0
  %4023 = vmatpush1.xpose.msra.mxu0 0.0
  %4024 = vmatprep.subr.mxu0 0.0
  %4025 = vmatpush1.xpose.msra.mxu0 0.0
  %4026 = vmatprep.subr.mxu0 0.0
  %4027 = vmatpush1.xpose.msra.mxu0 0.0
  %4028 = vmatprep.subr.mxu0 0.0
  %4029 = vmatpush1.xpose.msra.mxu0 0.0
  %4030 = vmatprep.subr.mxu0 0.0
  %4031 = vmatpush1.xpose.msra.mxu0 0.0
  %4032 = vmatprep.subr.mxu0 0.0
  %4033 = vmatpush1.xpose.msra.mxu0 0.0
  %4034 = vmatprep.subr.mxu0 0.0
  %4035 = vmatpush1.xpose.msra.mxu0 0.0
  %4036 = vmatprep.subr.mxu0 0.0
  %4037 = vmatpush1.xpose.msra.mxu0 0.0
  %4038 = vmatprep.subr.mxu0 0.0
  %4039 = vmatpush1.xpose.msra.mxu0 0.0
  %4040 = vmatprep.subr.mxu0 0.0
  %4041 = vmatpush1.xpose.msra.mxu0 0.0
  %4042 = vmatprep.subr.mxu0 0.0
  %4043 = vmatpush1.xpose.msra.mxu0 0.0
  %4044 = vmatprep.subr.mxu0 0.0
  %4045 = vmatpush1.xpose.msra.mxu0 0.0
  %4046 = vmatprep.mubr.f32.mxu0 0.0
  %4047 = vmatmul.mubr.f32.gmra.mrb[0].mxu0 %v3977
  %v4048 = vpop.f32.mrb[0].mxu0
  %v4049 = vadd.f32 0.0, %v4048
  %v4050 = vpop.f32.mrb[0].mxu0
  %4051 = vdwg.mxu0
  %v4053 = vsel %vm1037, %v3238, 0
  %v4056 = vsel %vm1037, %v3534, 0
  %4058 = vmatprep.subr.mxu0 0.0
  %4059 = vmatpush1.xpose.msra.mxu0 %v4056
  %4060 = vmatprep.subr.mxu0 0.0
  %4061 = vmatpush1.xpose.msra.mxu0 0.0
  %4062 = vmatprep.subr.mxu0 0.0
  %4063 = vmatpush1.xpose.msra.mxu0 0.0
  %4064 = vmatprep.subr.mxu0 0.0
  %4065 = vmatpush1.xpose.msra.mxu0 0.0
  %4066 = vmatprep.subr.mxu0 0.0
  %4067 = vmatpush1.xpose.msra.mxu0 0.0
  %4068 = vmatprep.subr.mxu0 0.0
  %4069 = vmatpush1.xpose.msra.mxu0 0.0
  %4070 = vmatprep.subr.mxu0 0.0
  %4071 = vmatpush1.xpose.msra.mxu0 0.0
  %4072 = vmatprep.subr.mxu0 0.0
  %4073 = vmatpush1.xpose.msra.mxu0 0.0
  %4074 = vmatprep.subr.mxu0 0.0
  %4075 = vmatpush1.xpose.msra.mxu0 0.0
  %4076 = vmatprep.subr.mxu0 0.0
  %4077 = vmatpush1.xpose.msra.mxu0 0.0
  %4078 = vmatprep.subr.mxu0 0.0
  %4079 = vmatpush1.xpose.msra.mxu0 0.0
  %4080 = vmatprep.subr.mxu0 0.0
  %4081 = vmatpush1.xpose.msra.mxu0 0.0
  %4082 = vmatprep.subr.mxu0 0.0
  %4083 = vmatpush1.xpose.msra.mxu0 0.0
  %4084 = vmatprep.subr.mxu0 0.0
  %4085 = vmatpush1.xpose.msra.mxu0 0.0
  %4086 = vmatprep.subr.mxu0 0.0
  %4087 = vmatpush1.xpose.msra.mxu0 0.0
  %4088 = vmatprep.subr.mxu0 0.0
  %4089 = vmatpush1.xpose.msra.mxu0 0.0
  %4090 = vmatprep.subr.mxu0 0.0
  %4091 = vmatpush1.xpose.msra.mxu0 0.0
  %4092 = vmatprep.subr.mxu0 0.0
  %4093 = vmatpush1.xpose.msra.mxu0 0.0
  %4094 = vmatprep.subr.mxu0 0.0
  %4095 = vmatpush1.xpose.msra.mxu0 0.0
  %4096 = vmatprep.subr.mxu0 0.0
  %4097 = vmatpush1.xpose.msra.mxu0 0.0
  %4098 = vmatprep.subr.mxu0 0.0
  %4099 = vmatpush1.xpose.msra.mxu0 0.0
  %4100 = vmatprep.subr.mxu0 0.0
  %4101 = vmatpush1.xpose.msra.mxu0 0.0
  %4102 = vmatprep.subr.mxu0 0.0
  %4103 = vmatpush1.xpose.msra.mxu0 0.0
  %4104 = vmatprep.subr.mxu0 0.0
  %4105 = vmatpush1.xpose.msra.mxu0 0.0
  %4106 = vmatprep.subr.mxu0 0.0
  %4107 = vmatpush1.xpose.msra.mxu0 0.0
  %4108 = vmatprep.subr.mxu0 0.0
  %4109 = vmatpush1.xpose.msra.mxu0 0.0
  %4110 = vmatprep.subr.mxu0 0.0
  %4111 = vmatpush1.xpose.msra.mxu0 0.0
  %4112 = vmatprep.subr.mxu0 0.0
  %4113 = vmatpush1.xpose.msra.mxu0 0.0
  %4114 = vmatprep.subr.mxu0 0.0
  %4115 = vmatpush1.xpose.msra.mxu0 0.0
  %4116 = vmatprep.subr.mxu0 0.0
  %4117 = vmatpush1.xpose.msra.mxu0 0.0
  %4118 = vmatprep.subr.mxu0 0.0
  %4119 = vmatpush1.xpose.msra.mxu0 0.0
  %4120 = vmatprep.subr.mxu0 0.0
  %4121 = vmatpush1.xpose.msra.mxu0 0.0
  %4122 = vmatprep.mubr.f32.mxu0 0.0
  %4123 = vmatmul.mubr.f32.gmra.mrb[0].mxu0 %v4053
  %v4124 = vpop.f32.mrb[0].mxu0
  %v4125 = vadd.f32 0.0, %v4124
  %v4126 = vpop.f32.mrb[0].mxu0
  %4127 = vdwg.mxu0
  %v4129 = vsel %vm1037, %v3239, 0
  %v4132 = vsel %vm1037, %v3535, 0
  %4134 = vmatprep.subr.mxu0 0.0
  %4135 = vmatpush1.xpose.msra.mxu0 %v4132
  %4136 = vmatprep.subr.mxu0 0.0
  %4137 = vmatpush1.xpose.msra.mxu0 0.0
  %4138 = vmatprep.subr.mxu0 0.0
  %4139 = vmatpush1.xpose.msra.mxu0 0.0
  %4140 = vmatprep.subr.mxu0 0.0
  %4141 = vmatpush1.xpose.msra.mxu0 0.0
  %4142 = vmatprep.subr.mxu0 0.0
  %4143 = vmatpush1.xpose.msra.mxu0 0.0
  %4144 = vmatprep.subr.mxu0 0.0
  %4145 = vmatpush1.xpose.msra.mxu0 0.0
  %4146 = vmatprep.subr.mxu0 0.0
  %4147 = vmatpush1.xpose.msra.mxu0 0.0
  %4148 = vmatprep.subr.mxu0 0.0
  %4149 = vmatpush1.xpose.msra.mxu0 0.0
  %4150 = vmatprep.subr.mxu0 0.0
  %4151 = vmatpush1.xpose.msra.mxu0 0.0
  %4152 = vmatprep.subr.mxu0 0.0
  %4153 = vmatpush1.xpose.msra.mxu0 0.0
  %4154 = vmatprep.subr.mxu0 0.0
  %4155 = vmatpush1.xpose.msra.mxu0 0.0
  %4156 = vmatprep.subr.mxu0 0.0
  %4157 = vmatpush1.xpose.msra.mxu0 0.0
  %4158 = vmatprep.subr.mxu0 0.0
  %4159 = vmatpush1.xpose.msra.mxu0 0.0
  %4160 = vmatprep.subr.mxu0 0.0
  %4161 = vmatpush1.xpose.msra.mxu0 0.0
  %4162 = vmatprep.subr.mxu0 0.0
  %4163 = vmatpush1.xpose.msra.mxu0 0.0
  %4164 = vmatprep.subr.mxu0 0.0
  %4165 = vmatpush1.xpose.msra.mxu0 0.0
  %4166 = vmatprep.subr.mxu0 0.0
  %4167 = vmatpush1.xpose.msra.mxu0 0.0
  %4168 = vmatprep.subr.mxu0 0.0
  %4169 = vmatpush1.xpose.msra.mxu0 0.0
  %4170 = vmatprep.subr.mxu0 0.0
  %4171 = vmatpush1.xpose.msra.mxu0 0.0
  %4172 = vmatprep.subr.mxu0 0.0
  %4173 = vmatpush1.xpose.msra.mxu0 0.0
  %4174 = vmatprep.subr.mxu0 0.0
  %4175 = vmatpush1.xpose.msra.mxu0 0.0
  %4176 = vmatprep.subr.mxu0 0.0
  %4177 = vmatpush1.xpose.msra.mxu0 0.0
  %4178 = vmatprep.subr.mxu0 0.0
  %4179 = vmatpush1.xpose.msra.mxu0 0.0
  %4180 = vmatprep.subr.mxu0 0.0
  %4181 = vmatpush1.xpose.msra.mxu0 0.0
  %4182 = vmatprep.subr.mxu0 0.0
  %4183 = vmatpush1.xpose.msra.mxu0 0.0
  %4184 = vmatprep.subr.mxu0 0.0
  %4185 = vmatpush1.xpose.msra.mxu0 0.0
  %4186 = vmatprep.subr.mxu0 0.0
  %4187 = vmatpush1.xpose.msra.mxu0 0.0
  %4188 = vmatprep.subr.mxu0 0.0
  %4189 = vmatpush1.xpose.msra.mxu0 0.0
  %4190 = vmatprep.subr.mxu0 0.0
  %4191 = vmatpush1.xpose.msra.mxu0 0.0
  %4192 = vmatprep.subr.mxu0 0.0
  %4193 = vmatpush1.xpose.msra.mxu0 0.0
  %4194 = vmatprep.subr.mxu0 0.0
  %4195 = vmatpush1.xpose.msra.mxu0 0.0
  %4196 = vmatprep.subr.mxu0 0.0
  %4197 = vmatpush1.xpose.msra.mxu0 0.0
  %4198 = vmatprep.mubr.f32.mxu0 0.0
  %4199 = vmatmul.mubr.f32.gmra.mrb[0].mxu0 %v4129
  %v4200 = vpop.f32.mrb[0].mxu0
  %v4201 = vadd.f32 0.0, %v4200
  %v4202 = vpop.f32.mrb[0].mxu0
  %4203 = vdwg.mxu0
  %v4205 = vsel %vm1037, %v3304, 0
  %v4208 = vsel %vm1037, %v3600, 0
  %4210 = vmatprep.subr.mxu0 0.0
  %4211 = vmatpush1.xpose.msra.mxu0 %v4208
  %4212 = vmatprep.subr.mxu0 0.0
  %4213 = vmatpush1.xpose.msra.mxu0 0.0
  %4214 = vmatprep.subr.mxu0 0.0
  %4215 = vmatpush1.xpose.msra.mxu0 0.0
  %4216 = vmatprep.subr.mxu0 0.0
  %4217 = vmatpush1.xpose.msra.mxu0 0.0
  %4218 = vmatprep.subr.mxu0 0.0
  %4219 = vmatpush1.xpose.msra.mxu0 0.0
  %4220 = vmatprep.subr.mxu0 0.0
  %4221 = vmatpush1.xpose.msra.mxu0 0.0
  %4222 = vmatprep.subr.mxu0 0.0
  %4223 = vmatpush1.xpose.msra.mxu0 0.0
  %4224 = vmatprep.subr.mxu0 0.0
  %4225 = vmatpush1.xpose.msra.mxu0 0.0
  %4226 = vmatprep.subr.mxu0 0.0
  %4227 = vmatpush1.xpose.msra.mxu0 0.0
  %4228 = vmatprep.subr.mxu0 0.0
  %4229 = vmatpush1.xpose.msra.mxu0 0.0
  %4230 = vmatprep.subr.mxu0 0.0
  %4231 = vmatpush1.xpose.msra.mxu0 0.0
  %4232 = vmatprep.subr.mxu0 0.0
  %4233 = vmatpush1.xpose.msra.mxu0 0.0
  %4234 = vmatprep.subr.mxu0 0.0
  %4235 = vmatpush1.xpose.msra.mxu0 0.0
  %4236 = vmatprep.subr.mxu0 0.0
  %4237 = vmatpush1.xpose.msra.mxu0 0.0
  %4238 = vmatprep.subr.mxu0 0.0
  %4239 = vmatpush1.xpose.msra.mxu0 0.0
  %4240 = vmatprep.subr.mxu0 0.0
  %4241 = vmatpush1.xpose.msra.mxu0 0.0
  %4242 = vmatprep.subr.mxu0 0.0
  %4243 = vmatpush1.xpose.msra.mxu0 0.0
  %4244 = vmatprep.subr.mxu0 0.0
  %4245 = vmatpush1.xpose.msra.mxu0 0.0
  %4246 = vmatprep.subr.mxu0 0.0
  %4247 = vmatpush1.xpose.msra.mxu0 0.0
  %4248 = vmatprep.subr.mxu0 0.0
  %4249 = vmatpush1.xpose.msra.mxu0 0.0
  %4250 = vmatprep.subr.mxu0 0.0
  %4251 = vmatpush1.xpose.msra.mxu0 0.0
  %4252 = vmatprep.subr.mxu0 0.0
  %4253 = vmatpush1.xpose.msra.mxu0 0.0
  %4254 = vmatprep.subr.mxu0 0.0
  %4255 = vmatpush1.xpose.msra.mxu0 0.0
  %4256 = vmatprep.subr.mxu0 0.0
  %4257 = vmatpush1.xpose.msra.mxu0 0.0
  %4258 = vmatprep.subr.mxu0 0.0
  %4259 = vmatpush1.xpose.msra.mxu0 0.0
  %4260 = vmatprep.subr.mxu0 0.0
  %4261 = vmatpush1.xpose.msra.mxu0 0.0
  %4262 = vmatprep.subr.mxu0 0.0
  %4263 = vmatpush1.xpose.msra.mxu0 0.0
  %4264 = vmatprep.subr.mxu0 0.0
  %4265 = vmatpush1.xpose.msra.mxu0 0.0
  %4266 = vmatprep.subr.mxu0 0.0
  %4267 = vmatpush1.xpose.msra.mxu0 0.0
  %4268 = vmatprep.subr.mxu0 0.0
  %4269 = vmatpush1.xpose.msra.mxu0 0.0
  %4270 = vmatprep.subr.mxu0 0.0
  %4271 = vmatpush1.xpose.msra.mxu0 0.0
  %4272 = vmatprep.subr.mxu0 0.0
  %4273 = vmatpush1.xpose.msra.mxu0 0.0
  %4274 = vmatprep.mubr.f32.mxu0 0.0
  %4275 = vmatmul.mubr.f32.gmra.mrb[0].mxu0 %v4205
  %v4276 = vpop.f32.mrb[0].mxu0
  %v4277 = vadd.f32 0.0, %v4276
  %v4278 = vpop.f32.mrb[0].mxu0
  %4279 = vdwg.mxu0
  %v4281 = vsel %vm1037, %v3305, 0
  %v4284 = vsel %vm1037, %v3601, 0
  %4286 = vmatprep.subr.mxu0 0.0
  %4287 = vmatpush1.xpose.msra.mxu0 %v4284
  %4288 = vmatprep.subr.mxu0 0.0
  %4289 = vmatpush1.xpose.msra.mxu0 0.0
  %4290 = vmatprep.subr.mxu0 0.0
  %4291 = vmatpush1.xpose.msra.mxu0 0.0
  %4292 = vmatprep.subr.mxu0 0.0
  %4293 = vmatpush1.xpose.msra.mxu0 0.0
  %4294 = vmatprep.subr.mxu0 0.0
  %4295 = vmatpush1.xpose.msra.mxu0 0.0
  %4296 = vmatprep.subr.mxu0 0.0
  %4297 = vmatpush1.xpose.msra.mxu0 0.0
  %4298 = vmatprep.subr.mxu0 0.0
  %4299 = vmatpush1.xpose.msra.mxu0 0.0
  %4300 = vmatprep.subr.mxu0 0.0
  %4301 = vmatpush1.xpose.msra.mxu0 0.0
  %4302 = vmatprep.subr.mxu0 0.0
  %4303 = vmatpush1.xpose.msra.mxu0 0.0
  %4304 = vmatprep.subr.mxu0 0.0
  %4305 = vmatpush1.xpose.msra.mxu0 0.0
  %4306 = vmatprep.subr.mxu0 0.0
  %4307 = vmatpush1.xpose.msra.mxu0 0.0
  %4308 = vmatprep.subr.mxu0 0.0
  %4309 = vmatpush1.xpose.msra.mxu0 0.0
  %4310 = vmatprep.subr.mxu0 0.0
  %4311 = vmatpush1.xpose.msra.mxu0 0.0
  %4312 = vmatprep.subr.mxu0 0.0
  %4313 = vmatpush1.xpose.msra.mxu0 0.0
  %4314 = vmatprep.subr.mxu0 0.0
  %4315 = vmatpush1.xpose.msra.mxu0 0.0
  %4316 = vmatprep.subr.mxu0 0.0
  %4317 = vmatpush1.xpose.msra.mxu0 0.0
  %4318 = vmatprep.subr.mxu0 0.0
  %4319 = vmatpush1.xpose.msra.mxu0 0.0
  %4320 = vmatprep.subr.mxu0 0.0
  %4321 = vmatpush1.xpose.msra.mxu0 0.0
  %4322 = vmatprep.subr.mxu0 0.0
  %4323 = vmatpush1.xpose.msra.mxu0 0.0
  %4324 = vmatprep.subr.mxu0 0.0
  %4325 = vmatpush1.xpose.msra.mxu0 0.0
  %4326 = vmatprep.subr.mxu0 0.0
  %4327 = vmatpush1.xpose.msra.mxu0 0.0
  %4328 = vmatprep.subr.mxu0 0.0
  %4329 = vmatpush1.xpose.msra.mxu0 0.0
  %4330 = vmatprep.subr.mxu0 0.0
  %4331 = vmatpush1.xpose.msra.mxu0 0.0
  %4332 = vmatprep.subr.mxu0 0.0
  %4333 = vmatpush1.xpose.msra.mxu0 0.0
  %4334 = vmatprep.subr.mxu0 0.0
  %4335 = vmatpush1.xpose.msra.mxu0 0.0
  %4336 = vmatprep.subr.mxu0 0.0
  %4337 = vmatpush1.xpose.msra.mxu0 0.0
  %4338 = vmatprep.subr.mxu0 0.0
  %4339 = vmatpush1.xpose.msra.mxu0 0.0
  %4340 = vmatprep.subr.mxu0 0.0
  %4341 = vmatpush1.xpose.msra.mxu0 0.0
  %4342 = vmatprep.subr.mxu0 0.0
  %4343 = vmatpush1.xpose.msra.mxu0 0.0
  %4344 = vmatprep.subr.mxu0 0.0
  %4345 = vmatpush1.xpose.msra.mxu0 0.0
  %4346 = vmatprep.subr.mxu0 0.0
  %4347 = vmatpush1.xpose.msra.mxu0 0.0
  %4348 = vmatprep.subr.mxu0 0.0
  %4349 = vmatpush1.xpose.msra.mxu0 0.0
  %4350 = vmatprep.mubr.f32.mxu0 0.0
  %4351 = vmatmul.mubr.f32.gmra.mrb[0].mxu0 %v4281
  %v4352 = vpop.f32.mrb[0].mxu0
  %v4353 = vadd.f32 0.0, %v4352
  %v4354 = vpop.f32.mrb[0].mxu0
  %4355 = vdwg.mxu0
  %v4357 = vsel %vm1037, %v3306, 0
  %v4360 = vsel %vm1037, %v3602, 0
  %4362 = vmatprep.subr.mxu0 0.0
  %4363 = vmatpush1.xpose.msra.mxu0 %v4360
  %4364 = vmatprep.subr.mxu0 0.0
  %4365 = vmatpush1.xpose.msra.mxu0 0.0
  %4366 = vmatprep.subr.mxu0 0.0
  %4367 = vmatpush1.xpose.msra.mxu0 0.0
  %4368 = vmatprep.subr.mxu0 0.0
  %4369 = vmatpush1.xpose.msra.mxu0 0.0
  %4370 = vmatprep.subr.mxu0 0.0
  %4371 = vmatpush1.xpose.msra.mxu0 0.0
  %4372 = vmatprep.subr.mxu0 0.0
  %4373 = vmatpush1.xpose.msra.mxu0 0.0
  %4374 = vmatprep.subr.mxu0 0.0
  %4375 = vmatpush1.xpose.msra.mxu0 0.0
  %4376 = vmatprep.subr.mxu0 0.0
  %4377 = vmatpush1.xpose.msra.mxu0 0.0
  %4378 = vmatprep.subr.mxu0 0.0
  %4379 = vmatpush1.xpose.msra.mxu0 0.0
  %4380 = vmatprep.subr.mxu0 0.0
  %4381 = vmatpush1.xpose.msra.mxu0 0.0
  %4382 = vmatprep.subr.mxu0 0.0
  %4383 = vmatpush1.xpose.msra.mxu0 0.0
  %4384 = vmatprep.subr.mxu0 0.0
  %4385 = vmatpush1.xpose.msra.mxu0 0.0
  %4386 = vmatprep.subr.mxu0 0.0
  %4387 = vmatpush1.xpose.msra.mxu0 0.0
  %4388 = vmatprep.subr.mxu0 0.0
  %4389 = vmatpush1.xpose.msra.mxu0 0.0
  %4390 = vmatprep.subr.mxu0 0.0
  %4391 = vmatpush1.xpose.msra.mxu0 0.0
  %4392 = vmatprep.subr.mxu0 0.0
  %4393 = vmatpush1.xpose.msra.mxu0 0.0
  %4394 = vmatprep.subr.mxu0 0.0
  %4395 = vmatpush1.xpose.msra.mxu0 0.0
  %4396 = vmatprep.subr.mxu0 0.0
  %4397 = vmatpush1.xpose.msra.mxu0 0.0
  %4398 = vmatprep.subr.mxu0 0.0
  %4399 = vmatpush1.xpose.msra.mxu0 0.0
  %4400 = vmatprep.subr.mxu0 0.0
  %4401 = vmatpush1.xpose.msra.mxu0 0.0
  %4402 = vmatprep.subr.mxu0 0.0
  %4403 = vmatpush1.xpose.msra.mxu0 0.0
  %4404 = vmatprep.subr.mxu0 0.0
  %4405 = vmatpush1.xpose.msra.mxu0 0.0
  %4406 = vmatprep.subr.mxu0 0.0
  %4407 = vmatpush1.xpose.msra.mxu0 0.0
  %4408 = vmatprep.subr.mxu0 0.0
  %4409 = vmatpush1.xpose.msra.mxu0 0.0
  %4410 = vmatprep.subr.mxu0 0.0
  %4411 = vmatpush1.xpose.msra.mxu0 0.0
  %4412 = vmatprep.subr.mxu0 0.0
  %4413 = vmatpush1.xpose.msra.mxu0 0.0
  %4414 = vmatprep.subr.mxu0 0.0
  %4415 = vmatpush1.xpose.msra.mxu0 0.0
  %4416 = vmatprep.subr.mxu0 0.0
  %4417 = vmatpush1.xpose.msra.mxu0 0.0
  %4418 = vmatprep.subr.mxu0 0.0
  %4419 = vmatpush1.xpose.msra.mxu0 0.0
  %4420 = vmatprep.subr.mxu0 0.0
  %4421 = vmatpush1.xpose.msra.mxu0 0.0
  %4422 = vmatprep.subr.mxu0 0.0
  %4423 = vmatpush1.xpose.msra.mxu0 0.0
  %4424 = vmatprep.subr.mxu0 0.0
  %4425 = vmatpush1.xpose.msra.mxu0 0.0
  %4426 = vmatprep.mubr.f32.mxu0 0.0
  %4427 = vmatmul.mubr.f32.gmra.mrb[0].mxu0 %v4357
  %v4428 = vpop.f32.mrb[0].mxu0
  %v4429 = vadd.f32 0.0, %v4428
  %v4430 = vpop.f32.mrb[0].mxu0
  %4431 = vdwg.mxu0
  %v4433 = vsel %vm1037, %v3307, 0
  %v4436 = vsel %vm1037, %v3603, 0
  %4438 = vmatprep.subr.mxu0 0.0
  %4439 = vmatpush1.xpose.msra.mxu0 %v4436
  %4440 = vmatprep.subr.mxu0 0.0
  %4441 = vmatpush1.xpose.msra.mxu0 0.0
  %4442 = vmatprep.subr.mxu0 0.0
  %4443 = vmatpush1.xpose.msra.mxu0 0.0
  %4444 = vmatprep.subr.mxu0 0.0
  %4445 = vmatpush1.xpose.msra.mxu0 0.0
  %4446 = vmatprep.subr.mxu0 0.0
  %4447 = vmatpush1.xpose.msra.mxu0 0.0
  %4448 = vmatprep.subr.mxu0 0.0
  %4449 = vmatpush1.xpose.msra.mxu0 0.0
  %4450 = vmatprep.subr.mxu0 0.0
  %4451 = vmatpush1.xpose.msra.mxu0 0.0
  %4452 = vmatprep.subr.mxu0 0.0
  %4453 = vmatpush1.xpose.msra.mxu0 0.0
  %4454 = vmatprep.subr.mxu0 0.0
  %4455 = vmatpush1.xpose.msra.mxu0 0.0
  %4456 = vmatprep.subr.mxu0 0.0
  %4457 = vmatpush1.xpose.msra.mxu0 0.0
  %4458 = vmatprep.subr.mxu0 0.0
  %4459 = vmatpush1.xpose.msra.mxu0 0.0
  %4460 = vmatprep.subr.mxu0 0.0
  %4461 = vmatpush1.xpose.msra.mxu0 0.0
  %4462 = vmatprep.subr.mxu0 0.0
  %4463 = vmatpush1.xpose.msra.mxu0 0.0
  %4464 = vmatprep.subr.mxu0 0.0
  %4465 = vmatpush1.xpose.msra.mxu0 0.0
  %4466 = vmatprep.subr.mxu0 0.0
  %4467 = vmatpush1.xpose.msra.mxu0 0.0
  %4468 = vmatprep.subr.mxu0 0.0
  %4469 = vmatpush1.xpose.msra.mxu0 0.0
  %4470 = vmatprep.subr.mxu0 0.0
  %4471 = vmatpush1.xpose.msra.mxu0 0.0
  %4472 = vmatprep.subr.mxu0 0.0
  %4473 = vmatpush1.xpose.msra.mxu0 0.0
  %4474 = vmatprep.subr.mxu0 0.0
  %4475 = vmatpush1.xpose.msra.mxu0 0.0
  %4476 = vmatprep.subr.mxu0 0.0
  %4477 = vmatpush1.xpose.msra.mxu0 0.0
  %4478 = vmatprep.subr.mxu0 0.0
  %4479 = vmatpush1.xpose.msra.mxu0 0.0
  %4480 = vmatprep.subr.mxu0 0.0
  %4481 = vmatpush1.xpose.msra.mxu0 0.0
  %4482 = vmatprep.subr.mxu0 0.0
  %4483 = vmatpush1.xpose.msra.mxu0 0.0
  %4484 = vmatprep.subr.mxu0 0.0
  %4485 = vmatpush1.xpose.msra.mxu0 0.0
  %4486 = vmatprep.subr.mxu0 0.0
  %4487 = vmatpush1.xpose.msra.mxu0 0.0
  %4488 = vmatprep.subr.mxu0 0.0
  %4489 = vmatpush1.xpose.msra.mxu0 0.0
  %4490 = vmatprep.subr.mxu0 0.0
  %4491 = vmatpush1.xpose.msra.mxu0 0.0
  %4492 = vmatprep.subr.mxu0 0.0
  %4493 = vmatpush1.xpose.msra.mxu0 0.0
  %4494 = vmatprep.subr.mxu0 0.0
  %4495 = vmatpush1.xpose.msra.mxu0 0.0
  %4496 = vmatprep.subr.mxu0 0.0
  %4497 = vmatpush1.xpose.msra.mxu0 0.0
  %4498 = vmatprep.subr.mxu0 0.0
  %4499 = vmatpush1.xpose.msra.mxu0 0.0
  %4500 = vmatprep.subr.mxu0 0.0
  %4501 = vmatpush1.xpose.msra.mxu0 0.0
  %4502 = vmatprep.mubr.f32.mxu0 0.0
  %4503 = vmatmul.mubr.f32.gmra.mrb[0].mxu0 %v4433
  %v4504 = vpop.f32.mrb[0].mxu0
  %v4505 = vadd.f32 0.0, %v4504
  %v4506 = vpop.f32.mrb[0].mxu0
  %4507 = vdwg.mxu0
  %v4508 = vmul.f32 %v3973, 0.35355338
  %v4509 = vmul.f32 %v4049, 0.35355338
  %v4510 = vmul.f32 %v4125, 0.35355338
  %v4511 = vmul.f32 %v4201, 0.35355338
  %v4512 = vmul.f32 %v4277, 0.35355338
  %v4513 = vmul.f32 %v4353, 0.35355338
  %v4514 = vmul.f32 %v4429, 0.35355338
  %v4515 = vmul.f32 %v4505, 0.35355338
  %v4516 = vadd.f32 %v4508, %v37
  %v4517 = vadd.f32 %v4509, %v38
  %v4518 = vadd.f32 %v4510, %v39
  %v4519 = vadd.f32 %v4511, %v40
  %v4520 = vadd.f32 %v4512, %v41
  %v4521 = vadd.f32 %v4513, %v42
  %v4522 = vadd.f32 %v4514, %v43
  %v4523 = vadd.f32 %v4515, %v44
  %v4524 = vsel %vm1037, %v4516, -inf
  %4525 = vmax.xlane.f32.xlu0 %v4524
  %v4526 = vpop.xlane.xlu0 %4525
  %v4527 = vsel %vm1037, %v4517, -inf
  %4528 = vmax.xlane.f32.xlu0 %v4527
  %v4529 = vpop.xlane.xlu0 %4528
  %v4530 = vsel %vm1037, %v4518, -inf
  %4531 = vmax.xlane.f32.xlu0 %v4530
  %v4532 = vpop.xlane.xlu0 %4531
  %v4533 = vsel %vm1037, %v4519, -inf
  %4534 = vmax.xlane.f32.xlu0 %v4533
  %v4535 = vpop.xlane.xlu0 %4534
  %v4536 = vsel %vm1037, %v4520, -inf
  %4537 = vmax.xlane.f32.xlu0 %v4536
  %v4538 = vpop.xlane.xlu0 %4537
  %v4539 = vsel %vm1037, %v4521, -inf
  %4540 = vmax.xlane.f32.xlu0 %v4539
  %v4541 = vpop.xlane.xlu0 %4540
  %v4542 = vsel %vm1037, %v4522, -inf
  %4543 = vmax.xlane.f32.xlu0 %v4542
  %v4544 = vpop.xlane.xlu0 %4543
  %v4545 = vsel %vm1037, %v4523, -inf
  %4546 = vmax.xlane.f32.xlu0 %v4545
  %v4547 = vpop.xlane.xlu0 %4546
  %v4548 = vsub.f32 %v4516, %v4526
  %v4549 = vsub.f32 %v4517, %v4529
  %v4550 = vsub.f32 %v4518, %v4532
  %v4551 = vsub.f32 %v4519, %v4535
  %v4552 = vsub.f32 %v4520, %v4538
  %v4553 = vsub.f32 %v4521, %v4541
  %v4554 = vsub.f32 %v4522, %v4544
  %v4555 = vsub.f32 %v4523, %v4547
  %v4556 = vmul.f32 %v4548, 1.442695
  %v4557 = vpow.pop %v4556
  %v4558 = vmul.f32 %v4549, 1.442695
  %v4559 = vpow.pop %v4558
  %v4560 = vmul.f32 %v4550, 1.442695
  %v4561 = vpow.pop %v4560
  %v4562 = vmul.f32 %v4551, 1.442695
  %v4563 = vpow.pop %v4562
  %v4564 = vmul.f32 %v4552, 1.442695
  %v4565 = vpow.pop %v4564
  %v4566 = vmul.f32 %v4553, 1.442695
  %v4567 = vpow.pop %v4566
  %v4568 = vmul.f32 %v4554, 1.442695
  %v4569 = vpow.pop %v4568
  %v4570 = vmul.f32 %v4555, 1.442695
  %v4571 = vpow.pop %v4570
  %v4572 = vsel %vm1037, %v4557, 0.0
  %4573 = vadd.xlane.f32.xlu0 %v4572
  %v4574 = vpop.xlane.xlu0 %4573
  %v4575 = vsel %vm1037, %v4559, 0.0
  %4576 = vadd.xlane.f32.xlu0 %v4575
  %v4577 = vpop.xlane.xlu0 %4576
  %v4578 = vsel %vm1037, %v4561, 0.0
  %4579 = vadd.xlane.f32.xlu0 %v4578
  %v4580 = vpop.xlane.xlu0 %4579
  %v4581 = vsel %vm1037, %v4563, 0.0
  %4582 = vadd.xlane.f32.xlu0 %v4581
  %v4583 = vpop.xlane.xlu0 %4582
  %v4584 = vsel %vm1037, %v4565, 0.0
  %4585 = vadd.xlane.f32.xlu0 %v4584
  %v4586 = vpop.xlane.xlu0 %4585
  %v4587 = vsel %vm1037, %v4567, 0.0
  %4588 = vadd.xlane.f32.xlu0 %v4587
  %v4589 = vpop.xlane.xlu0 %4588
  %v4590 = vsel %vm1037, %v4569, 0.0
  %4591 = vadd.xlane.f32.xlu0 %v4590
  %v4592 = vpop.xlane.xlu0 %4591
  %v4593 = vsel %vm1037, %v4571, 0.0
  %4594 = vadd.xlane.f32.xlu0 %v4593
  %v4595 = vpop.xlane.xlu0 %4594
  %v4596 = vrcp.pop %v4574
  %v4597 = vrcp.pop %v4577
  %v4598 = vrcp.pop %v4580
  %v4599 = vrcp.pop %v4583
  %v4600 = vrcp.pop %v4586
  %v4601 = vrcp.pop %v4589
  %v4602 = vrcp.pop %v4592
  %v4603 = vrcp.pop %v4595
  %v4604 = vmul.f32 %v4557, %v4596
  %v4605 = vmul.f32 %v4559, %v4597
  %v4606 = vmul.f32 %v4561, %v4598
  %v4607 = vmul.f32 %v4563, %v4599
  %v4608 = vmul.f32 %v4565, %v4600
  %v4609 = vmul.f32 %v4567, %v4601
  %v4610 = vmul.f32 %v4569, %v4602
  %v4611 = vmul.f32 %v4571, %v4603
  %v4613 = vsel %vm1037, %v4604, 0
  %4615 = vmatprep.subr.mxu0 0.0
  %4616 = vmatpush1.msra.mxu0 %v3828
  %4617 = vmatprep.subr.mxu0 0.0
  %4618 = vmatpush1.msra.mxu0 0.0
  %4619 = vmatprep.subr.mxu0 0.0
  %4620 = vmatpush1.msra.mxu0 0.0
  %4621 = vmatprep.subr.mxu0 0.0
  %4622 = vmatpush1.msra.mxu0 0.0
  %4623 = vmatprep.subr.mxu0 0.0
  %4624 = vmatpush1.msra.mxu0 0.0
  %4625 = vmatprep.subr.mxu0 0.0
  %4626 = vmatpush1.msra.mxu0 0.0
  %4627 = vmatprep.subr.mxu0 0.0
  %4628 = vmatpush1.msra.mxu0 0.0
  %4629 = vmatprep.subr.mxu0 0.0
  %4630 = vmatpush1.msra.mxu0 0.0
  %4631 = vmatprep.subr.mxu0 0.0
  %4632 = vmatpush1.msra.mxu0 0.0
  %4633 = vmatprep.subr.mxu0 0.0
  %4634 = vmatpush1.msra.mxu0 0.0
  %4635 = vmatprep.subr.mxu0 0.0
  %4636 = vmatpush1.msra.mxu0 0.0
  %4637 = vmatprep.subr.mxu0 0.0
  %4638 = vmatpush1.msra.mxu0 0.0
  %4639 = vmatprep.subr.mxu0 0.0
  %4640 = vmatpush1.msra.mxu0 0.0
  %4641 = vmatprep.subr.mxu0 0.0
  %4642 = vmatpush1.msra.mxu0 0.0
  %4643 = vmatprep.subr.mxu0 0.0
  %4644 = vmatpush1.msra.mxu0 0.0
  %4645 = vmatprep.subr.mxu0 0.0
  %4646 = vmatpush1.msra.mxu0 0.0
  %4647 = vmatprep.subr.mxu0 0.0
  %4648 = vmatpush1.msra.mxu0 0.0
  %4649 = vmatprep.subr.mxu0 0.0
  %4650 = vmatpush1.msra.mxu0 0.0
  %4651 = vmatprep.subr.mxu0 0.0
  %4652 = vmatpush1.msra.mxu0 0.0
  %4653 = vmatprep.subr.mxu0 0.0
  %4654 = vmatpush1.msra.mxu0 0.0
  %4655 = vmatprep.subr.mxu0 0.0
  %4656 = vmatpush1.msra.mxu0 0.0
  %4657 = vmatprep.subr.mxu0 0.0
  %4658 = vmatpush1.msra.mxu0 0.0
  %4659 = vmatprep.subr.mxu0 0.0
  %4660 = vmatpush1.msra.mxu0 0.0
  %4661 = vmatprep.subr.mxu0 0.0
  %4662 = vmatpush1.msra.mxu0 0.0
  %4663 = vmatprep.subr.mxu0 0.0
  %4664 = vmatpush1.msra.mxu0 0.0
  %4665 = vmatprep.subr.mxu0 0.0
  %4666 = vmatpush1.msra.mxu0 0.0
  %4667 = vmatprep.subr.mxu0 0.0
  %4668 = vmatpush1.msra.mxu0 0.0
  %4669 = vmatprep.subr.mxu0 0.0
  %4670 = vmatpush1.msra.mxu0 0.0
  %4671 = vmatprep.subr.mxu0 0.0
  %4672 = vmatpush1.msra.mxu0 0.0
  %4673 = vmatprep.subr.mxu0 0.0
  %4674 = vmatpush1.msra.mxu0 0.0
  %4675 = vmatprep.subr.mxu0 0.0
  %4676 = vmatpush1.msra.mxu0 0.0
  %4677 = vmatprep.subr.mxu0 0.0
  %4678 = vmatpush1.msra.mxu0 0.0
  %4679 = vmatprep.mubr.f32.mxu0 0.0
  %4680 = vmatmul.mubr.f32.gmra.mrb[0].mxu0 %v4613
  %v4681 = vpop.f32.mrb[0].mxu0
  %v4682 = vadd.f32 0.0, %v4681
  %v4683 = vpop.f32.mrb[0].mxu0
  %4684 = vdwg.mxu0
  %v4686 = vsel %vm1037, %v4605, 0
  %4688 = vmatprep.subr.mxu0 0.0
  %4689 = vmatpush1.msra.mxu0 %v3829
  %4690 = vmatprep.subr.mxu0 0.0
  %4691 = vmatpush1.msra.mxu0 0.0
  %4692 = vmatprep.subr.mxu0 0.0
  %4693 = vmatpush1.msra.mxu0 0.0
  %4694 = vmatprep.subr.mxu0 0.0
  %4695 = vmatpush1.msra.mxu0 0.0
  %4696 = vmatprep.subr.mxu0 0.0
  %4697 = vmatpush1.msra.mxu0 0.0
  %4698 = vmatprep.subr.mxu0 0.0
  %4699 = vmatpush1.msra.mxu0 0.0
  %4700 = vmatprep.subr.mxu0 0.0
  %4701 = vmatpush1.msra.mxu0 0.0
  %4702 = vmatprep.subr.mxu0 0.0
  %4703 = vmatpush1.msra.mxu0 0.0
  %4704 = vmatprep.subr.mxu0 0.0
  %4705 = vmatpush1.msra.mxu0 0.0
  %4706 = vmatprep.subr.mxu0 0.0
  %4707 = vmatpush1.msra.mxu0 0.0
  %4708 = vmatprep.subr.mxu0 0.0
  %4709 = vmatpush1.msra.mxu0 0.0
  %4710 = vmatprep.subr.mxu0 0.0
  %4711 = vmatpush1.msra.mxu0 0.0
  %4712 = vmatprep.subr.mxu0 0.0
  %4713 = vmatpush1.msra.mxu0 0.0
  %4714 = vmatprep.subr.mxu0 0.0
  %4715 = vmatpush1.msra.mxu0 0.0
  %4716 = vmatprep.subr.mxu0 0.0
  %4717 = vmatpush1.msra.mxu0 0.0
  %4718 = vmatprep.subr.mxu0 0.0
  %4719 = vmatpush1.msra.mxu0 0.0
  %4720 = vmatprep.subr.mxu0 0.0
  %4721 = vmatpush1.msra.mxu0 0.0
  %4722 = vmatprep.subr.mxu0 0.0
  %4723 = vmatpush1.msra.mxu0 0.0
  %4724 = vmatprep.subr.mxu0 0.0
  %4725 = vmatpush1.msra.mxu0 0.0
  %4726 = vmatprep.subr.mxu0 0.0
  %4727 = vmatpush1.msra.mxu0 0.0
  %4728 = vmatprep.subr.mxu0 0.0
  %4729 = vmatpush1.msra.mxu0 0.0
  %4730 = vmatprep.subr.mxu0 0.0
  %4731 = vmatpush1.msra.mxu0 0.0
  %4732 = vmatprep.subr.mxu0 0.0
  %4733 = vmatpush1.msra.mxu0 0.0
  %4734 = vmatprep.subr.mxu0 0.0
  %4735 = vmatpush1.msra.mxu0 0.0
  %4736 = vmatprep.subr.mxu0 0.0
  %4737 = vmatpush1.msra.mxu0 0.0
  %4738 = vmatprep.subr.mxu0 0.0
  %4739 = vmatpush1.msra.mxu0 0.0
  %4740 = vmatprep.subr.mxu0 0.0
  %4741 = vmatpush1.msra.mxu0 0.0
  %4742 = vmatprep.subr.mxu0 0.0
  %4743 = vmatpush1.msra.mxu0 0.0
  %4744 = vmatprep.subr.mxu0 0.0
  %4745 = vmatpush1.msra.mxu0 0.0
  %4746 = vmatprep.subr.mxu0 0.0
  %4747 = vmatpush1.msra.mxu0 0.0
  %4748 = vmatprep.subr.mxu0 0.0
  %4749 = vmatpush1.msra.mxu0 0.0
  %4750 = vmatprep.subr.mxu0 0.0
  %4751 = vmatpush1.msra.mxu0 0.0
  %4752 = vmatprep.mubr.f32.mxu0 0.0
  %4753 = vmatmul.mubr.f32.gmra.mrb[0].mxu0 %v4686
  %v4754 = vpop.f32.mrb[0].mxu0
  %v4755 = vadd.f32 0.0, %v4754
  %v4756 = vpop.f32.mrb[0].mxu0
  %4757 = vdwg.mxu0
  %v4759 = vsel %vm1037, %v4606, 0
  %4761 = vmatprep.subr.mxu0 0.0
  %4762 = vmatpush1.msra.mxu0 %v3830
  %4763 = vmatprep.subr.mxu0 0.0
  %4764 = vmatpush1.msra.mxu0 0.0
  %4765 = vmatprep.subr.mxu0 0.0
  %4766 = vmatpush1.msra.mxu0 0.0
  %4767 = vmatprep.subr.mxu0 0.0
  %4768 = vmatpush1.msra.mxu0 0.0
  %4769 = vmatprep.subr.mxu0 0.0
  %4770 = vmatpush1.msra.mxu0 0.0
  %4771 = vmatprep.subr.mxu0 0.0
  %4772 = vmatpush1.msra.mxu0 0.0
  %4773 = vmatprep.subr.mxu0 0.0
  %4774 = vmatpush1.msra.mxu0 0.0
  %4775 = vmatprep.subr.mxu0 0.0
  %4776 = vmatpush1.msra.mxu0 0.0
  %4777 = vmatprep.subr.mxu0 0.0
  %4778 = vmatpush1.msra.mxu0 0.0
  %4779 = vmatprep.subr.mxu0 0.0
  %4780 = vmatpush1.msra.mxu0 0.0
  %4781 = vmatprep.subr.mxu0 0.0
  %4782 = vmatpush1.msra.mxu0 0.0
  %4783 = vmatprep.subr.mxu0 0.0
  %4784 = vmatpush1.msra.mxu0 0.0
  %4785 = vmatprep.subr.mxu0 0.0
  %4786 = vmatpush1.msra.mxu0 0.0
  %4787 = vmatprep.subr.mxu0 0.0
  %4788 = vmatpush1.msra.mxu0 0.0
  %4789 = vmatprep.subr.mxu0 0.0
  %4790 = vmatpush1.msra.mxu0 0.0
  %4791 = vmatprep.subr.mxu0 0.0
  %4792 = vmatpush1.msra.mxu0 0.0
  %4793 = vmatprep.subr.mxu0 0.0
  %4794 = vmatpush1.msra.mxu0 0.0
  %4795 = vmatprep.subr.mxu0 0.0
  %4796 = vmatpush1.msra.mxu0 0.0
  %4797 = vmatprep.subr.mxu0 0.0
  %4798 = vmatpush1.msra.mxu0 0.0
  %4799 = vmatprep.subr.mxu0 0.0
  %4800 = vmatpush1.msra.mxu0 0.0
  %4801 = vmatprep.subr.mxu0 0.0
  %4802 = vmatpush1.msra.mxu0 0.0
  %4803 = vmatprep.subr.mxu0 0.0
  %4804 = vmatpush1.msra.mxu0 0.0
  %4805 = vmatprep.subr.mxu0 0.0
  %4806 = vmatpush1.msra.mxu0 0.0
  %4807 = vmatprep.subr.mxu0 0.0
  %4808 = vmatpush1.msra.mxu0 0.0
  %4809 = vmatprep.subr.mxu0 0.0
  %4810 = vmatpush1.msra.mxu0 0.0
  %4811 = vmatprep.subr.mxu0 0.0
  %4812 = vmatpush1.msra.mxu0 0.0
  %4813 = vmatprep.subr.mxu0 0.0
  %4814 = vmatpush1.msra.mxu0 0.0
  %4815 = vmatprep.subr.mxu0 0.0
  %4816 = vmatpush1.msra.mxu0 0.0
  %4817 = vmatprep.subr.mxu0 0.0
  %4818 = vmatpush1.msra.mxu0 0.0
  %4819 = vmatprep.subr.mxu0 0.0
  %4820 = vmatpush1.msra.mxu0 0.0
  %4821 = vmatprep.subr.mxu0 0.0
  %4822 = vmatpush1.msra.mxu0 0.0
  %4823 = vmatprep.subr.mxu0 0.0
  %4824 = vmatpush1.msra.mxu0 0.0
  %4825 = vmatprep.mubr.f32.mxu0 0.0
  %4826 = vmatmul.mubr.f32.gmra.mrb[0].mxu0 %v4759
  %v4827 = vpop.f32.mrb[0].mxu0
  %v4828 = vadd.f32 0.0, %v4827
  %v4829 = vpop.f32.mrb[0].mxu0
  %4830 = vdwg.mxu0
  %v4832 = vsel %vm1037, %v4607, 0
  %4834 = vmatprep.subr.mxu0 0.0
  %4835 = vmatpush1.msra.mxu0 %v3831
  %4836 = vmatprep.subr.mxu0 0.0
  %4837 = vmatpush1.msra.mxu0 0.0
  %4838 = vmatprep.subr.mxu0 0.0
  %4839 = vmatpush1.msra.mxu0 0.0
  %4840 = vmatprep.subr.mxu0 0.0
  %4841 = vmatpush1.msra.mxu0 0.0
  %4842 = vmatprep.subr.mxu0 0.0
  %4843 = vmatpush1.msra.mxu0 0.0
  %4844 = vmatprep.subr.mxu0 0.0
  %4845 = vmatpush1.msra.mxu0 0.0
  %4846 = vmatprep.subr.mxu0 0.0
  %4847 = vmatpush1.msra.mxu0 0.0
  %4848 = vmatprep.subr.mxu0 0.0
  %4849 = vmatpush1.msra.mxu0 0.0
  %4850 = vmatprep.subr.mxu0 0.0
  %4851 = vmatpush1.msra.mxu0 0.0
  %4852 = vmatprep.subr.mxu0 0.0
  %4853 = vmatpush1.msra.mxu0 0.0
  %4854 = vmatprep.subr.mxu0 0.0
  %4855 = vmatpush1.msra.mxu0 0.0
  %4856 = vmatprep.subr.mxu0 0.0
  %4857 = vmatpush1.msra.mxu0 0.0
  %4858 = vmatprep.subr.mxu0 0.0
  %4859 = vmatpush1.msra.mxu0 0.0
  %4860 = vmatprep.subr.mxu0 0.0
  %4861 = vmatpush1.msra.mxu0 0.0
  %4862 = vmatprep.subr.mxu0 0.0
  %4863 = vmatpush1.msra.mxu0 0.0
  %4864 = vmatprep.subr.mxu0 0.0
  %4865 = vmatpush1.msra.mxu0 0.0
  %4866 = vmatprep.subr.mxu0 0.0
  %4867 = vmatpush1.msra.mxu0 0.0
  %4868 = vmatprep.subr.mxu0 0.0
  %4869 = vmatpush1.msra.mxu0 0.0
  %4870 = vmatprep.subr.mxu0 0.0
  %4871 = vmatpush1.msra.mxu0 0.0
  %4872 = vmatprep.subr.mxu0 0.0
  %4873 = vmatpush1.msra.mxu0 0.0
  %4874 = vmatprep.subr.mxu0 0.0
  %4875 = vmatpush1.msra.mxu0 0.0
  %4876 = vmatprep.subr.mxu0 0.0
  %4877 = vmatpush1.msra.mxu0 0.0
  %4878 = vmatprep.subr.mxu0 0.0
  %4879 = vmatpush1.msra.mxu0 0.0
  %4880 = vmatprep.subr.mxu0 0.0
  %4881 = vmatpush1.msra.mxu0 0.0
  %4882 = vmatprep.subr.mxu0 0.0
  %4883 = vmatpush1.msra.mxu0 0.0
  %4884 = vmatprep.subr.mxu0 0.0
  %4885 = vmatpush1.msra.mxu0 0.0
  %4886 = vmatprep.subr.mxu0 0.0
  %4887 = vmatpush1.msra.mxu0 0.0
  %4888 = vmatprep.subr.mxu0 0.0
  %4889 = vmatpush1.msra.mxu0 0.0
  %4890 = vmatprep.subr.mxu0 0.0
  %4891 = vmatpush1.msra.mxu0 0.0
  %4892 = vmatprep.subr.mxu0 0.0
  %4893 = vmatpush1.msra.mxu0 0.0
  %4894 = vmatprep.subr.mxu0 0.0
  %4895 = vmatpush1.msra.mxu0 0.0
  %4896 = vmatprep.subr.mxu0 0.0
  %4897 = vmatpush1.msra.mxu0 0.0
  %4898 = vmatprep.mubr.f32.mxu0 0.0
  %4899 = vmatmul.mubr.f32.gmra.mrb[0].mxu0 %v4832
  %v4900 = vpop.f32.mrb[0].mxu0
  %v4901 = vadd.f32 0.0, %v4900
  %v4902 = vpop.f32.mrb[0].mxu0
  %4903 = vdwg.mxu0
  %v4905 = vsel %vm1037, %v4608, 0
  %4907 = vmatprep.subr.mxu0 0.0
  %4908 = vmatpush1.msra.mxu0 %v3896
  %4909 = vmatprep.subr.mxu0 0.0
  %4910 = vmatpush1.msra.mxu0 0.0
  %4911 = vmatprep.subr.mxu0 0.0
  %4912 = vmatpush1.msra.mxu0 0.0
  %4913 = vmatprep.subr.mxu0 0.0
  %4914 = vmatpush1.msra.mxu0 0.0
  %4915 = vmatprep.subr.mxu0 0.0
  %4916 = vmatpush1.msra.mxu0 0.0
  %4917 = vmatprep.subr.mxu0 0.0
  %4918 = vmatpush1.msra.mxu0 0.0
  %4919 = vmatprep.subr.mxu0 0.0
  %4920 = vmatpush1.msra.mxu0 0.0
  %4921 = vmatprep.subr.mxu0 0.0
  %4922 = vmatpush1.msra.mxu0 0.0
  %4923 = vmatprep.subr.mxu0 0.0
  %4924 = vmatpush1.msra.mxu0 0.0
  %4925 = vmatprep.subr.mxu0 0.0
  %4926 = vmatpush1.msra.mxu0 0.0
  %4927 = vmatprep.subr.mxu0 0.0
  %4928 = vmatpush1.msra.mxu0 0.0
  %4929 = vmatprep.subr.mxu0 0.0
  %4930 = vmatpush1.msra.mxu0 0.0
  %4931 = vmatprep.subr.mxu0 0.0
  %4932 = vmatpush1.msra.mxu0 0.0
  %4933 = vmatprep.subr.mxu0 0.0
  %4934 = vmatpush1.msra.mxu0 0.0
  %4935 = vmatprep.subr.mxu0 0.0
  %4936 = vmatpush1.msra.mxu0 0.0
  %4937 = vmatprep.subr.mxu0 0.0
  %4938 = vmatpush1.msra.mxu0 0.0
  %4939 = vmatprep.subr.mxu0 0.0
  %4940 = vmatpush1.msra.mxu0 0.0
  %4941 = vmatprep.subr.mxu0 0.0
  %4942 = vmatpush1.msra.mxu0 0.0
  %4943 = vmatprep.subr.mxu0 0.0
  %4944 = vmatpush1.msra.mxu0 0.0
  %4945 = vmatprep.subr.mxu0 0.0
  %4946 = vmatpush1.msra.mxu0 0.0
  %4947 = vmatprep.subr.mxu0 0.0
  %4948 = vmatpush1.msra.mxu0 0.0
  %4949 = vmatprep.subr.mxu0 0.0
  %4950 = vmatpush1.msra.mxu0 0.0
  %4951 = vmatprep.subr.mxu0 0.0
  %4952 = vmatpush1.msra.mxu0 0.0
  %4953 = vmatprep.subr.mxu0 0.0
  %4954 = vmatpush1.msra.mxu0 0.0
  %4955 = vmatprep.subr.mxu0 0.0
  %4956 = vmatpush1.msra.mxu0 0.0
  %4957 = vmatprep.subr.mxu0 0.0
  %4958 = vmatpush1.msra.mxu0 0.0
  %4959 = vmatprep.subr.mxu0 0.0
  %4960 = vmatpush1.msra.mxu0 0.0
  %4961 = vmatprep.subr.mxu0 0.0
  %4962 = vmatpush1.msra.mxu0 0.0
  %4963 = vmatprep.subr.mxu0 0.0
  %4964 = vmatpush1.msra.mxu0 0.0
  %4965 = vmatprep.subr.mxu0 0.0
  %4966 = vmatpush1.msra.mxu0 0.0
  %4967 = vmatprep.subr.mxu0 0.0
  %4968 = vmatpush1.msra.mxu0 0.0
  %4969 = vmatprep.subr.mxu0 0.0
  %4970 = vmatpush1.msra.mxu0 0.0
  %4971 = vmatprep.mubr.f32.mxu0 0.0
  %4972 = vmatmul.mubr.f32.gmra.mrb[0].mxu0 %v4905
  %v4973 = vpop.f32.mrb[0].mxu0
  %v4974 = vadd.f32 0.0, %v4973
  %v4975 = vpop.f32.mrb[0].mxu0
  %4976 = vdwg.mxu0
  %v4978 = vsel %vm1037, %v4609, 0
  %4980 = vmatprep.subr.mxu0 0.0
  %4981 = vmatpush1.msra.mxu0 %v3897
  %4982 = vmatprep.subr.mxu0 0.0
  %4983 = vmatpush1.msra.mxu0 0.0
  %4984 = vmatprep.subr.mxu0 0.0
  %4985 = vmatpush1.msra.mxu0 0.0
  %4986 = vmatprep.subr.mxu0 0.0
  %4987 = vmatpush1.msra.mxu0 0.0
  %4988 = vmatprep.subr.mxu0 0.0
  %4989 = vmatpush1.msra.mxu0 0.0
  %4990 = vmatprep.subr.mxu0 0.0
  %4991 = vmatpush1.msra.mxu0 0.0
  %4992 = vmatprep.subr.mxu0 0.0
  %4993 = vmatpush1.msra.mxu0 0.0
  %4994 = vmatprep.subr.mxu0 0.0
  %4995 = vmatpush1.msra.mxu0 0.0
  %4996 = vmatprep.subr.mxu0 0.0
  %4997 = vmatpush1.msra.mxu0 0.0
  %4998 = vmatprep.subr.mxu0 0.0
  %4999 = vmatpush1.msra.mxu0 0.0
  %5000 = vmatprep.subr.mxu0 0.0
  %5001 = vmatpush1.msra.mxu0 0.0
  %5002 = vmatprep.subr.mxu0 0.0
  %5003 = vmatpush1.msra.mxu0 0.0
  %5004 = vmatprep.subr.mxu0 0.0
  %5005 = vmatpush1.msra.mxu0 0.0
  %5006 = vmatprep.subr.mxu0 0.0
  %5007 = vmatpush1.msra.mxu0 0.0
  %5008 = vmatprep.subr.mxu0 0.0
  %5009 = vmatpush1.msra.mxu0 0.0
  %5010 = vmatprep.subr.mxu0 0.0
  %5011 = vmatpush1.msra.mxu0 0.0
  %5012 = vmatprep.subr.mxu0 0.0
  %5013 = vmatpush1.msra.mxu0 0.0
  %5014 = vmatprep.subr.mxu0 0.0
  %5015 = vmatpush1.msra.mxu0 0.0
  %5016 = vmatprep.subr.mxu0 0.0
  %5017 = vmatpush1.msra.mxu0 0.0
  %5018 = vmatprep.subr.mxu0 0.0
  %5019 = vmatpush1.msra.mxu0 0.0
  %5020 = vmatprep.subr.mxu0 0.0
  %5021 = vmatpush1.msra.mxu0 0.0
  %5022 = vmatprep.subr.mxu0 0.0
  %5023 = vmatpush1.msra.mxu0 0.0
  %5024 = vmatprep.subr.mxu0 0.0
  %5025 = vmatpush1.msra.mxu0 0.0
  %5026 = vmatprep.subr.mxu0 0.0
  %5027 = vmatpush1.msra.mxu0 0.0
  %5028 = vmatprep.subr.mxu0 0.0
  %5029 = vmatpush1.msra.mxu0 0.0
  %5030 = vmatprep.subr.mxu0 0.0
  %5031 = vmatpush1.msra.mxu0 0.0
  %5032 = vmatprep.subr.mxu0 0.0
  %5033 = vmatpush1.msra.mxu0 0.0
  %5034 = vmatprep.subr.mxu0 0.0
  %5035 = vmatpush1.msra.mxu0 0.0
  %5036 = vmatprep.subr.mxu0 0.0
  %5037 = vmatpush1.msra.mxu0 0.0
  %5038 = vmatprep.subr.mxu0 0.0
  %5039 = vmatpush1.msra.mxu0 0.0
  %5040 = vmatprep.subr.mxu0 0.0
  %5041 = vmatpush1.msra.mxu0 0.0
  %5042 = vmatprep.subr.mxu0 0.0
  %5043 = vmatpush1.msra.mxu0 0.0
  %5044 = vmatprep.mubr.f32.mxu0 0.0
  %5045 = vmatmul.mubr.f32.gmra.mrb[0].mxu0 %v4978
  %v5046 = vpop.f32.mrb[0].mxu0
  %v5047 = vadd.f32 0.0, %v5046
  %v5048 = vpop.f32.mrb[0].mxu0
  %5049 = vdwg.mxu0
  %v5051 = vsel %vm1037, %v4610, 0
  %5053 = vmatprep.subr.mxu0 0.0
  %5054 = vmatpush1.msra.mxu0 %v3898
  %5055 = vmatprep.subr.mxu0 0.0
  %5056 = vmatpush1.msra.mxu0 0.0
  %5057 = vmatprep.subr.mxu0 0.0
  %5058 = vmatpush1.msra.mxu0 0.0
  %5059 = vmatprep.subr.mxu0 0.0
  %5060 = vmatpush1.msra.mxu0 0.0
  %5061 = vmatprep.subr.mxu0 0.0
  %5062 = vmatpush1.msra.mxu0 0.0
  %5063 = vmatprep.subr.mxu0 0.0
  %5064 = vmatpush1.msra.mxu0 0.0
  %5065 = vmatprep.subr.mxu0 0.0
  %5066 = vmatpush1.msra.mxu0 0.0
  %5067 = vmatprep.subr.mxu0 0.0
  %5068 = vmatpush1.msra.mxu0 0.0
  %5069 = vmatprep.subr.mxu0 0.0
  %5070 = vmatpush1.msra.mxu0 0.0
  %5071 = vmatprep.subr.mxu0 0.0
  %5072 = vmatpush1.msra.mxu0 0.0
  %5073 = vmatprep.subr.mxu0 0.0
  %5074 = vmatpush1.msra.mxu0 0.0
  %5075 = vmatprep.subr.mxu0 0.0
  %5076 = vmatpush1.msra.mxu0 0.0
  %5077 = vmatprep.subr.mxu0 0.0
  %5078 = vmatpush1.msra.mxu0 0.0
  %5079 = vmatprep.subr.mxu0 0.0
  %5080 = vmatpush1.msra.mxu0 0.0
  %5081 = vmatprep.subr.mxu0 0.0
  %5082 = vmatpush1.msra.mxu0 0.0
  %5083 = vmatprep.subr.mxu0 0.0
  %5084 = vmatpush1.msra.mxu0 0.0
  %5085 = vmatprep.subr.mxu0 0.0
  %5086 = vmatpush1.msra.mxu0 0.0
  %5087 = vmatprep.subr.mxu0 0.0
  %5088 = vmatpush1.msra.mxu0 0.0
  %5089 = vmatprep.subr.mxu0 0.0
  %5090 = vmatpush1.msra.mxu0 0.0
  %5091 = vmatprep.subr.mxu0 0.0
  %5092 = vmatpush1.msra.mxu0 0.0
  %5093 = vmatprep.subr.mxu0 0.0
  %5094 = vmatpush1.msra.mxu0 0.0
  %5095 = vmatprep.subr.mxu0 0.0
  %5096 = vmatpush1.msra.mxu0 0.0
  %5097 = vmatprep.subr.mxu0 0.0
  %5098 = vmatpush1.msra.mxu0 0.0
  %5099 = vmatprep.subr.mxu0 0.0
  %5100 = vmatpush1.msra.mxu0 0.0
  %5101 = vmatprep.subr.mxu0 0.0
  %5102 = vmatpush1.msra.mxu0 0.0
  %5103 = vmatprep.subr.mxu0 0.0
  %5104 = vmatpush1.msra.mxu0 0.0
  %5105 = vmatprep.subr.mxu0 0.0
  %5106 = vmatpush1.msra.mxu0 0.0
  %5107 = vmatprep.subr.mxu0 0.0
  %5108 = vmatpush1.msra.mxu0 0.0
  %5109 = vmatprep.subr.mxu0 0.0
  %5110 = vmatpush1.msra.mxu0 0.0
  %5111 = vmatprep.subr.mxu0 0.0
  %5112 = vmatpush1.msra.mxu0 0.0
  %5113 = vmatprep.subr.mxu0 0.0
  %5114 = vmatpush1.msra.mxu0 0.0
  %5115 = vmatprep.subr.mxu0 0.0
  %5116 = vmatpush1.msra.mxu0 0.0
  %5117 = vmatprep.mubr.f32.mxu0 0.0
  %5118 = vmatmul.mubr.f32.gmra.mrb[0].mxu0 %v5051
  %v5119 = vpop.f32.mrb[0].mxu0
  %v5120 = vadd.f32 0.0, %v5119
  %v5121 = vpop.f32.mrb[0].mxu0
  %5122 = vdwg.mxu0
  %v5124 = vsel %vm1037, %v4611, 0
  %5126 = vmatprep.subr.mxu0 0.0
  %5127 = vmatpush1.msra.mxu0 %v3899
  %5128 = vmatprep.subr.mxu0 0.0
  %5129 = vmatpush1.msra.mxu0 0.0
  %5130 = vmatprep.subr.mxu0 0.0
  %5131 = vmatpush1.msra.mxu0 0.0
  %5132 = vmatprep.subr.mxu0 0.0
  %5133 = vmatpush1.msra.mxu0 0.0
  %5134 = vmatprep.subr.mxu0 0.0
  %5135 = vmatpush1.msra.mxu0 0.0
  %5136 = vmatprep.subr.mxu0 0.0
  %5137 = vmatpush1.msra.mxu0 0.0
  %5138 = vmatprep.subr.mxu0 0.0
  %5139 = vmatpush1.msra.mxu0 0.0
  %5140 = vmatprep.subr.mxu0 0.0
  %5141 = vmatpush1.msra.mxu0 0.0
  %5142 = vmatprep.subr.mxu0 0.0
  %5143 = vmatpush1.msra.mxu0 0.0
  %5144 = vmatprep.subr.mxu0 0.0
  %5145 = vmatpush1.msra.mxu0 0.0
  %5146 = vmatprep.subr.mxu0 0.0
  %5147 = vmatpush1.msra.mxu0 0.0
  %5148 = vmatprep.subr.mxu0 0.0
  %5149 = vmatpush1.msra.mxu0 0.0
  %5150 = vmatprep.subr.mxu0 0.0
  %5151 = vmatpush1.msra.mxu0 0.0
  %5152 = vmatprep.subr.mxu0 0.0
  %5153 = vmatpush1.msra.mxu0 0.0
  %5154 = vmatprep.subr.mxu0 0.0
  %5155 = vmatpush1.msra.mxu0 0.0
  %5156 = vmatprep.subr.mxu0 0.0
  %5157 = vmatpush1.msra.mxu0 0.0
  %5158 = vmatprep.subr.mxu0 0.0
  %5159 = vmatpush1.msra.mxu0 0.0
  %5160 = vmatprep.subr.mxu0 0.0
  %5161 = vmatpush1.msra.mxu0 0.0
  %5162 = vmatprep.subr.mxu0 0.0
  %5163 = vmatpush1.msra.mxu0 0.0
  %5164 = vmatprep.subr.mxu0 0.0
  %5165 = vmatpush1.msra.mxu0 0.0
  %5166 = vmatprep.subr.mxu0 0.0
  %5167 = vmatpush1.msra.mxu0 0.0
  %5168 = vmatprep.subr.mxu0 0.0
  %5169 = vmatpush1.msra.mxu0 0.0
  %5170 = vmatprep.subr.mxu0 0.0
  %5171 = vmatpush1.msra.mxu0 0.0
  %5172 = vmatprep.subr.mxu0 0.0
  %5173 = vmatpush1.msra.mxu0 0.0
  %5174 = vmatprep.subr.mxu0 0.0
  %5175 = vmatpush1.msra.mxu0 0.0
  %5176 = vmatprep.subr.mxu0 0.0
  %5177 = vmatpush1.msra.mxu0 0.0
  %5178 = vmatprep.subr.mxu0 0.0
  %5179 = vmatpush1.msra.mxu0 0.0
  %5180 = vmatprep.subr.mxu0 0.0
  %5181 = vmatpush1.msra.mxu0 0.0
  %5182 = vmatprep.subr.mxu0 0.0
  %5183 = vmatpush1.msra.mxu0 0.0
  %5184 = vmatprep.subr.mxu0 0.0
  %5185 = vmatpush1.msra.mxu0 0.0
  %5186 = vmatprep.subr.mxu0 0.0
  %5187 = vmatpush1.msra.mxu0 0.0
  %5188 = vmatprep.subr.mxu0 0.0
  %5189 = vmatpush1.msra.mxu0 0.0
  %5190 = vmatprep.mubr.f32.mxu0 0.0
  %5191 = vmatmul.mubr.f32.gmra.mrb[0].mxu0 %v5124
  %v5192 = vpop.f32.mrb[0].mxu0
  %v5193 = vadd.f32 0.0, %v5192
  %v5194 = vpop.f32.mrb[0].mxu0
  %5195 = vdwg.mxu0
  %v5196 = vcombine.low %v4682, %v4828
  %v5197 = vcombine.high %v4682, %v4828
  %v5199 = vunpack.c.l.s4 1983009808
  %v5200 = vunpack.c.0.s8 %v5199
  %v5201 = vlaneseq
  %v5202 = vshrl.u32 %v5201, 7
  %v5203 = vsub.s32 %v5200, %v5202
  %v5204 = vrot.slane %v5196, %v5203
  %v5206 = vunpack.c.l.s4 1983009808
  %v5207 = vunpack.c.0.s8 %v5206
  %v5208 = vlaneseq
  %v5209 = vshrl.u32 %v5208, 7
  %v5210 = vsub.s32 %v5207, %v5209
  %v5211 = vrot.slane %v5197, %v5210
  %v5212 = vcombine.low %v4755, %v4901
  %v5213 = vcombine.high %v4755, %v4901
  %v5215 = vunpack.c.l.s4 1983009808
  %v5216 = vunpack.c.0.s8 %v5215
  %v5217 = vlaneseq
  %v5218 = vshrl.u32 %v5217, 7
  %v5219 = vsub.s32 %v5216, %v5218
  %v5220 = vrot.slane %v5212, %v5219
  %v5222 = vunpack.c.l.s4 1983009808
  %v5223 = vunpack.c.0.s8 %v5222
  %v5224 = vlaneseq
  %v5225 = vshrl.u32 %v5224, 7
  %v5226 = vsub.s32 %v5223, %v5225
  %v5227 = vrot.slane %v5213, %v5226
  %v5228 = vcombine.low %v5204, %v5220
  %v5229 = vcombine.high %v5204, %v5220
  %v5231 = vunpack.c.l.s4 1934713408
  %v5232 = vunpack.c.0.s8 %v5231
  %v5233 = vlaneseq
  %v5234 = vshrl.u32 %v5233, 7
  %v5235 = vsub.s32 %v5232, %v5234
  %v5236 = vrot.slane %v5228, %v5235
  %v5238 = vunpack.c.l.s4 1934713408
  %v5239 = vunpack.c.0.s8 %v5238
  %v5240 = vlaneseq
  %v5241 = vshrl.u32 %v5240, 7
  %v5242 = vsub.s32 %v5239, %v5241
  %v5243 = vrot.slane %v5229, %v5242
  %v5244 = vcombine.low %v5211, %v5227
  %v5245 = vcombine.high %v5211, %v5227
  %v5247 = vunpack.c.l.s4 1934713408
  %v5248 = vunpack.c.0.s8 %v5247
  %v5249 = vlaneseq
  %v5250 = vshrl.u32 %v5249, 7
  %v5251 = vsub.s32 %v5248, %v5250
  %v5252 = vrot.slane %v5244, %v5251
  %v5254 = vunpack.c.l.s4 1934713408
  %v5255 = vunpack.c.0.s8 %v5254
  %v5256 = vlaneseq
  %v5257 = vshrl.u32 %v5256, 7
  %v5258 = vsub.s32 %v5255, %v5257
  %v5259 = vrot.slane %v5245, %v5258
  %v5260 = vcombine.high %v5236, 0.0
  %v5261 = vcombine.high %v5243, 0.0
  %v5262 = vcombine.high %v5252, 0.0
  %v5263 = vcombine.high %v5259, 0.0
  %v5264 = vcombine.low %v4974, %v5120
  %v5265 = vcombine.high %v4974, %v5120
  %v5267 = vunpack.c.l.s4 1983009808
  %v5268 = vunpack.c.0.s8 %v5267
  %v5269 = vlaneseq
  %v5270 = vshrl.u32 %v5269, 7
  %v5271 = vsub.s32 %v5268, %v5270
  %v5272 = vrot.slane %v5264, %v5271
  %v5274 = vunpack.c.l.s4 1983009808
  %v5275 = vunpack.c.0.s8 %v5274
  %v5276 = vlaneseq
  %v5277 = vshrl.u32 %v5276, 7
  %v5278 = vsub.s32 %v5275, %v5277
  %v5279 = vrot.slane %v5265, %v5278
  %v5280 = vcombine.low %v5047, %v5193
  %v5281 = vcombine.high %v5047, %v5193
  %v5283 = vunpack.c.l.s4 1983009808
  %v5284 = vunpack.c.0.s8 %v5283
  %v5285 = vlaneseq
  %v5286 = vshrl.u32 %v5285, 7
  %v5287 = vsub.s32 %v5284, %v5286
  %v5288 = vrot.slane %v5280, %v5287
  %v5290 = vunpack.c.l.s4 1983009808
  %v5291 = vunpack.c.0.s8 %v5290
  %v5292 = vlaneseq
  %v5293 = vshrl.u32 %v5292, 7
  %v5294 = vsub.s32 %v5291, %v5293
  %v5295 = vrot.slane %v5281, %v5294
  %v5296 = vcombine.low %v5272, %v5288
  %v5297 = vcombine.high %v5272, %v5288
  %v5299 = vunpack.c.l.s4 1934713408
  %v5300 = vunpack.c.0.s8 %v5299
  %v5301 = vlaneseq
  %v5302 = vshrl.u32 %v5301, 7
  %v5303 = vsub.s32 %v5300, %v5302
  %v5304 = vrot.slane %v5296, %v5303
  %v5306 = vunpack.c.l.s4 1934713408
  %v5307 = vunpack.c.0.s8 %v5306
  %v5308 = vlaneseq
  %v5309 = vshrl.u32 %v5308, 7
  %v5310 = vsub.s32 %v5307, %v5309
  %v5311 = vrot.slane %v5297, %v5310
  %v5312 = vcombine.low %v5279, %v5295
  %v5313 = vcombine.high %v5279, %v5295
  %v5315 = vunpack.c.l.s4 1934713408
  %v5316 = vunpack.c.0.s8 %v5315
  %v5317 = vlaneseq
  %v5318 = vshrl.u32 %v5317, 7
  %v5319 = vsub.s32 %v5316, %v5318
  %v5320 = vrot.slane %v5312, %v5319
  %v5322 = vunpack.c.l.s4 1934713408
  %v5323 = vunpack.c.0.s8 %v5322
  %v5324 = vlaneseq
  %v5325 = vshrl.u32 %v5324, 7
  %v5326 = vsub.s32 %v5323, %v5325
  %v5327 = vrot.slane %v5313, %v5326
  %v5328 = vcombine.high %v5304, 0.0
  %v5329 = vcombine.high %v5311, 0.0
  %v5330 = vcombine.high %v5320, 0.0
  %v5331 = vcombine.high %v5327, 0.0
  %v5332 = vcombine.low %v5236, %v5243
  %v5334 = vunpack.c.l.s4 1983009808
  %v5335 = vunpack.c.0.s8 %v5334
  %v5336 = vlaneseq
  %v5337 = vshrl.u32 %v5336, 7
  %v5338 = vsub.s32 %v5335, %v5337
  %v5339 = vrot.slane %v5332, %v5338
  %v5340 = vcombine.low %v5260, %v5261
  %v5342 = vunpack.c.l.s4 1983009808
  %v5343 = vunpack.c.0.s8 %v5342
  %v5344 = vlaneseq
  %v5345 = vshrl.u32 %v5344, 7
  %v5346 = vsub.s32 %v5343, %v5345
  %v5347 = vrot.slane %v5340, %v5346
  %v5348 = vcombine.low %v5252, %v5259
  %v5350 = vunpack.c.l.s4 1983009808
  %v5351 = vunpack.c.0.s8 %v5350
  %v5352 = vlaneseq
  %v5353 = vshrl.u32 %v5352, 7
  %v5354 = vsub.s32 %v5351, %v5353
  %v5355 = vrot.slane %v5348, %v5354
  %v5356 = vcombine.low %v5262, %v5263
  %v5358 = vunpack.c.l.s4 1983009808
  %v5359 = vunpack.c.0.s8 %v5358
  %v5360 = vlaneseq
  %v5361 = vshrl.u32 %v5360, 7
  %v5362 = vsub.s32 %v5359, %v5361
  %v5363 = vrot.slane %v5356, %v5362
  %v5364 = vcombine.low %v5339, %v5347
  %v5365 = vcombine.high %v5339, %v5347
  %v5367 = vunpack.c.l.s4 1934713408
  %v5368 = vunpack.c.0.s8 %v5367
  %v5369 = vlaneseq
  %v5370 = vshrl.u32 %v5369, 7
  %v5371 = vsub.s32 %v5368, %v5370
  %v5372 = vrot.slane %v5364, %v5371
  %v5374 = vunpack.c.l.s4 1934713408
  %v5375 = vunpack.c.0.s8 %v5374
  %v5376 = vlaneseq
  %v5377 = vshrl.u32 %v5376, 7
  %v5378 = vsub.s32 %v5375, %v5377
  %v5379 = vrot.slane %v5365, %v5378
  %v5380 = vcombine.low %v5355, %v5363
  %v5381 = vcombine.high %v5355, %v5363
  %v5383 = vunpack.c.l.s4 1934713408
  %v5384 = vunpack.c.0.s8 %v5383
  %v5385 = vlaneseq
  %v5386 = vshrl.u32 %v5385, 7
  %v5387 = vsub.s32 %v5384, %v5386
  %v5388 = vrot.slane %v5380, %v5387
  %v5390 = vunpack.c.l.s4 1934713408
  %v5391 = vunpack.c.0.s8 %v5390
  %v5392 = vlaneseq
  %v5393 = vshrl.u32 %v5392, 7
  %v5394 = vsub.s32 %v5391, %v5393
  %v5395 = vrot.slane %v5381, %v5394
  %v5396 = vcombine.low %v5372, %v5388
  %v5397 = vcombine.high %v5372, %v5388
  %v5398 = vcombine.low %v5379, %v5395
  %v5399 = vcombine.high %v5379, %v5395
  %v5400 = vcombine.low %v5304, %v5311
  %v5402 = vunpack.c.l.s4 1983009808
  %v5403 = vunpack.c.0.s8 %v5402
  %v5404 = vlaneseq
  %v5405 = vshrl.u32 %v5404, 7
  %v5406 = vsub.s32 %v5403, %v5405
  %v5407 = vrot.slane %v5400, %v5406
  %v5408 = vcombine.low %v5328, %v5329
  %v5410 = vunpack.c.l.s4 1983009808
  %v5411 = vunpack.c.0.s8 %v5410
  %v5412 = vlaneseq
  %v5413 = vshrl.u32 %v5412, 7
  %v5414 = vsub.s32 %v5411, %v5413
  %v5415 = vrot.slane %v5408, %v5414
  %v5416 = vcombine.low %v5320, %v5327
  %v5418 = vunpack.c.l.s4 1983009808
  %v5419 = vunpack.c.0.s8 %v5418
  %v5420 = vlaneseq
  %v5421 = vshrl.u32 %v5420, 7
  %v5422 = vsub.s32 %v5419, %v5421
  %v5423 = vrot.slane %v5416, %v5422
  %v5424 = vcombine.low %v5330, %v5331
  %v5426 = vunpack.c.l.s4 1983009808
  %v5427 = vunpack.c.0.s8 %v5426
  %v5428 = vlaneseq
  %v5429 = vshrl.u32 %v5428, 7
  %v5430 = vsub.s32 %v5427, %v5429
  %v5431 = vrot.slane %v5424, %v5430
  %v5432 = vcombine.low %v5407, %v5415
  %v5433 = vcombine.high %v5407, %v5415
  %v5435 = vunpack.c.l.s4 1934713408
  %v5436 = vunpack.c.0.s8 %v5435
  %v5437 = vlaneseq
  %v5438 = vshrl.u32 %v5437, 7
  %v5439 = vsub.s32 %v5436, %v5438
  %v5440 = vrot.slane %v5432, %v5439
  %v5442 = vunpack.c.l.s4 1934713408
  %v5443 = vunpack.c.0.s8 %v5442
  %v5444 = vlaneseq
  %v5445 = vshrl.u32 %v5444, 7
  %v5446 = vsub.s32 %v5443, %v5445
  %v5447 = vrot.slane %v5433, %v5446
  %v5448 = vcombine.low %v5423, %v5431
  %v5449 = vcombine.high %v5423, %v5431
  %v5451 = vunpack.c.l.s4 1934713408
  %v5452 = vunpack.c.0.s8 %v5451
  %v5453 = vlaneseq
  %v5454 = vshrl.u32 %v5453, 7
  %v5455 = vsub.s32 %v5452, %v5454
  %v5456 = vrot.slane %v5448, %v5455
  %v5458 = vunpack.c.l.s4 1934713408
  %v5459 = vunpack.c.0.s8 %v5458
  %v5460 = vlaneseq
  %v5461 = vshrl.u32 %v5460, 7
  %v5462 = vsub.s32 %v5459, %v5461
  %v5463 = vrot.slane %v5449, %v5462
  %v5464 = vcombine.low %v5440, %v5456
  %v5465 = vcombine.high %v5440, %v5456
  %v5466 = vcombine.low %v5447, %v5463
  %v5467 = vcombine.high %v5447, %v5463
  %5470 = vrot.lane.b32.xlu0 %v5397, 8
  %v5471 = vpop.permute.xlu0 %5470
  %5472 = vrot.lane.b32.xlu0 %v5465, 8
  %v5473 = vpop.permute.xlu0 %5472
  %5478 = vrot.lane.b32.xlu0 %v5398, 16
  %v5479 = vpop.permute.xlu0 %5478
  %5480 = vrot.lane.b32.xlu0 %v5466, 16
  %v5481 = vpop.permute.xlu0 %5480
  %5486 = vrot.lane.b32.xlu0 %v5399, 24
  %v5487 = vpop.permute.xlu0 %5486
  %5488 = vrot.lane.b32.xlu0 %v5467, 24
  %v5489 = vpop.permute.xlu0 %5488
  %v5492 = vsel %vm1037, %v5396, %v5471
  %v5493 = vsel %vm1037, %v5464, %v5473
  %v5494 = vsel %vm2632, %v5492, %v5479
  %v5495 = vsel %vm2632, %v5493, %v5481
  %v5496 = vsel %vm2635, %v5494, %v5487
  %v5497 = vsel %vm2635, %v5495, %v5489
  %v5498 = vpack.c.bf16 %v5497, %v5496
  %s5499 = scalar_lea.vmem %s4, 16
  %v5500 = vld [vmem:[%s5499] sm:$0xf]
  %v5501 = vld [vmem:[%s5499 + $0x4] sm:$0xf]
  %v5502 = vld [vmem:[%s5499 + $0x8] sm:$0xf]
  %v5503 = vld [vmem:[%s5499 + $0xc] sm:$0xf]
  %v5504 = vlaneseq
  %v5505 = vshrl.u32 %v5504, 7
  %v5506 = vsub.s32 1, %v5505
  %v5507 = vrot.slane %v2949, %v5506
  %v5512 = vunpack.c.l.b16 %v5500
  %v5513 = vunpack.c.l.b16 %v5501
  %v5514 = vunpack.c.l.b16 %v5502
  %v5515 = vunpack.c.l.b16 %v5503
  %v5516 = vpack.c.b16 %v5513, %v5512
  %v5517 = vpack.c.b16 %v5515, %v5514
  %v5521 = vsel %vm47, %v5498, 0
  %5523 = vmatprep.subr.bf16.mxu0 0
  %5524 = vmatpush1.bf16.msra.mxu0 %v5516
  %5525 = vmatprep.subr.bf16.mxu0 0
  %5526 = vmatpush1.bf16.msra.mxu0 %v5517
  %5527 = vmatprep.subr.bf16.mxu0 0
  %5528 = vmatpush1.bf16.msra.mxu0 0
  %5529 = vmatprep.subr.bf16.mxu0 0
  %5530 = vmatpush1.bf16.msra.mxu0 0
  %5531 = vmatprep.subr.bf16.mxu0 0
  %5532 = vmatpush1.bf16.msra.mxu0 0
  %5533 = vmatprep.subr.bf16.mxu0 0
  %5534 = vmatpush1.bf16.msra.mxu0 0
  %5535 = vmatprep.subr.bf16.mxu0 0
  %5536 = vmatpush1.bf16.msra.mxu0 0
  %5537 = vmatprep.subr.bf16.mxu0 0
  %5538 = vmatpush1.bf16.msra.mxu0 0
  %5539 = vmatprep.subr.bf16.mxu0 0
  %5540 = vmatpush1.bf16.msra.mxu0 0
  %5541 = vmatprep.subr.bf16.mxu0 0
  %5542 = vmatpush1.bf16.msra.mxu0 0
  %5543 = vmatprep.subr.bf16.mxu0 0
  %5544 = vmatpush1.bf16.msra.mxu0 0
  %5545 = vmatprep.subr.bf16.mxu0 0
  %5546 = vmatpush1.bf16.msra.mxu0 0
  %5547 = vmatprep.subr.bf16.mxu0 0
  %5548 = vmatpush1.bf16.msra.mxu0 0
  %5549 = vmatprep.subr.bf16.mxu0 0
  %5550 = vmatpush1.bf16.msra.mxu0 0
  %5551 = vmatprep.subr.bf16.mxu0 0
  %5552 = vmatpush1.bf16.msra.mxu0 0
  %5553 = vmatprep.subr.bf16.mxu0 0
  %5554 = vmatpush1.bf16.msra.mxu0 0
  %5555 = vmatprep.mubr.bf16.mxu0 0
  %5556 = vmatmul.mubr.bf16.gmra.mrb[0].mxu0 %v5521
  %v5557 = vpop.f32.mrb[0].mxu0
  %v5558 = vadd.f32 %v5507, %v5557
  %v5559 = vpop.f32.mrb[0].mxu0
  %v5560 = vpop.f32.mrb[0].mxu0
  %v5561 = vadd.f32 %v5507, %v5560
  %v5562 = vpop.f32.mrb[0].mxu0
  %5563 = vdwg.mxu0
  %v5564 = vadd.f32 %v2946, %v5558
  %v5565 = vadd.f32 %v2947, %v5561
  %v5566 = vsel %vm47, %v5564, 0.0
  %5567 = vadd.xlane.f32.xlu0 %v5566
  %v5568 = vpop.xlane.xlu0 %5567
  %v5569 = vsel %vm47, %v5565, 0.0
  %5570 = vadd.xlane.f32.xlu0 %v5569
  %v5571 = vpop.xlane.xlu0 %5570
  %v5572 = vmul.f32 %v5568, %v54
  %v5573 = vmul.f32 %v5571, %v54
  %v5574 = vsub.f32 %v5564, %v5572
  %v5575 = vsub.f32 %v5565, %v5573
  %v5576 = vmul.f32 %v5574, %v5574
  %v5577 = vmul.f32 %v5575, %v5575
  %v5578 = vsel %vm47, %v5576, 0.0
  %5579 = vadd.xlane.f32.xlu0 %v5578
  %v5580 = vpop.xlane.xlu0 %5579
  %v5581 = vsel %vm47, %v5577, 0.0
  %5582 = vadd.xlane.f32.xlu0 %v5581
  %v5583 = vpop.xlane.xlu0 %5582
  %v5584 = vmul.f32 %v5580, %v54
  %v5585 = vmul.f32 %v5583, %v54
  %v5586 = vadd.f32 %v5584, 1e-12
  %v5587 = vadd.f32 %v5585, 1e-12
  %v5588 = vrsqrt.pop %v5586
  %v5589 = vrsqrt.pop %v5587
  %v5590 = vmul.f32 %v5574, %v5588
  %v5591 = vmul.f32 %v5575, %v5589
  %v5592 = vlaneseq
  %v5593 = vshrl.u32 %v5592, 7
  %v5594 = vsub.s32 2, %v5593
  %v5595 = vrot.slane %v2949, %v5594
  %v5596 = vmul.f32 %v5590, %v5595
  %v5597 = vmul.f32 %v5591, %v5595
  %v5598 = vlaneseq
  %v5599 = vshrl.u32 %v5598, 7
  %v5600 = vsub.s32 3, %v5599
  %v5601 = vrot.slane %v2949, %v5600
  %v5602 = vadd.f32 %v5596, %v5601
  %v5603 = vadd.f32 %v5597, %v5601
  %v5604 = vpack.c.bf16 %v5603, %v5602
  %s5605 = scalar_lea.vmem %s5, 16
  %v5606 = vld [vmem:[%s5605] sm:$0xf]
  %v5607 = vld [vmem:[%s5605 + $0x4] sm:$0xf]
  %v5608 = vld [vmem:[%s5605 + $0x8] sm:$0xf]
  %v5609 = vld [vmem:[%s5605 + $0xc] sm:$0xf]
  %v5610 = vlaneseq
  %v5611 = vshrl.u32 %v5610, 7
  %v5612 = vsub.s32 4, %v5611
  %v5613 = vrot.slane %v2949, %v5612
  %v5618 = vunpack.c.l.b16 %v5606
  %v5619 = vunpack.c.l.b16 %v5607
  %v5620 = vunpack.c.l.b16 %v5608
  %v5621 = vunpack.c.l.b16 %v5609
  %v5622 = vpack.c.b16 %v5619, %v5618
  %v5623 = vpack.c.b16 %v5621, %v5620
  %v5627 = vsel %vm47, %v5604, 0
  %5629 = vmatprep.subr.bf16.mxu0 0
  %5630 = vmatpush1.bf16.msra.mxu0 %v5622
  %5631 = vmatprep.subr.bf16.mxu0 0
  %5632 = vmatpush1.bf16.msra.mxu0 %v5623
  %5633 = vmatprep.subr.bf16.mxu0 0
  %5634 = vmatpush1.bf16.msra.mxu0 0
  %5635 = vmatprep.subr.bf16.mxu0 0
  %5636 = vmatpush1.bf16.msra.mxu0 0
  %5637 = vmatprep.subr.bf16.mxu0 0
  %5638 = vmatpush1.bf16.msra.mxu0 0
  %5639 = vmatprep.subr.bf16.mxu0 0
  %5640 = vmatpush1.bf16.msra.mxu0 0
  %5641 = vmatprep.subr.bf16.mxu0 0
  %5642 = vmatpush1.bf16.msra.mxu0 0
  %5643 = vmatprep.subr.bf16.mxu0 0
  %5644 = vmatpush1.bf16.msra.mxu0 0
  %5645 = vmatprep.subr.bf16.mxu0 0
  %5646 = vmatpush1.bf16.msra.mxu0 0
  %5647 = vmatprep.subr.bf16.mxu0 0
  %5648 = vmatpush1.bf16.msra.mxu0 0
  %5649 = vmatprep.subr.bf16.mxu0 0
  %5650 = vmatpush1.bf16.msra.mxu0 0
  %5651 = vmatprep.subr.bf16.mxu0 0
  %5652 = vmatpush1.bf16.msra.mxu0 0
  %5653 = vmatprep.subr.bf16.mxu0 0
  %5654 = vmatpush1.bf16.msra.mxu0 0
  %5655 = vmatprep.subr.bf16.mxu0 0
  %5656 = vmatpush1.bf16.msra.mxu0 0
  %5657 = vmatprep.subr.bf16.mxu0 0
  %5658 = vmatpush1.bf16.msra.mxu0 0
  %5659 = vmatprep.subr.bf16.mxu0 0
  %5660 = vmatpush1.bf16.msra.mxu0 0
  %5661 = vmatprep.mubr.bf16.mxu0 0
  %5662 = vmatmul.mubr.bf16.gmra.mrb[0].mxu0 %v5627
  %v5663 = vpop.f32.mrb[0].mxu0
  %v5664 = vadd.f32 %v5613, %v5663
  %v5665 = vpop.f32.mrb[0].mxu0
  %v5666 = vpop.f32.mrb[0].mxu0
  %v5667 = vadd.f32 %v5613, %v5666
  %v5668 = vpop.f32.mrb[0].mxu0
  %5669 = vdwg.mxu0
  %v5670 = vmul.f32 %v5664, 0.5
  %v5671 = vmul.f32 %v5667, 0.5
  %v5672 = vmul.f32 %v5664, 0.044715
  %v5673 = vmul.f32 %v5667, 0.044715
  %v5674 = vmul.f32 %v5672, %v5664
  %v5675 = vmul.f32 %v5673, %v5667
  %v5676 = vmul.f32 %v5674, %v5664
  %v5677 = vmul.f32 %v5675, %v5667
  %v5678 = vadd.f32 %v5664, %v5676
  %v5679 = vadd.f32 %v5667, %v5677
  %v5680 = vmul.f32 %v5678, 0.7978846
  %v5681 = vmul.f32 %v5679, 0.7978846
  %v5682 = vtanh.pop %v5680
  %v5683 = vtanh.pop %v5681
  %v5684 = vadd.f32 %v5682, 1.0
  %v5685 = vadd.f32 %v5683, 1.0
  %v5686 = vmul.f32 %v5670, %v5684
  %v5687 = vmul.f32 %v5671, %v5685
  %v5688 = vpack.c.bf16 %v5687, %v5686
  %s5689 = scalar_lea.vmem %s6, 32
  %v5690 = vld [vmem:[%s5689] sm:$0xf]
  %v5691 = vld [vmem:[%s5689 + $0x4] sm:$0xf]
  %v5692 = vld [vmem:[%s5689 + $0x8] sm:$0xf]
  %v5693 = vld [vmem:[%s5689 + $0xc] sm:$0xf]
  %v5694 = vld [vmem:[%s5689 + $0x10] sm:$0xf]
  %v5695 = vld [vmem:[%s5689 + $0x14] sm:$0xf]
  %v5696 = vld [vmem:[%s5689 + $0x18] sm:$0xf]
  %v5697 = vld [vmem:[%s5689 + $0x1c] sm:$0xf]
  %v5698 = vlaneseq
  %v5699 = vshrl.u32 %v5698, 7
  %v5700 = vsub.s32 5, %v5699
  %v5701 = vrot.slane %v2949, %v5700
  %v5710 = vunpack.c.l.b16 %v5690
  %v5711 = vunpack.c.l.b16 %v5691
  %v5712 = vunpack.c.l.b16 %v5692
  %v5713 = vunpack.c.l.b16 %v5693
  %v5714 = vunpack.c.l.b16 %v5694
  %v5715 = vunpack.c.l.b16 %v5695
  %v5716 = vunpack.c.l.b16 %v5696
  %v5717 = vunpack.c.l.b16 %v5697
  %v5718 = vpack.c.b16 %v5711, %v5710
  %v5719 = vpack.c.b16 %v5713, %v5712
  %v5720 = vpack.c.b16 %v5715, %v5714
  %v5721 = vpack.c.b16 %v5717, %v5716
  %v5727 = vsel %vm2863, %v5688, 0
  %5729 = vmatprep.subr.bf16.mxu0 0
  %5730 = vmatpush1.bf16.msra.mxu0 %v5718
  %5731 = vmatprep.subr.bf16.mxu0 0
  %5732 = vmatpush1.bf16.msra.mxu0 %v5719
  %5733 = vmatprep.subr.bf16.mxu0 0
  %5734 = vmatpush1.bf16.msra.mxu0 %v5720
  %5735 = vmatprep.subr.bf16.mxu0 0
  %5736 = vmatpush1.bf16.msra.mxu0 %v5721
  %5737 = vmatprep.subr.bf16.mxu0 0
  %5738 = vmatpush1.bf16.msra.mxu0 0
  %5739 = vmatprep.subr.bf16.mxu0 0
  %5740 = vmatpush1.bf16.msra.mxu0 0
  %5741 = vmatprep.subr.bf16.mxu0 0
  %5742 = vmatpush1.bf16.msra.mxu0 0
  %5743 = vmatprep.subr.bf16.mxu0 0
  %5744 = vmatpush1.bf16.msra.mxu0 0
  %5745 = vmatprep.subr.bf16.mxu0 0
  %5746 = vmatpush1.bf16.msra.mxu0 0
  %5747 = vmatprep.subr.bf16.mxu0 0
  %5748 = vmatpush1.bf16.msra.mxu0 0
  %5749 = vmatprep.subr.bf16.mxu0 0
  %5750 = vmatpush1.bf16.msra.mxu0 0
  %5751 = vmatprep.subr.bf16.mxu0 0
  %5752 = vmatpush1.bf16.msra.mxu0 0
  %5753 = vmatprep.subr.bf16.mxu0 0
  %5754 = vmatpush1.bf16.msra.mxu0 0
  %5755 = vmatprep.subr.bf16.mxu0 0
  %5756 = vmatpush1.bf16.msra.mxu0 0
  %5757 = vmatprep.subr.bf16.mxu0 0
  %5758 = vmatpush1.bf16.msra.mxu0 0
  %5759 = vmatprep.subr.bf16.mxu0 0
  %5760 = vmatpush1.bf16.msra.mxu0 0
  %5761 = vmatprep.mubr.bf16.mxu0 0
  %5762 = vmatmul.mubr.bf16.gmra.mrb[0].mxu0 %v5727
  %v5763 = vpop.f32.mrb[0].mxu0
  %v5764 = vadd.f32 %v5701, %v5763
  %v5765 = vpop.f32.mrb[0].mxu0
  %v5766 = vpop.f32.mrb[0].mxu0
  %v5767 = vadd.f32 %v5701, %v5766
  %v5768 = vpop.f32.mrb[0].mxu0
  %5769 = vdwg.mxu0
  %v5770 = vadd.f32 %v5602, %v5764
  %v5771 = vadd.f32 %v5603, %v5767
  %v5772 = vsel %vm47, %v5770, 0.0
  %5773 = vadd.xlane.f32.xlu0 %v5772
  %v5774 = vpop.xlane.xlu0 %5773
  %v5775 = vsel %vm47, %v5771, 0.0
  %5776 = vadd.xlane.f32.xlu0 %v5775
  %v5777 = vpop.xlane.xlu0 %5776
  %v5778 = vmul.f32 %v5774, %v54
  %v5779 = vmul.f32 %v5777, %v54
  %v5780 = vsub.f32 %v5770, %v5778
  %v5781 = vsub.f32 %v5771, %v5779
  %v5782 = vmul.f32 %v5780, %v5780
  %v5783 = vmul.f32 %v5781, %v5781
  %v5784 = vsel %vm47, %v5782, 0.0
  %5785 = vadd.xlane.f32.xlu0 %v5784
  %v5786 = vpop.xlane.xlu0 %5785
  %v5787 = vsel %vm47, %v5783, 0.0
  %5788 = vadd.xlane.f32.xlu0 %v5787
  %v5789 = vpop.xlane.xlu0 %5788
  %v5790 = vmul.f32 %v5786, %v54
  %v5791 = vmul.f32 %v5789, %v54
  %v5792 = vadd.f32 %v5790, 1e-12
  %v5793 = vadd.f32 %v5791, 1e-12
  %v5794 = vrsqrt.pop %v5792
  %v5795 = vrsqrt.pop %v5793
  %v5796 = vmul.f32 %v5780, %v5794
  %v5797 = vmul.f32 %v5781, %v5795
  %v5798 = vlaneseq
  %v5799 = vshrl.u32 %v5798, 7
  %v5800 = vsub.s32 6, %v5799
  %v5801 = vrot.slane %v2949, %v5800
  %v5802 = vmul.f32 %v5796, %v5801
  %v5803 = vmul.f32 %v5797, %v5801
  %v5804 = vlaneseq
  %v5805 = vshrl.u32 %v5804, 7
  %v5806 = vsub.s32 7, %v5805
  %v5807 = vrot.slane %v2949, %v5806
  %v5808 = vadd.f32 %v5802, %v5807
  %v5809 = vadd.f32 %v5803, %v5807
  %v5810 = vpack.c.bf16 %v5808, %v5808
  %v5811 = vpack.c.bf16 %v5809, %v5809
  %v5812 = vld [vmem:[%s8] sm:$0xf]
  %v5813 = vld [vmem:[%s8 + $0x4] sm:$0xf]
  %v5814 = vld [vmem:[%s8 + $0x8] sm:$0xf]
  %v5815 = vld [vmem:[%s8 + $0xc] sm:$0xf]
  %v5816 = vlaneseq
  %v5817 = vshrl.u32 %v5816, 7
  %v5818 = vsub.s32 2, %v5817
  %v5819 = vrot.slane %v36, %v5818
  %v5822 = vunpack.c.l.b16 %v5810
  %v5823 = vunpack.c.l.b16 %v5811
  %v5824 = vrot.slane %v5823, 7
  %vm5825 = vcmask 1041409
  %v5826 = vsel %vm5825, %v5824, %v5822
  %v5827 = vpack.c.b16 %v5826, %v5826
  %v5832 = vunpack.c.l.b16 %v5812
  %v5833 = vunpack.c.l.b16 %v5813
  %v5834 = vunpack.c.l.b16 %v5814
  %v5835 = vunpack.c.l.b16 %v5815
  %v5836 = vpack.c.b16 %v5833, %v5832
  %v5837 = vpack.c.b16 %v5835, %v5834
  %v5841 = vsel %vm47, %v5827, 0
  %5843 = vmatprep.subr.bf16.mxu0 0
  %5844 = vmatpush1.bf16.msra.mxu0 %v5836
  %5845 = vmatprep.subr.bf16.mxu0 0
  %5846 = vmatpush1.bf16.msra.mxu0 %v5837
  %5847 = vmatprep.subr.bf16.mxu0 0
  %5848 = vmatpush1.bf16.msra.mxu0 0
  %5849 = vmatprep.subr.bf16.mxu0 0
  %5850 = vmatpush1.bf16.msra.mxu0 0
  %5851 = vmatprep.subr.bf16.mxu0 0
  %5852 = vmatpush1.bf16.msra.mxu0 0
  %5853 = vmatprep.subr.bf16.mxu0 0
  %5854 = vmatpush1.bf16.msra.mxu0 0
  %5855 = vmatprep.subr.bf16.mxu0 0
  %5856 = vmatpush1.bf16.msra.mxu0 0
  %5857 = vmatprep.subr.bf16.mxu0 0
  %5858 = vmatpush1.bf16.msra.mxu0 0
  %5859 = vmatprep.subr.bf16.mxu0 0
  %5860 = vmatpush1.bf16.msra.mxu0 0
  %5861 = vmatprep.subr.bf16.mxu0 0
  %5862 = vmatpush1.bf16.msra.mxu0 0
  %5863 = vmatprep.subr.bf16.mxu0 0
  %5864 = vmatpush1.bf16.msra.mxu0 0
  %5865 = vmatprep.subr.bf16.mxu0 0
  %5866 = vmatpush1.bf16.msra.mxu0 0
  %5867 = vmatprep.subr.bf16.mxu0 0
  %5868 = vmatpush1.bf16.msra.mxu0 0
  %5869 = vmatprep.subr.bf16.mxu0 0
  %5870 = vmatpush1.bf16.msra.mxu0 0
  %5871 = vmatprep.subr.bf16.mxu0 0
  %5872 = vmatpush1.bf16.msra.mxu0 0
  %5873 = vmatprep.subr.bf16.mxu0 0
  %5874 = vmatpush1.bf16.msra.mxu0 0
  %5875 = vmatprep.mubr.bf16.mxu0 0
  %5876 = vmatmul.mubr.bf16.gmra.mrb[0].mxu0 %v5841
  %v5877 = vpop.f32.mrb[0].mxu0
  %v5878 = vadd.f32 %v5819, %v5877
  %v5879 = vpop.f32.mrb[0].mxu0
  %v5880 = vpop.f32.mrb[0].mxu0
  %v5881 = vpop.f32.mrb[0].mxu0
  %5882 = vdwg.mxu0
  %v5883 = vtanh.pop %v5878
  %v5884 = vpack.c.bf16 %v5883, %v5883
  %v5885 = vld [vmem:[%s9] sm:$0xf]
  %v5886 = vld [vmem:[%s9 + $0x4] sm:$0xf]
  %v5887 = vld [vmem:[%s9 + $0x8] sm:$0xf]
  %v5888 = vld [vmem:[%s9 + $0xc] sm:$0xf]
  %v5889 = vlaneseq
  %v5890 = vshrl.u32 %v5889, 7
  %v5891 = vsub.s32 3, %v5890
  %v5892 = vrot.slane %v36, %v5891
  %v5897 = vunpack.c.l.b16 %v5885
  %v5898 = vunpack.c.l.b16 %v5886
  %v5899 = vunpack.c.l.b16 %v5887
  %v5900 = vunpack.c.l.b16 %v5888
  %v5901 = vpack.c.b16 %v5898, %v5897
  %v5902 = vpack.c.b16 %v5900, %v5899
  %v5906 = vsel %vm47, %v5884, 0
  %5908 = vmatprep.subr.bf16.mxu0 0
  %5909 = vmatpush1.bf16.msra.mxu0 %v5901
  %5910 = vmatprep.subr.bf16.mxu0 0
  %5911 = vmatpush1.bf16.msra.mxu0 %v5902
  %5912 = vmatprep.subr.bf16.mxu0 0
  %5913 = vmatpush1.bf16.msra.mxu0 0
  %5914 = vmatprep.subr.bf16.mxu0 0
  %5915 = vmatpush1.bf16.msra.mxu0 0
  %5916 = vmatprep.subr.bf16.mxu0 0
  %5917 = vmatpush1.bf16.msra.mxu0 0
  %5918 = vmatprep.subr.bf16.mxu0 0
  %5919 = vmatpush1.bf16.msra.mxu0 0
  %5920 = vmatprep.subr.bf16.mxu0 0
  %5921 = vmatpush1.bf16.msra.mxu0 0
  %5922 = vmatprep.subr.bf16.mxu0 0
  %5923 = vmatpush1.bf16.msra.mxu0 0
  %5924 = vmatprep.subr.bf16.mxu0 0
  %5925 = vmatpush1.bf16.msra.mxu0 0
  %5926 = vmatprep.subr.bf16.mxu0 0
  %5927 = vmatpush1.bf16.msra.mxu0 0
  %5928 = vmatprep.subr.bf16.mxu0 0
  %5929 = vmatpush1.bf16.msra.mxu0 0
  %5930 = vmatprep.subr.bf16.mxu0 0
  %5931 = vmatpush1.bf16.msra.mxu0 0
  %5932 = vmatprep.subr.bf16.mxu0 0
  %5933 = vmatpush1.bf16.msra.mxu0 0
  %5934 = vmatprep.subr.bf16.mxu0 0
  %5935 = vmatpush1.bf16.msra.mxu0 0
  %5936 = vmatprep.subr.bf16.mxu0 0
  %5937 = vmatpush1.bf16.msra.mxu0 0
  %5938 = vmatprep.subr.bf16.mxu0 0
  %5939 = vmatpush1.bf16.msra.mxu0 0
  %5940 = vmatprep.mubr.bf16.mxu0 0
  %5941 = vmatmul.mubr.bf16.gmra.mrb[0].mxu0 %v5906
  %v5942 = vpop.f32.mrb[0].mxu0
  %v5943 = vadd.f32 %v5892, %v5942
  %v5944 = vpop.f32.mrb[0].mxu0
  %v5945 = vpop.f32.mrb[0].mxu0
  %v5946 = vpop.f32.mrb[0].mxu0
  %5947 = vdwg.mxu0
  %vm5948 = vcmask 9216
  %v5949 = vsel %vm5948, %v5943, -inf
  %5950 = vmax.xlane.f32.xlu0 %v5949
  %v5951 = vpop.xlane.xlu0 %5950
  %v5952 = vsub.f32 %v5943, %v5951
  %v5953 = vmul.f32 %v5952, 1.442695
  %v5954 = vpow.pop %v5953
  %v5955 = vsel %vm5948, %v5954, 0.0
  %5956 = vadd.xlane.f32.xlu0 %v5955
  %v5957 = vpop.xlane.xlu0 %5956
  %v5958 = vrcp.pop %v5957
  %v5959 = vmul.f32 %v5954, %v5958
  %5961 = vrot.lane.b32.xlu0 %v5959, 2
  %v5962 = vpop.permute.xlu0 %5961
  %vm5964 = vcmask 15360
  %v5965 = vsel %vm5964, %v5943, %v5962
  %vm5966 = vcmask 31744
  %v5967 = vsel %vm5966, %v5965, 0.0
  %5968 = vst [vmem:[%s10] sm:$0x3] %v5967
  // Predicated region
  $region42: #{bert_model_predict.1} parent=0 // pred_check
    _
  $region43: #{bert_model_predict.1} parent=0 // pred_check_branch
    %5970 = sbr.rel (0) target = $region45
  $region44: #{bert_model_predict.1} parent=0 // pred_region
    _
  $region45: #{bert_model_predict.1} parent=0 // pred_fallthru
    _
  // Predicated region
  $region46: #{bert_model_predict.1} parent=0 // pred_check
    _
  $region47: #{bert_model_predict.1} parent=0 // pred_check_branch
    %5972 = sbr.rel (0) target = $region49
  $region48: #{bert_model_predict.1} parent=0 // pred_region
    _
  $region49: #{bert_model_predict.1} parent=0 // pred_fallthru
    _

</llo_original>
